<compile_context>
chip_gen: v6e
topology: v6e:2x2x1
jax: 0.10.0
libtpu: 0.0.40
codegen_flags: <defaults>
</compile_context>

<pallas_src>
import jax
import jax.numpy as jnp
from jax import lax
from jax.experimental import pallas as pl
from jax.experimental.pallas import tpu as pltpu

NEG_SLOPE = 0.1  # LeakyReLU(negative_slope=0.1)


def _round_up(x, m):
    return (x + m - 1) // m * m


# ---------------------------------------------------------------------------
# Kernels (all single-K-step: dot + bias + activation, no accumulator scratch)
# ---------------------------------------------------------------------------
def _mm_bias_leaky_kernel(x_ref, w_ref, b_ref, o_ref):
    """o = LeakyReLU(x @ w + b).  x:(tm,K)  w:(K,Np)  b:(1,Np)  o:(tm,Np)."""
    y = jnp.dot(x_ref[...], w_ref[...], preferred_element_type=jnp.float32)
    y = y + b_ref[...]
    o_ref[...] = jnp.where(y > 0.0, y, NEG_SLOPE * y)


def _conv_pool_kernel(x_ref, w_ref, b_ref, o_ref):
    """Conv (as matmul) + LeakyReLU + 2x2 max-pool fused.

    x_ref: (4, Mq, K) -- im2col patches grouped by pool-window quadrant
    o_ref: (Mq, Np)   -- pooled output (max over the 4 quadrants)
    """
    w = w_ref[...]
    b = b_ref[...]
    m = None
    for q in range(4):  # static unroll; 4 small MXU dots + VPU max
        y = jnp.dot(x_ref[q], w, preferred_element_type=jnp.float32) + b
        y = jnp.where(y > 0.0, y, NEG_SLOPE * y)
        m = y if m is None else jnp.maximum(m, y)
    o_ref[...] = m


def _tail_kernel(x_ref, w3_ref, b3_ref, w1_ref, b1_ref, w2_ref, b2_ref, o_ref):
    """conv3 (+LeakyReLU) -> 2x2 max-pool -> flatten -> linear1 -> linear2.

    x_ref: (4, Bp, 576) -- conv3 im2col patches, one slab per pool quadrant
    o_ref: (Bp, out_size)
    """
    w3 = w3_ref[...]
    b3 = b3_ref[...]
    m = None
    for q in range(4):
        y = jnp.dot(x_ref[q], w3, preferred_element_type=jnp.float32) + b3
        y = jnp.where(y > 0.0, y, NEG_SLOPE * y)
        m = y if m is None else jnp.maximum(m, y)
    # m is the pooled (Bp, 128) feature == flatten of the (Bp,1,1,128) map.
    h = jnp.dot(m, w1_ref[...], preferred_element_type=jnp.float32) + b1_ref[...]
    o = jnp.dot(h, w2_ref[...], preferred_element_type=jnp.float32) + b2_ref[...]
    o_ref[...] = o


# ---------------------------------------------------------------------------
# Wrapper-side layout helpers (pure data movement, no FLOPs)
# ---------------------------------------------------------------------------
def _im2col(x, k, stride, oh=None, ow=None):
    """NHWC -> (B*oh*ow, k*k*C) patches; feature order (kh, kw, cin)."""
    B, H, W, C = x.shape
    if oh is None:
        oh = (H - k) // stride + 1
    if ow is None:
        ow = (W - k) // stride + 1
    cols = []
    for i in range(k):
        for j in range(k):
            cols.append(x[:, i:i + stride * (oh - 1) + 1:stride,
                          j:j + stride * (ow - 1) + 1:stride, :])
    patches = jnp.concatenate(cols, axis=-1)          # (B, oh, ow, k*k*C)
    return patches.reshape(B * oh * ow, k * k * C), oh, ow


def _conv_w_to_mat(w):
    """PyTorch conv weight (Cout,Cin,KH,KW) -> (KH*KW*Cin, Cout), matching _im2col."""
    cout, cin, kh, kw = w.shape
    return jnp.transpose(w, (2, 3, 1, 0)).reshape(kh * kw * cin, cout)


# ---------------------------------------------------------------------------
# Layer wrappers
# ---------------------------------------------------------------------------
def conv1_leaky(x_nhwc, w, b):
    """Conv2d(1,32,7,s=2) + LeakyReLU.  x: (B,H,W,1) f32 -> (B,OH,OW,32)."""
    B = x_nhwc.shape[0]
    p, oh, ow = _im2col(x_nhwc, 7, 2)                 # (B*29*29, 49)
    M, K = p.shape
    N = w.shape[0]                                    # 32
    Kp = _round_up(K, 8)                              # 49 -> 56
    Np = 128                                          # lane-dense output

    # Two M tiles so v7x's two TensorCores both get work ("parallel" axis);
    # on single-TC v5e/v6e this is just one extra, cheap sequential step.
    n_tiles = 2 if M >= 1024 else 1
    tm = _round_up(-(-M // n_tiles), 8)
    Mp = tm * n_tiles

    xp = jnp.pad(p, ((0, Mp - M), (0, Kp - K)))
    wm = jnp.pad(_conv_w_to_mat(w), ((0, Kp - K), (0, Np - N)))
    bp = jnp.pad(b.reshape(1, N), ((0, 0), (0, Np - N)))

    out = pl.pallas_call(
        _mm_bias_leaky_kernel,
        out_shape=jax.ShapeDtypeStruct((Mp, Np), jnp.float32),
        grid=(n_tiles,),
        in_specs=[
            pl.BlockSpec((tm, Kp), lambda i: (i, 0)),
            pl.BlockSpec((Kp, Np), lambda i: (0, 0)),
            pl.BlockSpec((1, Np), lambda i: (0, 0)),
        ],
        out_specs=pl.BlockSpec((tm, Np), lambda i: (i, 0)),
        compiler_params=pltpu.CompilerParams(dimension_semantics=("parallel",)),
    )(xp, wm, bp)
    return out[:M, :N].reshape(B, oh, ow, N)


def conv2_leaky_pool(y1, w, b):
    """Conv2d(32,64,5,s=2) + LeakyReLU + MaxPool2d(2), fused in one kernel.

    The wrapper builds im2col patches only for conv-output pixels that survive the
    floor-mode pool, grouped by pool-window quadrant (dy,dx); the kernel maxes the
    four LeakyReLU'd conv results, so the pool costs 3 VPU maxes and zero launches.
    """
    B = y1.shape[0]
    k, s = 5, 2
    H2 = (y1.shape[1] - k) // s + 1                   # conv2 spatial (13)
    PH = H2 // 2                                      # pooled spatial (6)

    quads = []
    for dy in range(2):
        for dx in range(2):
            sub = y1[:, s * dy:, s * dx:, :]
            p, _, _ = _im2col(sub, k, 2 * s, oh=PH, ow=PH)   # (B*PH*PH, 800)
            quads.append(p)
    xq = jnp.stack(quads, axis=0)                     # (4, B*PH*PH, 800)

    Mq, K = xq.shape[1], xq.shape[2]
    N = w.shape[0]                                    # 64
    Np = 128
    Mqp = _round_up(Mq, 8)
    xq = jnp.pad(xq, ((0, 0), (0, Mqp - Mq), (0, 0)))
    wm = jnp.pad(_conv_w_to_mat(w), ((0, 0), (0, Np - N)))
    bp = jnp.pad(b.reshape(1, N), ((0, 0), (0, Np - N)))

    out = pl.pallas_call(
        _conv_pool_kernel,
        out_shape=jax.ShapeDtypeStruct((Mqp, Np), jnp.float32),
        grid=(1,),
        in_specs=[
            pl.BlockSpec((4, Mqp, K), lambda i: (0, 0, 0)),
            pl.BlockSpec((K, Np), lambda i: (0, 0)),
            pl.BlockSpec((1, Np), lambda i: (0, 0)),
        ],
        out_specs=pl.BlockSpec((Mqp, Np), lambda i: (0, 0)),
        compiler_params=pltpu.CompilerParams(dimension_semantics=("arbitrary",)),
    )(xq, wm, bp)
    return out[:Mq, :N].reshape(B, PH, PH, N)


def tail_fused(y2, w3, b3, w1, b1, w2, b2):
    """conv3 + LeakyReLU + pool + flatten + linear1 + linear2 in ONE pallas_call.

    Linear(128,64) implies the pooled conv3 map is 1x1x128, i.e. only the top-left
    2x2 block of conv3 outputs matters; those 4 pixels form the single pool window.
    """
    B = y2.shape[0]
    cin = y2.shape[-1]                                # 64
    Kc = 3 * 3 * cin                                  # 576
    quads = []
    for oh in range(2):
        for ow in range(2):
            quads.append(y2[:, 2 * oh:2 * oh + 3, 2 * ow:2 * ow + 3, :]
                         .reshape(B, Kc))
    xq = jnp.stack(quads, axis=0)                     # (4, B, 576)
    Bp = _round_up(B, 8)
    xq = jnp.pad(xq, ((0, 0), (0, Bp - B), (0, 0)))

    w3m = _conv_w_to_mat(w3)                          # (576, 128)
    b3p = b3.reshape(1, -1)                           # (1, 128)
    w1m = w1.T                                        # (128, 64)
    b1p = b1.reshape(1, -1)                           # (1, 64)
    w2m = w2.T                                        # (64, out_size)
    b2p = b2.reshape(1, -1)                           # (1, out_size)
    n1 = w1m.shape[1]
    out_size = w2m.shape[1]

    out = pl.pallas_call(
        _tail_kernel,
        out_shape=jax.ShapeDtypeStruct((Bp, out_size), jnp.float32),
        grid=(1,),
        in_specs=[
            pl.BlockSpec((4, Bp, Kc), lambda i: (0, 0, 0)),
            pl.BlockSpec((Kc, 128), lambda i: (0, 0)),
            pl.BlockSpec((1, 128), lambda i: (0, 0)),
            pl.BlockSpec((128, n1), lambda i: (0, 0)),
            pl.BlockSpec((1, n1), lambda i: (0, 0)),
            pl.BlockSpec((n1, out_size), lambda i: (0, 0)),
            pl.BlockSpec((1, out_size), lambda i: (0, 0)),
        ],
        out_specs=pl.BlockSpec((Bp, out_size), lambda i: (0, 0)),
        compiler_params=pltpu.CompilerParams(dimension_semantics=("arbitrary",)),
    )(xq, w3m, b3p, w1m, b1p, w2m, b2p)
    return out[:B]


# ---------------------------------------------------------------------------
# VOXAEnet forward
# ---------------------------------------------------------------------------
def voxaenet_forward(params, x_nchw):
    x = jnp.transpose(x_nchw, (0, 2, 3, 1))                       # NHWC
    y1 = conv1_leaky(x, params['conv1_w'], params['conv1_b'])     # (B,29,29,32)
    y2 = conv2_leaky_pool(y1, params['conv2_w'], params['conv2_b'])  # (B,6,6,64)
    out = tail_fused(y2, params['conv3_w'], params['conv3_b'],
                     params['lin1_w'], params['lin1_b'],
                     params['lin2_w'], params['lin2_b'])          # (B,out_size)
    return out


# ---------------------------------------------------------------------------
# Independent pure-JAX reference (for correctness check)
# ---------------------------------------------------------------------------
def voxaenet_reference(params, x):
    hi = lax.Precision.HIGHEST

    def conv(v, w, b, s):
        y = lax.conv_general_dilated(v, w, (s, s), 'VALID',
                                     dimension_numbers=('NCHW', 'OIHW', 'NCHW'),
                                     precision=hi)
        return y + b.reshape(1, -1, 1, 1)

    def leaky(v):
        return jnp.where(v > 0, v, NEG_SLOPE * v)

    def pool(v):
        B, C, H, W = v.shape
        Hp, Wp = H // 2, W // 2
        v = v[:, :, :2 * Hp, :2 * Wp].reshape(B, C, Hp, 2, Wp, 2)
        return v.max(axis=(3, 5))

    y = leaky(conv(x, params['conv1_w'], params['conv1_b'], 2))
    y = pool(leaky(conv(y, params['conv2_w'], params['conv2_b'], 2)))
    y = pool(leaky(conv(y, params['conv3_w'], params['conv3_b'], 2)))
    feat = y.reshape(y.shape[0], -1)
    h = jnp.dot(feat, params['lin1_w'].T, precision=hi) + params['lin1_b']
    return jnp.dot(h, params['lin2_w'].T, precision=hi) + params['lin2_b']


if __name__ == "__main__":
    # TODO(synk): out_size comes from opt.con_size (external config); 32 is a stand-in.
    OUT_SIZE = 32
    # 64x64 input -> 1x1x128 after conv3+pool, which is what Linear(128, 64) implies.
    B, H, W = 2, 64, 64

    key = jax.random.PRNGKey(0)
    ks = jax.random.split(key, 11)

    def init_conv(kw_, kb_, cout, cin, k):
        fan = cin * k * k
        w = jax.random.normal(kw_, (cout, cin, k, k), jnp.float32) / jnp.sqrt(fan)
        b = jax.random.normal(kb_, (cout,), jnp.float32) * 0.05
        return w, b

    def init_lin(kw_, kb_, cout, cin):
        w = jax.random.normal(kw_, (cout, cin), jnp.float32) / jnp.sqrt(cin)
        b = jax.random.normal(kb_, (cout,), jnp.float32) * 0.05
        return w, b

    c1w, c1b = init_conv(ks[0], ks[1], 32, 1, 7)
    c2w, c2b = init_conv(ks[2], ks[3], 64, 32, 5)
    c3w, c3b = init_conv(ks[4], ks[5], 128, 64, 3)
    l1w, l1b = init_lin(ks[6], ks[7], 64, 128)
    l2w, l2b = init_lin(ks[8], ks[9], OUT_SIZE, 64)
    params = dict(conv1_w=c1w, conv1_b=c1b, conv2_w=c2w, conv2_b=c2b,
                  conv3_w=c3w, conv3_b=c3b, lin1_w=l1w, lin1_b=l1b,
                  lin2_w=l2w, lin2_b=l2b)

    x = jax.random.normal(ks[10], (B, 1, H, W), jnp.float32)

    fwd = jax.jit(voxaenet_forward)
    out = jax.block_until_ready(fwd(params, x))
    assert out.shape == (B, OUT_SIZE), out.shape

    ref = jax.block_until_ready(voxaenet_reference(params, x))
    max_err = float(jnp.max(jnp.abs(out - ref)))
    assert max_err < 1e-3, max_err   # all-f32 path; expect ~1e-5

    print("KERNEL_OK")
</pallas_src>

<mosaic_0001>
module attributes {stable_mosaic.version = 11 : i64} {
  func.func @_mm_bias_leaky_kernel(%arg0: i32, %arg1: memref<848x56xf32, #tpu.memory_space<vmem>>, %arg2: memref<56x128xf32, #tpu.memory_space<vmem>>, %arg3: memref<1x128xf32, #tpu.memory_space<vmem>>, %arg4: memref<848x128xf32, #tpu.memory_space<vmem>>) attributes {dimension_semantics = [#tpu.dimension_semantics<parallel>], iteration_bounds = array<i64: 2>, scalar_prefetch = 0 : i64, scratch_operands = 0 : i64, tpu.core_type = #tpu.core_type<tc>, window_params = [{transform_indices = @transform_0, window_bounds = array<i64: 848, 56>}, {pipeline_mode = #tpu.pipeline_mode<synchronous>, transform_indices = @transform_1, window_bounds = array<i64: 56, 128>}, {pipeline_mode = #tpu.pipeline_mode<synchronous>, transform_indices = @transform_2, window_bounds = array<i64: 1, 128>}, {transform_indices = @transform_3, window_bounds = array<i64: 848, 128>}]} {
    %c0 = arith.constant 0 : index
    %c0_0 = arith.constant 0 : index
    %0 = vector.load %arg1[%c0, %c0_0] : memref<848x56xf32, #tpu.memory_space<vmem>>, vector<848x56xf32>
    %c0_1 = arith.constant 0 : index
    %c0_2 = arith.constant 0 : index
    %1 = vector.load %arg2[%c0_1, %c0_2] : memref<56x128xf32, #tpu.memory_space<vmem>>, vector<56x128xf32>
    %cst = arith.constant dense<0.000000e+00> : vector<848x128xf32>
    %2 = tpu.matmul %0, %1, %cst {dimension_numbers = #tpu.dot_dimension_numbers<[1], [0], [0], [1], [0, 0, 1, 1], [], []>} : vector<848x56xf32>, vector<56x128xf32>, vector<848x128xf32> -> vector<848x128xf32>
    %c0_3 = arith.constant 0 : index
    %c0_4 = arith.constant 0 : index
    %3 = vector.load %arg3[%c0_3, %c0_4] : memref<1x128xf32, #tpu.memory_space<vmem>>, vector<1x128xf32>
    %4 = vector.broadcast %3 : vector<1x128xf32> to vector<848x128xf32>
    %5 = arith.addf %2, %4 : vector<848x128xf32>
    %cst_5 = arith.constant 0.000000e+00 : f32
    %6 = vector.broadcast %cst_5 : f32 to vector<848x128xf32>
    %7 = arith.cmpf ogt, %5, %6 : vector<848x128xf32>
    %cst_6 = arith.constant 1.000000e-01 : f32
    %8 = vector.broadcast %cst_6 : f32 to vector<848x128xf32>
    %9 = arith.mulf %8, %5 : vector<848x128xf32>
    %10 = arith.select %7, %5, %9 : vector<848x128xi1>, vector<848x128xf32>
    %c0_7 = arith.constant 0 : index
    %c0_8 = arith.constant 0 : index
    %11 = vector.load %arg4[%c0_7, %c0_8] : memref<848x128xf32, #tpu.memory_space<vmem>>, vector<848x128xf32>
    tpu.vector_store %arg4[%c0_7, %c0_8], %10 {strides = array<i32>} : memref<848x128xf32, #tpu.memory_space<vmem>>, vector<848x128xf32>,
    return
  }
  func.func @transform_0(%arg0: i32) -> (i32, i32) {
    %c0_i32 = arith.constant 0 : i32
    %c0_i32_0 = arith.constant 0 : i32
    return %arg0, %c0_i32 : i32, i32
  }
  func.func @transform_1(%arg0: i32) -> (i32, i32) {
    %c0_i32 = arith.constant 0 : i32
    %c0_i32_0 = arith.constant 0 : i32
    %c0_i32_1 = arith.constant 0 : i32
    return %c0_i32, %c0_i32_0 : i32, i32
  }
  func.func @transform_2(%arg0: i32) -> (i32, i32) {
    %c0_i32 = arith.constant 0 : i32
    %c0_i32_0 = arith.constant 0 : i32
    %c0_i32_1 = arith.constant 0 : i32
    return %c0_i32, %c0_i32_0 : i32, i32
  }
  func.func @transform_3(%arg0: i32) -> (i32, i32) {
    %c0_i32 = arith.constant 0 : i32
    %c0_i32_0 = arith.constant 0 : i32
    return %arg0, %c0_i32 : i32, i32
  }
}

module attributes {stable_mosaic.version = 11 : i64} {
  func.func @_tail_kernel(%arg0: i32, %arg1: memref<4x8x576xf32, #tpu.memory_space<vmem>>, %arg2: memref<576x128xf32, #tpu.memory_space<vmem>>, %arg3: memref<1x128xf32, #tpu.memory_space<vmem>>, %arg4: memref<128x64xf32, #tpu.memory_space<vmem>>, %arg5: memref<1x64xf32, #tpu.memory_space<vmem>>, %arg6: memref<64x32xf32, #tpu.memory_space<vmem>>, %arg7: memref<1x32xf32, #tpu.memory_space<vmem>>, %arg8: memref<8x32xf32, #tpu.memory_space<vmem>>) attributes {dimension_semantics = [#tpu.dimension_semantics<arbitrary>], iteration_bounds = array<i64: 1>, scalar_prefetch = 0 : i64, scratch_operands = 0 : i64, tpu.core_type = #tpu.core_type<tc>, window_params = [{pipeline_mode = #tpu.pipeline_mode<synchronous>, transform_indices = @transform_0, window_bounds = array<i64: 4, 8, 576>}, {pipeline_mode = #tpu.pipeline_mode<synchronous>, transform_indices = @transform_1, window_bounds = array<i64: 576, 128>}, {pipeline_mode = #tpu.pipeline_mode<synchronous>, transform_indices = @transform_2, window_bounds = array<i64: 1, 128>}, {pipeline_mode = #tpu.pipeline_mode<synchronous>, transform_indices = @transform_3, window_bounds = array<i64: 128, 64>}, {pipeline_mode = #tpu.pipeline_mode<synchronous>, transform_indices = @transform_4, window_bounds = array<i64: 1, 64>}, {pipeline_mode = #tpu.pipeline_mode<synchronous>, transform_indices = @transform_5, window_bounds = array<i64: 64, 32>}, {pipeline_mode = #tpu.pipeline_mode<synchronous>, transform_indices = @transform_6, window_bounds = array<i64: 1, 32>}, {pipeline_mode = #tpu.pipeline_mode<synchronous>, transform_indices = @transform_7, window_bounds = array<i64: 8, 32>}]} {
    %c0 = arith.constant 0 : index
    %c0_0 = arith.constant 0 : index
    %0 = vector.load %arg2[%c0, %c0_0] : memref<576x128xf32, #tpu.memory_space<vmem>>, vector<576x128xf32>
    %c0_1 = arith.constant 0 : index
    %c0_2 = arith.constant 0 : index
    %1 = vector.load %arg3[%c0_1, %c0_2] : memref<1x128xf32, #tpu.memory_space<vmem>>, vector<1x128xf32>
    %c0_3 = arith.constant 0 : index
    %c0_4 = arith.constant 0 : index
    %c0_5 = arith.constant 0 : index
    %2 = vector.load %arg1[%c0_3, %c0_4, %c0_5] : memref<4x8x576xf32, #tpu.memory_space<vmem>>, vector<1x8x576xf32>
    %3 = vector.shape_cast %2 : vector<1x8x576xf32> to vector<8x576xf32>
    %cst = arith.constant dense<0.000000e+00> : vector<8x128xf32>
    %4 = tpu.matmul %3, %0, %cst {dimension_numbers = #tpu.dot_dimension_numbers<[1], [0], [0], [1], [0, 0, 1, 1], [], []>} : vector<8x576xf32>, vector<576x128xf32>, vector<8x128xf32> -> vector<8x128xf32>
    %5 = vector.broadcast %1 : vector<1x128xf32> to vector<8x128xf32>
    %6 = arith.addf %4, %5 : vector<8x128xf32>
    %cst_6 = arith.constant 0.000000e+00 : f32
    %7 = vector.broadcast %cst_6 : f32 to vector<8x128xf32>
    %8 = arith.cmpf ogt, %6, %7 : vector<8x128xf32>
    %cst_7 = arith.constant 1.000000e-01 : f32
    %9 = vector.broadcast %cst_7 : f32 to vector<8x128xf32>
    %10 = arith.mulf %9, %6 : vector<8x128xf32>
    %11 = arith.select %8, %6, %10 : vector<8x128xi1>, vector<8x128xf32>
    %c1 = arith.constant 1 : index
    %c0_8 = arith.constant 0 : index
    %c0_9 = arith.constant 0 : index
    %12 = vector.load %arg1[%c1, %c0_8, %c0_9] : memref<4x8x576xf32, #tpu.memory_space<vmem>>, vector<1x8x576xf32>
    %13 = vector.shape_cast %12 : vector<1x8x576xf32> to vector<8x576xf32>
    %cst_10 = arith.constant dense<0.000000e+00> : vector<8x128xf32>
    %14 = tpu.matmul %13, %0, %cst_10 {dimension_numbers = #tpu.dot_dimension_numbers<[1], [0], [0], [1], [0, 0, 1, 1], [], []>} : vector<8x576xf32>, vector<576x128xf32>, vector<8x128xf32> -> vector<8x128xf32>
    %15 = vector.broadcast %1 : vector<1x128xf32> to vector<8x128xf32>
    %16 = arith.addf %14, %15 : vector<8x128xf32>
    %cst_11 = arith.constant 0.000000e+00 : f32
    %17 = vector.broadcast %cst_11 : f32 to vector<8x128xf32>
    %18 = arith.cmpf ogt, %16, %17 : vector<8x128xf32>
    %cst_12 = arith.constant 1.000000e-01 : f32
    %19 = vector.broadcast %cst_12 : f32 to vector<8x128xf32>
    %20 = arith.mulf %19, %16 : vector<8x128xf32>
    %21 = arith.select %18, %16, %20 : vector<8x128xi1>, vector<8x128xf32>
    %22 = arith.maximumf %11, %21 : vector<8x128xf32>
    %c2 = arith.constant 2 : index
    %c0_13 = arith.constant 0 : index
    %c0_14 = arith.constant 0 : index
    %23 = vector.load %arg1[%c2, %c0_13, %c0_14] : memref<4x8x576xf32, #tpu.memory_space<vmem>>, vector<1x8x576xf32>
    %24 = vector.shape_cast %23 : vector<1x8x576xf32> to vector<8x576xf32>
    %cst_15 = arith.constant dense<0.000000e+00> : vector<8x128xf32>
    %25 = tpu.matmul %24, %0, %cst_15 {dimension_numbers = #tpu.dot_dimension_numbers<[1], [0], [0], [1], [0, 0, 1, 1], [], []>} : vector<8x576xf32>, vector<576x128xf32>, vector<8x128xf32> -> vector<8x128xf32>
    %26 = vector.broadcast %1 : vector<1x128xf32> to vector<8x128xf32>
    %27 = arith.addf %25, %26 : vector<8x128xf32>
    %cst_16 = arith.constant 0.000000e+00 : f32
    %28 = vector.broadcast %cst_16 : f32 to vector<8x128xf32>
    %29 = arith.cmpf ogt, %27, %28 : vector<8x128xf32>
    %cst_17 = arith.constant 1.000000e-01 : f32
    %30 = vector.broadcast %cst_17 : f32 to vector<8x128xf32>
    %31 = arith.mulf %30, %27 : vector<8x128xf32>
    %32 = arith.select %29, %27, %31 : vector<8x128xi1>, vector<8x128xf32>
    %33 = arith.maximumf %22, %32 : vector<8x128xf32>
    %c3 = arith.constant 3 : index
    %c0_18 = arith.constant 0 : index
    %c0_19 = arith.constant 0 : index
    %34 = vector.load %arg1[%c3, %c0_18, %c0_19] : memref<4x8x576xf32, #tpu.memory_space<vmem>>, vector<1x8x576xf32>
    %35 = vector.shape_cast %34 : vector<1x8x576xf32> to vector<8x576xf32>
    %cst_20 = arith.constant dense<0.000000e+00> : vector<8x128xf32>
    %36 = tpu.matmul %35, %0, %cst_20 {dimension_numbers = #tpu.dot_dimension_numbers<[1], [0], [0], [1], [0, 0, 1, 1], [], []>} : vector<8x576xf32>, vector<576x128xf32>, vector<8x128xf32> -> vector<8x128xf32>
    %37 = vector.broadcast %1 : vector<1x128xf32> to vector<8x128xf32>
    %38 = arith.addf %36, %37 : vector<8x128xf32>
    %cst_21 = arith.constant 0.000000e+00 : f32
    %39 = vector.broadcast %cst_21 : f32 to vector<8x128xf32>
    %40 = arith.cmpf ogt, %38, %39 : vector<8x128xf32>
    %cst_22 = arith.constant 1.000000e-01 : f32
    %41 = vector.broadcast %cst_22 : f32 to vector<8x128xf32>
    %42 = arith.mulf %41, %38 : vector<8x128xf32>
    %43 = arith.select %40, %38, %42 : vector<8x128xi1>, vector<8x128xf32>
    %44 = arith.maximumf %33, %43 : vector<8x128xf32>
    %c0_23 = arith.constant 0 : index
    %c0_24 = arith.constant 0 : index
    %45 = vector.load %arg4[%c0_23, %c0_24] : memref<128x64xf32, #tpu.memory_space<vmem>>, vector<128x64xf32>
    %cst_25 = arith.constant dense<0.000000e+00> : vector<8x64xf32>
    %46 = tpu.matmul %44, %45, %cst_25 {dimension_numbers = #tpu.dot_dimension_numbers<[1], [0], [0], [1], [0, 0, 1, 1], [], []>} : vector<8x128xf32>, vector<128x64xf32>, vector<8x64xf32> -> vector<8x64xf32>
    %c0_26 = arith.constant 0 : index
    %c0_27 = arith.constant 0 : index
    %47 = vector.load %arg5[%c0_26, %c0_27] : memref<1x64xf32, #tpu.memory_space<vmem>>, vector<1x64xf32>
    %48 = vector.broadcast %47 : vector<1x64xf32> to vector<8x64xf32>
    %49 = arith.addf %46, %48 : vector<8x64xf32>
    %c0_28 = arith.constant 0 : index
    %c0_29 = arith.constant 0 : index
    %50 = vector.load %arg6[%c0_28, %c0_29] : memref<64x32xf32, #tpu.memory_space<vmem>>, vector<64x32xf32>
    %cst_30 = arith.constant dense<0.000000e+00> : vector<8x32xf32>
    %51 = tpu.matmul %49, %50, %cst_30 {dimension_numbers = #tpu.dot_dimension_numbers<[1], [0], [0], [1], [0, 0, 1, 1], [], []>} : vector<8x64xf32>, vector<64x32xf32>, vector<8x32xf32> -> vector<8x32xf32>
    %c0_31 = arith.constant 0 : index
    %c0_32 = arith.constant 0 : index
    %52 = vector.load %arg7[%c0_31, %c0_32] : memref<1x32xf32, #tpu.memory_space<vmem>>, vector<1x32xf32>
    %53 = vector.broadcast %52 : vector<1x32xf32> to vector<8x32xf32>
    %54 = arith.addf %51, %53 : vector<8x32xf32>
    %c0_33 = arith.constant 0 : index
    %c0_34 = arith.constant 0 : index
    %55 = vector.load %arg8[%c0_33, %c0_34] : memref<8x32xf32, #tpu.memory_space<vmem>>, vector<8x32xf32>
    tpu.vector_store %arg8[%c0_33, %c0_34], %54 {strides = array<i32>} : memref<8x32xf32, #tpu.memory_space<vmem>>, vector<8x32xf32>,
    return
  }
  func.func @transform_0(%arg0: i32) -> (i32, i32, i32) {
    %c0_i32 = arith.constant 0 : i32
    %c0_i32_0 = arith.constant 0 : i32
    %c0_i32_1 = arith.constant 0 : i32
    %c0_i32_2 = arith.constant 0 : i32
    return %c0_i32, %c0_i32_0, %c0_i32_1 : i32, i32, i32
  }
  func.func @transform_1(%arg0: i32) -> (i32, i32) {
    %c0_i32 = arith.constant 0 : i32
    %c0_i32_0 = arith.constant 0 : i32
    %c0_i32_1 = arith.constant 0 : i32
    return %c0_i32, %c0_i32_0 : i32, i32
  }
  func.func @transform_2(%arg0: i32) -> (i32, i32) {
    %c0_i32 = arith.constant 0 : i32
    %c0_i32_0 = arith.constant 0 : i32
    %c0_i32_1 = arith.constant 0 : i32
    return %c0_i32, %c0_i32_0 : i32, i32
  }
  func.func @transform_3(%arg0: i32) -> (i32, i32) {
    %c0_i32 = arith.constant 0 : i32
    %c0_i32_0 = arith.constant 0 : i32
    %c0_i32_1 = arith.constant 0 : i32
    return %c0_i32, %c0_i32_0 : i32, i32
  }
  func.func @transform_4(%arg0: i32) -> (i32, i32) {
    %c0_i32 = arith.constant 0 : i32
    %c0_i32_0 = arith.constant 0 : i32
    %c0_i32_1 = arith.constant 0 : i32
    return %c0_i32, %c0_i32_0 : i32, i32
  }
  func.func @transform_5(%arg0: i32) -> (i32, i32) {
    %c0_i32 = arith.constant 0 : i32
    %c0_i32_0 = arith.constant 0 : i32
    %c0_i32_1 = arith.constant 0 : i32
    return %c0_i32, %c0_i32_0 : i32, i32
  }
  func.func @transform_6(%arg0: i32) -> (i32, i32) {
    %c0_i32 = arith.constant 0 : i32
    %c0_i32_0 = arith.constant 0 : i32
    %c0_i32_1 = arith.constant 0 : i32
    return %c0_i32, %c0_i32_0 : i32, i32
  }
  func.func @transform_7(%arg0: i32) -> (i32, i32) {
    %c0_i32 = arith.constant 0 : i32
    %c0_i32_0 = arith.constant 0 : i32
    %c0_i32_1 = arith.constant 0 : i32
    return %c0_i32, %c0_i32_0 : i32, i32
  }
}

module attributes {stable_mosaic.version = 11 : i64} {
  func.func @_conv_pool_kernel(%arg0: i32, %arg1: memref<4x72x800xf32, #tpu.memory_space<vmem>>, %arg2: memref<800x128xf32, #tpu.memory_space<vmem>>, %arg3: memref<1x128xf32, #tpu.memory_space<vmem>>, %arg4: memref<72x128xf32, #tpu.memory_space<vmem>>) attributes {dimension_semantics = [#tpu.dimension_semantics<arbitrary>], iteration_bounds = array<i64: 1>, scalar_prefetch = 0 : i64, scratch_operands = 0 : i64, tpu.core_type = #tpu.core_type<tc>, window_params = [{pipeline_mode = #tpu.pipeline_mode<synchronous>, transform_indices = @transform_0, window_bounds = array<i64: 4, 72, 800>}, {pipeline_mode = #tpu.pipeline_mode<synchronous>, transform_indices = @transform_1, window_bounds = array<i64: 800, 128>}, {pipeline_mode = #tpu.pipeline_mode<synchronous>, transform_indices = @transform_2, window_bounds = array<i64: 1, 128>}, {pipeline_mode = #tpu.pipeline_mode<synchronous>, transform_indices = @transform_3, window_bounds = array<i64: 72, 128>}]} {
    %c0 = arith.constant 0 : index
    %c0_0 = arith.constant 0 : index
    %0 = vector.load %arg2[%c0, %c0_0] : memref<800x128xf32, #tpu.memory_space<vmem>>, vector<800x128xf32>
    %c0_1 = arith.constant 0 : index
    %c0_2 = arith.constant 0 : index
    %1 = vector.load %arg3[%c0_1, %c0_2] : memref<1x128xf32, #tpu.memory_space<vmem>>, vector<1x128xf32>
    %c0_3 = arith.constant 0 : index
    %c0_4 = arith.constant 0 : index
    %c0_5 = arith.constant 0 : index
    %2 = vector.load %arg1[%c0_3, %c0_4, %c0_5] : memref<4x72x800xf32, #tpu.memory_space<vmem>>, vector<1x72x800xf32>
    %3 = vector.shape_cast %2 : vector<1x72x800xf32> to vector<72x800xf32>
    %cst = arith.constant dense<0.000000e+00> : vector<72x128xf32>
    %4 = tpu.matmul %3, %0, %cst {dimension_numbers = #tpu.dot_dimension_numbers<[1], [0], [0], [1], [0, 0, 1, 1], [], []>} : vector<72x800xf32>, vector<800x128xf32>, vector<72x128xf32> -> vector<72x128xf32>
    %5 = vector.broadcast %1 : vector<1x128xf32> to vector<72x128xf32>
    %6 = arith.addf %4, %5 : vector<72x128xf32>
    %cst_6 = arith.constant 0.000000e+00 : f32
    %7 = vector.broadcast %cst_6 : f32 to vector<72x128xf32>
    %8 = arith.cmpf ogt, %6, %7 : vector<72x128xf32>
    %cst_7 = arith.constant 1.000000e-01 : f32
    %9 = vector.broadcast %cst_7 : f32 to vector<72x128xf32>
    %10 = arith.mulf %9, %6 : vector<72x128xf32>
    %11 = arith.select %8, %6, %10 : vector<72x128xi1>, vector<72x128xf32>
    %c1 = arith.constant 1 : index
    %c0_8 = arith.constant 0 : index
    %c0_9 = arith.constant 0 : index
    %12 = vector.load %arg1[%c1, %c0_8, %c0_9] : memref<4x72x800xf32, #tpu.memory_space<vmem>>, vector<1x72x800xf32>
    %13 = vector.shape_cast %12 : vector<1x72x800xf32> to vector<72x800xf32>
    %cst_10 = arith.constant dense<0.000000e+00> : vector<72x128xf32>
    %14 = tpu.matmul %13, %0, %cst_10 {dimension_numbers = #tpu.dot_dimension_numbers<[1], [0], [0], [1], [0, 0, 1, 1], [], []>} : vector<72x800xf32>, vector<800x128xf32>, vector<72x128xf32> -> vector<72x128xf32>
    %15 = vector.broadcast %1 : vector<1x128xf32> to vector<72x128xf32>
    %16 = arith.addf %14, %15 : vector<72x128xf32>
    %cst_11 = arith.constant 0.000000e+00 : f32
    %17 = vector.broadcast %cst_11 : f32 to vector<72x128xf32>
    %18 = arith.cmpf ogt, %16, %17 : vector<72x128xf32>
    %cst_12 = arith.constant 1.000000e-01 : f32
    %19 = vector.broadcast %cst_12 : f32 to vector<72x128xf32>
    %20 = arith.mulf %19, %16 : vector<72x128xf32>
    %21 = arith.select %18, %16, %20 : vector<72x128xi1>, vector<72x128xf32>
    %22 = arith.maximumf %11, %21 : vector<72x128xf32>
    %c2 = arith.constant 2 : index
    %c0_13 = arith.constant 0 : index
    %c0_14 = arith.constant 0 : index
    %23 = vector.load %arg1[%c2, %c0_13, %c0_14] : memref<4x72x800xf32, #tpu.memory_space<vmem>>, vector<1x72x800xf32>
    %24 = vector.shape_cast %23 : vector<1x72x800xf32> to vector<72x800xf32>
    %cst_15 = arith.constant dense<0.000000e+00> : vector<72x128xf32>
    %25 = tpu.matmul %24, %0, %cst_15 {dimension_numbers = #tpu.dot_dimension_numbers<[1], [0], [0], [1], [0, 0, 1, 1], [], []>} : vector<72x800xf32>, vector<800x128xf32>, vector<72x128xf32> -> vector<72x128xf32>
    %26 = vector.broadcast %1 : vector<1x128xf32> to vector<72x128xf32>
    %27 = arith.addf %25, %26 : vector<72x128xf32>
    %cst_16 = arith.constant 0.000000e+00 : f32
    %28 = vector.broadcast %cst_16 : f32 to vector<72x128xf32>
    %29 = arith.cmpf ogt, %27, %28 : vector<72x128xf32>
    %cst_17 = arith.constant 1.000000e-01 : f32
    %30 = vector.broadcast %cst_17 : f32 to vector<72x128xf32>
    %31 = arith.mulf %30, %27 : vector<72x128xf32>
    %32 = arith.select %29, %27, %31 : vector<72x128xi1>, vector<72x128xf32>
    %33 = arith.maximumf %22, %32 : vector<72x128xf32>
    %c3 = arith.constant 3 : index
    %c0_18 = arith.constant 0 : index
    %c0_19 = arith.constant 0 : index
    %34 = vector.load %arg1[%c3, %c0_18, %c0_19] : memref<4x72x800xf32, #tpu.memory_space<vmem>>, vector<1x72x800xf32>
    %35 = vector.shape_cast %34 : vector<1x72x800xf32> to vector<72x800xf32>
    %cst_20 = arith.constant dense<0.000000e+00> : vector<72x128xf32>
    %36 = tpu.matmul %35, %0, %cst_20 {dimension_numbers = #tpu.dot_dimension_numbers<[1], [0], [0], [1], [0, 0, 1, 1], [], []>} : vector<72x800xf32>, vector<800x128xf32>, vector<72x128xf32> -> vector<72x128xf32>
    %37 = vector.broadcast %1 : vector<1x128xf32> to vector<72x128xf32>
    %38 = arith.addf %36, %37 : vector<72x128xf32>
    %cst_21 = arith.constant 0.000000e+00 : f32
    %39 = vector.broadcast %cst_21 : f32 to vector<72x128xf32>
    %40 = arith.cmpf ogt, %38, %39 : vector<72x128xf32>
    %cst_22 = arith.constant 1.000000e-01 : f32
    %41 = vector.broadcast %cst_22 : f32 to vector<72x128xf32>
    %42 = arith.mulf %41, %38 : vector<72x128xf32>
    %43 = arith.select %40, %38, %42 : vector<72x128xi1>, vector<72x128xf32>
    %44 = arith.maximumf %33, %43 : vector<72x128xf32>
    %c0_23 = arith.constant 0 : index
    %c0_24 = arith.constant 0 : index
    %45 = vector.load %arg4[%c0_23, %c0_24] : memref<72x128xf32, #tpu.memory_space<vmem>>, vector<72x128xf32>
    tpu.vector_store %arg4[%c0_23, %c0_24], %44 {strides = array<i32>} : memref<72x128xf32, #tpu.memory_space<vmem>>, vector<72x128xf32>,
    return
  }
  func.func @transform_0(%arg0: i32) -> (i32, i32, i32) {
    %c0_i32 = arith.constant 0 : i32
    %c0_i32_0 = arith.constant 0 : i32
    %c0_i32_1 = arith.constant 0 : i32
    %c0_i32_2 = arith.constant 0 : i32
    return %c0_i32, %c0_i32_0, %c0_i32_1 : i32, i32, i32
  }
  func.func @transform_1(%arg0: i32) -> (i32, i32) {
    %c0_i32 = arith.constant 0 : i32
    %c0_i32_0 = arith.constant 0 : i32
    %c0_i32_1 = arith.constant 0 : i32
    return %c0_i32, %c0_i32_0 : i32, i32
  }
  func.func @transform_2(%arg0: i32) -> (i32, i32) {
    %c0_i32 = arith.constant 0 : i32
    %c0_i32_0 = arith.constant 0 : i32
    %c0_i32_1 = arith.constant 0 : i32
    return %c0_i32, %c0_i32_0 : i32, i32
  }
  func.func @transform_3(%arg0: i32) -> (i32, i32) {
    %c0_i32 = arith.constant 0 : i32
    %c0_i32_0 = arith.constant 0 : i32
    %c0_i32_1 = arith.constant 0 : i32
    return %c0_i32, %c0_i32_0 : i32, i32
  }
}

</mosaic_0001>

<llo_original>
// kernel: voxaenet_forward.3
$region0: #{voxaenet_forward.3}
  #allocation0 [shape = 'u32[]', space=smem, size = 0x4, offset = 0x4, fixed_abs, tag = 'smem constant byte address 0x4 - core index']
  #allocation1 [shape = 'u32[144,128]{1,0:T(1,128)}', space=vmem, size = 0x12000, scoped, tag = 'internal scratch']
  %s0 = inlined_call_operand.vmem [shape: f32[1696,56], index: 0, kind: input, shape index: {}]
  %s1 = inlined_call_operand.vmem [shape: f32[56,128], index: 1, kind: input, shape index: {}]
  %s2 = inlined_call_operand.vmem [shape: f32[1,128], index: 2, kind: input, shape index: {}]
  %s3 = inlined_call_operand.vmem [shape: f32[1696,128], index: 3, kind: output, shape index: {}]
  %s4 = sld [smem:[#allocation0]]
  $region45: #{voxaenet_forward.3} parent=0
    _
  %s6 = ssub.s32 1, %s4
  %s7 = scalar_select 0, %s6, %s4
  loop: start=0, step=1, limit=4
  $region2: #{voxaenet_forward.3} parent=0 // loop_pre_header
    _
  $region3: #{voxaenet_forward.3} parent=0 // loop_header
    %s9 = sphi 0, %s13
    %p10 = scmp.ge.s32.totalorder %s9, 4
    %s19 = sphi 0, %s21
    %s22 = sphi 0, %s19
    %s23 = sphi 0, %s22
    %s39 = sphi 0, %s23
    %s43 = sphi 0, %s43
    %s45 = sphi 0, %s43
    %s46 = sphi 0, %s45
    %s60 = sphi 0, %s46
    %s64 = sphi 0, %s64
    %s66 = sphi 0, %s64
    %s67 = sphi 0, %s66
    %s81 = sphi 0, %s67
    %s87 = sphi 0, %s89
    %s90 = sphi 0, %s87
    %s91 = sphi 0, %s90
    %s107 = sphi 0, %s91
  $region4: #{voxaenet_forward.3} parent=0 // loop_header_branch
    %12 = sbr.rel (%p10) target = $region8
  $region5: #{voxaenet_forward.3} parent=0 // loop_body
    %s14 = ssub.s32 %s9, 1
    %s15 = ssub.s32 %s9, 2
    %s16 = sadd.s32 %s9, 1
    %s17 = ssub.s32 %s9, %s16
    %p18 = scmp.eq.s32.totalorder %s17, 0
    %s20 = sadd.s32 %s19, 1
    %s21 = scalar_select %p18, %s19, %s20
    %p24 = pneg %p18
    %p25 = scmp.eq.s32.totalorder %s9, 1
    %p26 = por %p24, %p25
    %p27 = scmp.ne.s32.totalorder %s19, %s22
    %p28 = scmp.eq.s32.totalorder %s9, 0
    %p29 = por %p27, %p28
    %p30 = scmp.ne.s32.totalorder %s19, %s22
    %p31 = scmp.eq.s32.totalorder %s14, 1
    %p32 = por %p30, %p31
    %p33 = scmp.ne.s32.totalorder %s22, %s23
    %p34 = scmp.eq.s32.totalorder %s14, 0
    %p35 = por %p33, %p34
    %p36 = scmp.ne.s32.totalorder %s22, %s23
    %p37 = scmp.eq.s32.totalorder %s15, 1
    %p38 = por %p36, %p37
    %p40 = scmp.ne.s32.totalorder %s23, %s39
    %p41 = scmp.eq.s32.totalorder %s15, 0
    %p42 = por %p40, %p41
    %s44 = sadd.s32 %s43, 1
    %p47 = scmp.eq.s32.totalorder %s9, 1
    %p48 = scmp.ne.s32.totalorder %s43, %s45
    %p49 = scmp.eq.s32.totalorder %s9, 0
    %p50 = por %p48, %p49
    %p51 = scmp.ne.s32.totalorder %s43, %s45
    %p52 = scmp.eq.s32.totalorder %s14, 1
    %p53 = por %p51, %p52
    %p54 = scmp.ne.s32.totalorder %s45, %s46
    %p55 = scmp.eq.s32.totalorder %s14, 0
    %p56 = por %p54, %p55
    %p57 = scmp.ne.s32.totalorder %s45, %s46
    %p58 = scmp.eq.s32.totalorder %s15, 1
    %p59 = por %p57, %p58
    %p61 = scmp.ne.s32.totalorder %s46, %s60
    %p62 = scmp.eq.s32.totalorder %s15, 0
    %p63 = por %p61, %p62
    %s65 = sadd.s32 %s64, 1
    %p68 = scmp.eq.s32.totalorder %s9, 1
    %p69 = scmp.ne.s32.totalorder %s64, %s66
    %p70 = scmp.eq.s32.totalorder %s9, 0
    %p71 = por %p69, %p70
    %p72 = scmp.ne.s32.totalorder %s64, %s66
    %p73 = scmp.eq.s32.totalorder %s14, 1
    %p74 = por %p72, %p73
    %p75 = scmp.ne.s32.totalorder %s66, %s67
    %p76 = scmp.eq.s32.totalorder %s14, 0
    %p77 = por %p75, %p76
    %p78 = scmp.ne.s32.totalorder %s66, %s67
    %p79 = scmp.eq.s32.totalorder %s15, 1
    %p80 = por %p78, %p79
    %p82 = scmp.ne.s32.totalorder %s67, %s81
    %p83 = scmp.eq.s32.totalorder %s15, 0
    %p84 = por %p82, %p83
    %s85 = ssub.s32 %s9, %s16
    %p86 = scmp.eq.s32.totalorder %s85, 0
    %s88 = sadd.s32 %s87, 1
    %s89 = scalar_select %p86, %s87, %s88
    %p92 = pneg %p86
    %p93 = scmp.eq.s32.totalorder %s9, 1
    %p94 = por %p92, %p93
    %p95 = scmp.ne.s32.totalorder %s87, %s90
    %p96 = scmp.eq.s32.totalorder %s9, 0
    %p97 = por %p95, %p96
    %p98 = scmp.ne.s32.totalorder %s87, %s90
    %p99 = scmp.eq.s32.totalorder %s14, 1
    %p100 = por %p98, %p99
    %p101 = scmp.ne.s32.totalorder %s90, %s91
    %p102 = scmp.eq.s32.totalorder %s14, 0
    %p103 = por %p101, %p102
    %p104 = scmp.ne.s32.totalorder %s90, %s91
    %p105 = scmp.eq.s32.totalorder %s15, 1
    %p106 = por %p104, %p105
    %p108 = scmp.ne.s32.totalorder %s91, %s107
    %p109 = scmp.eq.s32.totalorder %s15, 0
    %p110 = por %p108, %p109
    %p111 = scmp.le.s32.totalorder 1, %s9
    %p112 = scmp.lt.s32.totalorder %s9, 3
    %p113 = pnand %p111, %p112
    %p114 = pneg %p113
    // Predicated region
    $region9: #{voxaenet_forward.3} parent=5 // pred_check
      _
    $region10: #{voxaenet_forward.3} parent=5 // pred_check_branch
      %116 = sbr.rel (%p113) target = $region12
    $region11: #{voxaenet_forward.3} parent=5 // pred_region
      %s117 = ssub.s32 %s9, 1
      // Predicated region
      $region13: #{voxaenet_forward.3} parent=11 // pred_check
        %p118 = pneg %p56
      $region14: #{voxaenet_forward.3} parent=11 // pred_check_branch
        %120 = sbr.rel (%p118) target = $region16
      $region15: #{voxaenet_forward.3} parent=11 // pred_region
        _
      $region16: #{voxaenet_forward.3} parent=11 // pred_fallthru
        _
      // Predicated region
      $region17: #{voxaenet_forward.3} parent=11 // pred_check
        %p121 = pneg %p77
      $region18: #{voxaenet_forward.3} parent=11 // pred_check_branch
        %123 = sbr.rel (%p121) target = $region20
      $region19: #{voxaenet_forward.3} parent=11 // pred_region
        _
      $region20: #{voxaenet_forward.3} parent=11 // pred_fallthru
        _
    $region12: #{voxaenet_forward.3} parent=5 // pred_fallthru
      _
    %p124 = scmp.lt.s32.totalorder %s9, 2
    // Predicated region
    $region21: #{voxaenet_forward.3} parent=5 // pred_check
      %p125 = pneg %p124
    $region22: #{voxaenet_forward.3} parent=5 // pred_check_branch
      %127 = sbr.rel (%p125) target = $region24
    $region23: #{voxaenet_forward.3} parent=5 // pred_region
      // Predicated region
      $region25: #{voxaenet_forward.3} parent=23 // pred_check
        %p128 = pneg %p29
      $region26: #{voxaenet_forward.3} parent=23 // pred_check_branch
        %130 = sbr.rel (%p128) target = $region28
      $region27: #{voxaenet_forward.3} parent=23 // pred_region
        %s131 = smul.u32 106, %s9
        %p132 = scmp.lt.s32.totalorder %s131, 211
        %s133 = scalar_select %p132, %s131, 211
        %s134 = smul.addr %s133, 8
        %s135 = scalar_lea.vmem %s0, %s134
        %s136 = smul.u32 106, %s9
      $region28: #{voxaenet_forward.3} parent=23 // pred_fallthru
        _
    $region24: #{voxaenet_forward.3} parent=5 // pred_fallthru
      _
    %p137 = scmp.le.s32.totalorder 1, %s9
    %p138 = scmp.lt.s32.totalorder %s9, 3
    %p139 = pnand %p137, %p138
    %p140 = pneg %p139
    // Predicated region
    $region29: #{voxaenet_forward.3} parent=5 // pred_check
      _
    $region30: #{voxaenet_forward.3} parent=5 // pred_check_branch
      %142 = sbr.rel (%p139) target = $region32
    $region31: #{voxaenet_forward.3} parent=5 // pred_region
      %s143 = ssub.s32 %s9, 1
      %s144 = smul.u32 106, %s14
      %p145 = scmp.lt.s32.totalorder %s144, 211
      %s146 = scalar_select %p145, %s144, 211
      %s147 = smul.addr %s146, 8
      %s148 = scalar_lea.vmem %s0, %s147
      %p149 = pneg %p35
      %p150 = pneg %p32
      %p151 = pneg %p56
      %p152 = pneg %p53
      %p153 = pneg %p77
      %p154 = pneg %p74
      %p155 = pneg %p103
      %p156 = pneg %p100
      %s157 = smul.u32 106, %s14
      %p158 = scmp.lt.s32.totalorder %s157, 211
      %s159 = scalar_select %p158, %s157, 211
      %s160 = smul.addr %s159, 8
      %s161 = scalar_lea.vmem %s3, %s160
      %s162 = smul.u32 106, %s14
      %p163 = scmp.lt.s32.totalorder %s162, 211
      %s164 = scalar_select %p163, %s162, 211
      %s165 = smul.addr %s164, 8
      %s166 = scalar_lea.vmem %s0, %s165
      %s167 = smul.u32 106, %s14
      %s168 = smul.u32 106, %s14
      %p169 = scmp.lt.s32.totalorder %s168, 211
      %s170 = scalar_select %p169, %s168, 211
      %s171 = smul.addr %s170, 8
      %s172 = scalar_lea.vmem %s3, %s171
      %s173 = smul.u32 106, %s14
      %v174 = vld [vmem:[%s166] sm:$0xff]
      %v175 = vld [vmem:[%s166 + $0x8] sm:$0xff]
      %v176 = vld [vmem:[%s166 + $0x10] sm:$0xff]
      %v177 = vld [vmem:[%s166 + $0x18] sm:$0xff]
      %v178 = vld [vmem:[%s166 + $0x20] sm:$0xff]
      %v179 = vld [vmem:[%s166 + $0x28] sm:$0xff]
      %v180 = vld [vmem:[%s166 + $0x30] sm:$0xff]
      %v181 = vld [vmem:[%s166 + $0x38] sm:$0xff]
      %v182 = vld [vmem:[%s166 + $0x40] sm:$0xff]
      %v183 = vld [vmem:[%s166 + $0x48] sm:$0xff]
      %v184 = vld [vmem:[%s166 + $0x50] sm:$0xff]
      %v185 = vld [vmem:[%s166 + $0x58] sm:$0xff]
      %v186 = vld [vmem:[%s166 + $0x60] sm:$0xff]
      %v187 = vld [vmem:[%s166 + $0x68] sm:$0xff]
      %v188 = vld [vmem:[%s166 + $0x70] sm:$0xff]
      %v189 = vld [vmem:[%s166 + $0x78] sm:$0xff]
      %v190 = vld [vmem:[%s166 + $0x80] sm:$0xff]
      %v191 = vld [vmem:[%s166 + $0x88] sm:$0xff]
      %v192 = vld [vmem:[%s166 + $0x90] sm:$0xff]
      %v193 = vld [vmem:[%s166 + $0x98] sm:$0xff]
      %v194 = vld [vmem:[%s166 + $0xa0] sm:$0xff]
      %v195 = vld [vmem:[%s166 + $0xa8] sm:$0xff]
      %v196 = vld [vmem:[%s166 + $0xb0] sm:$0xff]
      %v197 = vld [vmem:[%s166 + $0xb8] sm:$0xff]
      %v198 = vld [vmem:[%s166 + $0xc0] sm:$0xff]
      %v199 = vld [vmem:[%s166 + $0xc8] sm:$0xff]
      %v200 = vld [vmem:[%s166 + $0xd0] sm:$0xff]
      %v201 = vld [vmem:[%s166 + $0xd8] sm:$0xff]
      %v202 = vld [vmem:[%s166 + $0xe0] sm:$0xff]
      %v203 = vld [vmem:[%s166 + $0xe8] sm:$0xff]
      %v204 = vld [vmem:[%s166 + $0xf0] sm:$0xff]
      %v205 = vld [vmem:[%s166 + $0xf8] sm:$0xff]
      %v206 = vld [vmem:[%s166 + $0x100] sm:$0xff]
      %v207 = vld [vmem:[%s166 + $0x108] sm:$0xff]
      %v208 = vld [vmem:[%s166 + $0x110] sm:$0xff]
      %v209 = vld [vmem:[%s166 + $0x118] sm:$0xff]
      %v210 = vld [vmem:[%s166 + $0x120] sm:$0xff]
      %v211 = vld [vmem:[%s166 + $0x128] sm:$0xff]
      %v212 = vld [vmem:[%s166 + $0x130] sm:$0xff]
      %v213 = vld [vmem:[%s166 + $0x138] sm:$0xff]
      %v214 = vld [vmem:[%s166 + $0x140] sm:$0xff]
      %v215 = vld [vmem:[%s166 + $0x148] sm:$0xff]
      %v216 = vld [vmem:[%s166 + $0x150] sm:$0xff]
      %v217 = vld [vmem:[%s166 + $0x158] sm:$0xff]
      %v218 = vld [vmem:[%s166 + $0x160] sm:$0xff]
      %v219 = vld [vmem:[%s166 + $0x168] sm:$0xff]
      %v220 = vld [vmem:[%s166 + $0x170] sm:$0xff]
      %v221 = vld [vmem:[%s166 + $0x178] sm:$0xff]
      %v222 = vld [vmem:[%s166 + $0x180] sm:$0xff]
      %v223 = vld [vmem:[%s166 + $0x188] sm:$0xff]
      %v224 = vld [vmem:[%s166 + $0x190] sm:$0xff]
      %v225 = vld [vmem:[%s166 + $0x198] sm:$0xff]
      %v226 = vld [vmem:[%s166 + $0x1a0] sm:$0xff]
      %v227 = vld [vmem:[%s166 + $0x1a8] sm:$0xff]
      %v228 = vld [vmem:[%s166 + $0x1b0] sm:$0xff]
      %v229 = vld [vmem:[%s166 + $0x1b8] sm:$0xff]
      %v230 = vld [vmem:[%s166 + $0x1c0] sm:$0xff]
      %v231 = vld [vmem:[%s166 + $0x1c8] sm:$0xff]
      %v232 = vld [vmem:[%s166 + $0x1d0] sm:$0xff]
      %v233 = vld [vmem:[%s166 + $0x1d8] sm:$0xff]
      %v234 = vld [vmem:[%s166 + $0x1e0] sm:$0xff]
      %v235 = vld [vmem:[%s166 + $0x1e8] sm:$0xff]
      %v236 = vld [vmem:[%s166 + $0x1f0] sm:$0xff]
      %v237 = vld [vmem:[%s166 + $0x1f8] sm:$0xff]
      %v238 = vld [vmem:[%s166 + $0x200] sm:$0xff]
      %v239 = vld [vmem:[%s166 + $0x208] sm:$0xff]
      %v240 = vld [vmem:[%s166 + $0x210] sm:$0xff]
      %v241 = vld [vmem:[%s166 + $0x218] sm:$0xff]
      %v242 = vld [vmem:[%s166 + $0x220] sm:$0xff]
      %v243 = vld [vmem:[%s166 + $0x228] sm:$0xff]
      %v244 = vld [vmem:[%s166 + $0x230] sm:$0xff]
      %v245 = vld [vmem:[%s166 + $0x238] sm:$0xff]
      %v246 = vld [vmem:[%s166 + $0x240] sm:$0xff]
      %v247 = vld [vmem:[%s166 + $0x248] sm:$0xff]
      %v248 = vld [vmem:[%s166 + $0x250] sm:$0xff]
      %v249 = vld [vmem:[%s166 + $0x258] sm:$0xff]
      %v250 = vld [vmem:[%s166 + $0x260] sm:$0xff]
      %v251 = vld [vmem:[%s166 + $0x268] sm:$0xff]
      %v252 = vld [vmem:[%s166 + $0x270] sm:$0xff]
      %v253 = vld [vmem:[%s166 + $0x278] sm:$0xff]
      %v254 = vld [vmem:[%s166 + $0x280] sm:$0xff]
      %v255 = vld [vmem:[%s166 + $0x288] sm:$0xff]
      %v256 = vld [vmem:[%s166 + $0x290] sm:$0xff]
      %v257 = vld [vmem:[%s166 + $0x298] sm:$0xff]
      %v258 = vld [vmem:[%s166 + $0x2a0] sm:$0xff]
      %v259 = vld [vmem:[%s166 + $0x2a8] sm:$0xff]
      %v260 = vld [vmem:[%s166 + $0x2b0] sm:$0xff]
      %v261 = vld [vmem:[%s166 + $0x2b8] sm:$0xff]
      %v262 = vld [vmem:[%s166 + $0x2c0] sm:$0xff]
      %v263 = vld [vmem:[%s166 + $0x2c8] sm:$0xff]
      %v264 = vld [vmem:[%s166 + $0x2d0] sm:$0xff]
      %v265 = vld [vmem:[%s166 + $0x2d8] sm:$0xff]
      %v266 = vld [vmem:[%s166 + $0x2e0] sm:$0xff]
      %v267 = vld [vmem:[%s166 + $0x2e8] sm:$0xff]
      %v268 = vld [vmem:[%s166 + $0x2f0] sm:$0xff]
      %v269 = vld [vmem:[%s166 + $0x2f8] sm:$0xff]
      %v270 = vld [vmem:[%s166 + $0x300] sm:$0xff]
      %v271 = vld [vmem:[%s166 + $0x308] sm:$0xff]
      %v272 = vld [vmem:[%s166 + $0x310] sm:$0xff]
      %v273 = vld [vmem:[%s166 + $0x318] sm:$0xff]
      %v274 = vld [vmem:[%s166 + $0x320] sm:$0xff]
      %v275 = vld [vmem:[%s166 + $0x328] sm:$0xff]
      %v276 = vld [vmem:[%s166 + $0x330] sm:$0xff]
      %v277 = vld [vmem:[%s166 + $0x338] sm:$0xff]
      %v278 = vld [vmem:[%s166 + $0x340] sm:$0xff]
      %v279 = vld [vmem:[%s166 + $0x348] sm:$0xff]
      %v280 = vld [vmem:[%s1] sm:$0xff]
      %v281 = vld [vmem:[%s1 + $0x8] sm:$0xff]
      %v282 = vld [vmem:[%s1 + $0x10] sm:$0xff]
      %v283 = vld [vmem:[%s1 + $0x18] sm:$0xff]
      %v284 = vld [vmem:[%s1 + $0x20] sm:$0xff]
      %v285 = vld [vmem:[%s1 + $0x28] sm:$0xff]
      %v286 = vld [vmem:[%s1 + $0x30] sm:$0xff]
      %v287 = vld [vmem:[%s2] sm:$0x1]
      %v289 = vlaneseq
      %v290 = vshrl.u32 %v289, 7
      %v291 = vsub.s32 0, %v290
      %v292 = vrot.slane %v287, %v291
      %vm294 = vcmask 457728
      %v296 = vsel %vm294, %v174, 0
      %v299 = vsel %vm294, %v175, 0
      %v302 = vsel %vm294, %v176, 0
      %v305 = vsel %vm294, %v177, 0
      %v308 = vsel %vm294, %v178, 0
      %v311 = vsel %vm294, %v179, 0
      %v314 = vsel %vm294, %v180, 0
      %v317 = vsel %vm294, %v181, 0
      %v320 = vsel %vm294, %v182, 0
      %v323 = vsel %vm294, %v183, 0
      %v326 = vsel %vm294, %v184, 0
      %v329 = vsel %vm294, %v185, 0
      %v332 = vsel %vm294, %v186, 0
      %v335 = vsel %vm294, %v187, 0
      %v338 = vsel %vm294, %v188, 0
      %v341 = vsel %vm294, %v189, 0
      %v344 = vsel %vm294, %v190, 0
      %v347 = vsel %vm294, %v191, 0
      %v350 = vsel %vm294, %v192, 0
      %v353 = vsel %vm294, %v193, 0
      %v356 = vsel %vm294, %v194, 0
      %v359 = vsel %vm294, %v195, 0
      %v362 = vsel %vm294, %v196, 0
      %v365 = vsel %vm294, %v197, 0
      %v368 = vsel %vm294, %v198, 0
      %v371 = vsel %vm294, %v199, 0
      %v374 = vsel %vm294, %v200, 0
      %v377 = vsel %vm294, %v201, 0
      %v380 = vsel %vm294, %v202, 0
      %v383 = vsel %vm294, %v203, 0
      %v386 = vsel %vm294, %v204, 0
      %v389 = vsel %vm294, %v205, 0
      %v392 = vsel %vm294, %v206, 0
      %v395 = vsel %vm294, %v207, 0
      %v398 = vsel %vm294, %v208, 0
      %v401 = vsel %vm294, %v209, 0
      %v404 = vsel %vm294, %v210, 0
      %v407 = vsel %vm294, %v211, 0
      %v410 = vsel %vm294, %v212, 0
      %v413 = vsel %vm294, %v213, 0
      %v416 = vsel %vm294, %v214, 0
      %v419 = vsel %vm294, %v215, 0
      %v422 = vsel %vm294, %v216, 0
      %v425 = vsel %vm294, %v217, 0
      %v428 = vsel %vm294, %v218, 0
      %v431 = vsel %vm294, %v219, 0
      %v434 = vsel %vm294, %v220, 0
      %v437 = vsel %vm294, %v221, 0
      %v440 = vsel %vm294, %v222, 0
      %v443 = vsel %vm294, %v223, 0
      %v446 = vsel %vm294, %v224, 0
      %v449 = vsel %vm294, %v225, 0
      %v452 = vsel %vm294, %v226, 0
      %v455 = vsel %vm294, %v227, 0
      %v458 = vsel %vm294, %v228, 0
      %v461 = vsel %vm294, %v229, 0
      %v464 = vsel %vm294, %v230, 0
      %v467 = vsel %vm294, %v231, 0
      %v470 = vsel %vm294, %v232, 0
      %v473 = vsel %vm294, %v233, 0
      %v476 = vsel %vm294, %v234, 0
      %v479 = vsel %vm294, %v235, 0
      %v482 = vsel %vm294, %v236, 0
      %v485 = vsel %vm294, %v237, 0
      %v488 = vsel %vm294, %v238, 0
      %v491 = vsel %vm294, %v239, 0
      %v494 = vsel %vm294, %v240, 0
      %v497 = vsel %vm294, %v241, 0
      %v500 = vsel %vm294, %v242, 0
      %v503 = vsel %vm294, %v243, 0
      %v506 = vsel %vm294, %v244, 0
      %v509 = vsel %vm294, %v245, 0
      %v512 = vsel %vm294, %v246, 0
      %v515 = vsel %vm294, %v247, 0
      %v518 = vsel %vm294, %v248, 0
      %v521 = vsel %vm294, %v249, 0
      %v524 = vsel %vm294, %v250, 0
      %v527 = vsel %vm294, %v251, 0
      %v530 = vsel %vm294, %v252, 0
      %v533 = vsel %vm294, %v253, 0
      %v536 = vsel %vm294, %v254, 0
      %v539 = vsel %vm294, %v255, 0
      %v542 = vsel %vm294, %v256, 0
      %v545 = vsel %vm294, %v257, 0
      %v548 = vsel %vm294, %v258, 0
      %v551 = vsel %vm294, %v259, 0
      %v554 = vsel %vm294, %v260, 0
      %v557 = vsel %vm294, %v261, 0
      %v560 = vsel %vm294, %v262, 0
      %v563 = vsel %vm294, %v263, 0
      %v566 = vsel %vm294, %v264, 0
      %v569 = vsel %vm294, %v265, 0
      %v572 = vsel %vm294, %v266, 0
      %v575 = vsel %vm294, %v267, 0
      %v578 = vsel %vm294, %v268, 0
      %v581 = vsel %vm294, %v269, 0
      %v584 = vsel %vm294, %v270, 0
      %v587 = vsel %vm294, %v271, 0
      %v590 = vsel %vm294, %v272, 0
      %v593 = vsel %vm294, %v273, 0
      %v596 = vsel %vm294, %v274, 0
      %v599 = vsel %vm294, %v275, 0
      %v602 = vsel %vm294, %v276, 0
      %v605 = vsel %vm294, %v277, 0
      %v608 = vsel %vm294, %v278, 0
      %v611 = vsel %vm294, %v279, 0
      %613 = vmatprep.subr.mxu0 0.0
      %614 = vmatpush1.msra.mxu0 0.0
      %615 = vmatprep.subr.mxu0 0.0
      %616 = vmatpush1.msra.mxu0 0.0
      %617 = vmatprep.subr.mxu0 0.0
      %618 = vmatpush1.msra.mxu0 0.0
      %619 = vmatprep.subr.mxu0 0.0
      %620 = vmatpush1.msra.mxu0 0.0
      %621 = vmatprep.subr.mxu0 0.0
      %622 = vmatpush1.msra.mxu0 0.0
      %623 = vmatprep.subr.mxu0 0.0
      %624 = vmatpush1.msra.mxu0 0.0
      %625 = vmatprep.subr.mxu0 0.0
      %626 = vmatpush1.msra.mxu0 0.0
      %627 = vmatprep.subr.mxu0 0.0
      %628 = vmatpush1.msra.mxu0 0.0
      %629 = vmatprep.subr.mxu0 0.0
      %630 = vmatpush1.msra.mxu0 0.0
      %631 = vmatprep.subr.mxu0 0.0
      %632 = vmatpush1.msra.mxu0 %v286
      %633 = vmatprep.subr.mxu0 0.0
      %634 = vmatpush1.msra.mxu0 %v285
      %635 = vmatprep.subr.mxu0 0.0
      %636 = vmatpush1.msra.mxu0 %v284
      %637 = vmatprep.subr.mxu0 0.0
      %638 = vmatpush1.msra.mxu0 %v283
      %639 = vmatprep.subr.mxu0 0.0
      %640 = vmatpush1.msra.mxu0 %v282
      %641 = vmatprep.subr.mxu0 0.0
      %642 = vmatpush1.msra.mxu0 %v281
      %643 = vmatprep.subr.mxu0 0.0
      %644 = vmatpush1.msra.mxu0 %v280
      %645 = vmatprep.subr.mxu0 0.0
      %646 = vmatpush2.msra.mxu0 0.0
      %647 = vmatprep.subr.mxu0 0.0
      %648 = vmatpush2.msra.mxu0 0.0
      %649 = vmatprep.subr.mxu0 0.0
      %650 = vmatpush2.msra.mxu0 0.0
      %651 = vmatprep.subr.mxu0 0.0
      %652 = vmatpush2.msra.mxu0 0.0
      %653 = vmatprep.subr.mxu0 0.0
      %654 = vmatpush2.msra.mxu0 0.0
      %655 = vmatprep.subr.mxu0 0.0
      %656 = vmatpush2.msra.mxu0 0.0
      %657 = vmatprep.subr.mxu0 0.0
      %658 = vmatpush2.msra.mxu0 0.0
      %659 = vmatprep.subr.mxu0 0.0
      %660 = vmatpush2.msra.mxu0 0.0
      %661 = vmatprep.subr.mxu0 0.0
      %662 = vmatpush2.msra.mxu0 0.0
      %663 = vmatprep.subr.mxu0 0.0
      %664 = vmatpush2.msra.mxu0 0.0
      %665 = vmatprep.subr.mxu0 0.0
      %666 = vmatpush2.msra.mxu0 0.0
      %667 = vmatprep.subr.mxu0 0.0
      %668 = vmatpush2.msra.mxu0 0.0
      %669 = vmatprep.subr.mxu0 0.0
      %670 = vmatpush2.msra.mxu0 0.0
      %671 = vmatprep.subr.mxu0 0.0
      %672 = vmatpush2.msra.mxu0 0.0
      %673 = vmatprep.subr.mxu0 0.0
      %674 = vmatpush2.msra.mxu0 0.0
      %675 = vmatprep.subr.mxu0 0.0
      %676 = vmatpush2.msra.mxu0 0.0
      %677 = vmatprep.mubr.f32.mxu0 0.0
      %678 = vmatmul.mubr.f32.gmra.mxu0 %v296
      %v679 = vpop.f32.mrf.mxu0
      %v680 = vadd.f32 %v292, %v679
      %v681 = vpop.f32.mrf.mxu0
      %682 = vmatprep.mubr.f32.mxu0 0.0
      %683 = vmatmul.mubr.f32.gmra.mxu0 %v299
      %v684 = vpop.f32.mrf.mxu0
      %v685 = vadd.f32 %v292, %v684
      %v686 = vpop.f32.mrf.mxu0
      %687 = vmatprep.mubr.f32.mxu0 0.0
      %688 = vmatmul.mubr.f32.gmra.mxu0 %v302
      %v689 = vpop.f32.mrf.mxu0
      %v690 = vadd.f32 %v292, %v689
      %v691 = vpop.f32.mrf.mxu0
      %692 = vmatprep.mubr.f32.mxu0 0.0
      %693 = vmatmul.mubr.f32.gmra.mxu0 %v305
      %v694 = vpop.f32.mrf.mxu0
      %v695 = vadd.f32 %v292, %v694
      %v696 = vpop.f32.mrf.mxu0
      %697 = vmatprep.mubr.f32.mxu0 0.0
      %698 = vmatmul.mubr.f32.gmra.mxu0 %v308
      %v699 = vpop.f32.mrf.mxu0
      %v700 = vadd.f32 %v292, %v699
      %v701 = vpop.f32.mrf.mxu0
      %702 = vmatprep.mubr.f32.mxu0 0.0
      %703 = vmatmul.mubr.f32.gmra.mxu0 %v311
      %v704 = vpop.f32.mrf.mxu0
      %v705 = vadd.f32 %v292, %v704
      %v706 = vpop.f32.mrf.mxu0
      %707 = vmatprep.mubr.f32.mxu0 0.0
      %708 = vmatmul.mubr.f32.gmra.mxu0 %v314
      %v709 = vpop.f32.mrf.mxu0
      %v710 = vadd.f32 %v292, %v709
      %v711 = vpop.f32.mrf.mxu0
      %712 = vmatprep.mubr.f32.mxu0 0.0
      %713 = vmatmul.mubr.f32.gmra.mxu0 %v317
      %v714 = vpop.f32.mrf.mxu0
      %v715 = vadd.f32 %v292, %v714
      %v716 = vpop.f32.mrf.mxu0
      %717 = vmatprep.mubr.f32.mxu0 0.0
      %718 = vmatmul.mubr.f32.gmra.mxu0 %v320
      %v719 = vpop.f32.mrf.mxu0
      %v720 = vadd.f32 %v292, %v719
      %v721 = vpop.f32.mrf.mxu0
      %722 = vmatprep.mubr.f32.mxu0 0.0
      %723 = vmatmul.mubr.f32.gmra.mxu0 %v323
      %v724 = vpop.f32.mrf.mxu0
      %v725 = vadd.f32 %v292, %v724
      %v726 = vpop.f32.mrf.mxu0
      %727 = vmatprep.mubr.f32.mxu0 0.0
      %728 = vmatmul.mubr.f32.gmra.mxu0 %v326
      %v729 = vpop.f32.mrf.mxu0
      %v730 = vadd.f32 %v292, %v729
      %v731 = vpop.f32.mrf.mxu0
      %732 = vmatprep.mubr.f32.mxu0 0.0
      %733 = vmatmul.mubr.f32.gmra.mxu0 %v329
      %v734 = vpop.f32.mrf.mxu0
      %v735 = vadd.f32 %v292, %v734
      %v736 = vpop.f32.mrf.mxu0
      %737 = vmatprep.mubr.f32.mxu0 0.0
      %738 = vmatmul.mubr.f32.gmra.mxu0 %v332
      %v739 = vpop.f32.mrf.mxu0
      %v740 = vadd.f32 %v292, %v739
      %v741 = vpop.f32.mrf.mxu0
      %742 = vmatprep.mubr.f32.mxu0 0.0
      %743 = vmatmul.mubr.f32.gmra.mxu0 %v335
      %v744 = vpop.f32.mrf.mxu0
      %v745 = vadd.f32 %v292, %v744
      %v746 = vpop.f32.mrf.mxu0
      %747 = vmatprep.mubr.f32.mxu0 0.0
      %748 = vmatmul.mubr.f32.gmra.mxu0 %v338
      %v749 = vpop.f32.mrf.mxu0
      %v750 = vadd.f32 %v292, %v749
      %v751 = vpop.f32.mrf.mxu0
      %752 = vmatprep.mubr.f32.mxu0 0.0
      %753 = vmatmul.mubr.f32.gmra.mxu0 %v341
      %v754 = vpop.f32.mrf.mxu0
      %v755 = vadd.f32 %v292, %v754
      %v756 = vpop.f32.mrf.mxu0
      %757 = vmatprep.mubr.f32.mxu0 0.0
      %758 = vmatmul.mubr.f32.gmra.mxu0 %v344
      %v759 = vpop.f32.mrf.mxu0
      %v760 = vadd.f32 %v292, %v759
      %v761 = vpop.f32.mrf.mxu0
      %762 = vmatprep.mubr.f32.mxu0 0.0
      %763 = vmatmul.mubr.f32.gmra.mxu0 %v347
      %v764 = vpop.f32.mrf.mxu0
      %v765 = vadd.f32 %v292, %v764
      %v766 = vpop.f32.mrf.mxu0
      %767 = vmatprep.mubr.f32.mxu0 0.0
      %768 = vmatmul.mubr.f32.gmra.mxu0 %v350
      %v769 = vpop.f32.mrf.mxu0
      %v770 = vadd.f32 %v292, %v769
      %v771 = vpop.f32.mrf.mxu0
      %772 = vmatprep.mubr.f32.mxu0 0.0
      %773 = vmatmul.mubr.f32.gmra.mxu0 %v353
      %v774 = vpop.f32.mrf.mxu0
      %v775 = vadd.f32 %v292, %v774
      %v776 = vpop.f32.mrf.mxu0
      %777 = vmatprep.mubr.f32.mxu0 0.0
      %778 = vmatmul.mubr.f32.gmra.mxu0 %v356
      %v779 = vpop.f32.mrf.mxu0
      %v780 = vadd.f32 %v292, %v779
      %v781 = vpop.f32.mrf.mxu0
      %782 = vmatprep.mubr.f32.mxu0 0.0
      %783 = vmatmul.mubr.f32.gmra.mxu0 %v359
      %v784 = vpop.f32.mrf.mxu0
      %v785 = vadd.f32 %v292, %v784
      %v786 = vpop.f32.mrf.mxu0
      %787 = vmatprep.mubr.f32.mxu0 0.0
      %788 = vmatmul.mubr.f32.gmra.mxu0 %v362
      %v789 = vpop.f32.mrf.mxu0
      %v790 = vadd.f32 %v292, %v789
      %v791 = vpop.f32.mrf.mxu0
      %792 = vmatprep.mubr.f32.mxu0 0.0
      %793 = vmatmul.mubr.f32.gmra.mxu0 %v365
      %v794 = vpop.f32.mrf.mxu0
      %v795 = vadd.f32 %v292, %v794
      %v796 = vpop.f32.mrf.mxu0
      %797 = vmatprep.mubr.f32.mxu0 0.0
      %798 = vmatmul.mubr.f32.gmra.mxu0 %v368
      %v799 = vpop.f32.mrf.mxu0
      %v800 = vadd.f32 %v292, %v799
      %v801 = vpop.f32.mrf.mxu0
      %802 = vmatprep.mubr.f32.mxu0 0.0
      %803 = vmatmul.mubr.f32.gmra.mxu0 %v371
      %v804 = vpop.f32.mrf.mxu0
      %v805 = vadd.f32 %v292, %v804
      %v806 = vpop.f32.mrf.mxu0
      %807 = vmatprep.mubr.f32.mxu0 0.0
      %808 = vmatmul.mubr.f32.gmra.mxu0 %v374
      %v809 = vpop.f32.mrf.mxu0
      %v810 = vadd.f32 %v292, %v809
      %v811 = vpop.f32.mrf.mxu0
      %812 = vmatprep.mubr.f32.mxu0 0.0
      %813 = vmatmul.mubr.f32.gmra.mxu0 %v377
      %v814 = vpop.f32.mrf.mxu0
      %v815 = vadd.f32 %v292, %v814
      %v816 = vpop.f32.mrf.mxu0
      %817 = vmatprep.mubr.f32.mxu0 0.0
      %818 = vmatmul.mubr.f32.gmra.mxu0 %v380
      %v819 = vpop.f32.mrf.mxu0
      %v820 = vadd.f32 %v292, %v819
      %v821 = vpop.f32.mrf.mxu0
      %822 = vmatprep.mubr.f32.mxu0 0.0
      %823 = vmatmul.mubr.f32.gmra.mxu0 %v383
      %v824 = vpop.f32.mrf.mxu0
      %v825 = vadd.f32 %v292, %v824
      %v826 = vpop.f32.mrf.mxu0
      %827 = vmatprep.mubr.f32.mxu0 0.0
      %828 = vmatmul.mubr.f32.gmra.mxu0 %v386
      %v829 = vpop.f32.mrf.mxu0
      %v830 = vadd.f32 %v292, %v829
      %v831 = vpop.f32.mrf.mxu0
      %832 = vmatprep.mubr.f32.mxu0 0.0
      %833 = vmatmul.mubr.f32.gmra.mxu0 %v389
      %v834 = vpop.f32.mrf.mxu0
      %v835 = vadd.f32 %v292, %v834
      %v836 = vpop.f32.mrf.mxu0
      %837 = vmatprep.mubr.f32.mxu0 0.0
      %838 = vmatmul.mubr.f32.gmra.mxu0 %v392
      %v839 = vpop.f32.mrf.mxu0
      %v840 = vadd.f32 %v292, %v839
      %v841 = vpop.f32.mrf.mxu0
      %842 = vmatprep.mubr.f32.mxu0 0.0
      %843 = vmatmul.mubr.f32.gmra.mxu0 %v395
      %v844 = vpop.f32.mrf.mxu0
      %v845 = vadd.f32 %v292, %v844
      %v846 = vpop.f32.mrf.mxu0
      %847 = vmatprep.mubr.f32.mxu0 0.0
      %848 = vmatmul.mubr.f32.gmra.mxu0 %v398
      %v849 = vpop.f32.mrf.mxu0
      %v850 = vadd.f32 %v292, %v849
      %v851 = vpop.f32.mrf.mxu0
      %852 = vmatprep.mubr.f32.mxu0 0.0
      %853 = vmatmul.mubr.f32.gmra.mxu0 %v401
      %v854 = vpop.f32.mrf.mxu0
      %v855 = vadd.f32 %v292, %v854
      %v856 = vpop.f32.mrf.mxu0
      %857 = vmatprep.mubr.f32.mxu0 0.0
      %858 = vmatmul.mubr.f32.gmra.mxu0 %v404
      %v859 = vpop.f32.mrf.mxu0
      %v860 = vadd.f32 %v292, %v859
      %v861 = vpop.f32.mrf.mxu0
      %862 = vmatprep.mubr.f32.mxu0 0.0
      %863 = vmatmul.mubr.f32.gmra.mxu0 %v407
      %v864 = vpop.f32.mrf.mxu0
      %v865 = vadd.f32 %v292, %v864
      %v866 = vpop.f32.mrf.mxu0
      %867 = vmatprep.mubr.f32.mxu0 0.0
      %868 = vmatmul.mubr.f32.gmra.mxu0 %v410
      %v869 = vpop.f32.mrf.mxu0
      %v870 = vadd.f32 %v292, %v869
      %v871 = vpop.f32.mrf.mxu0
      %872 = vmatprep.mubr.f32.mxu0 0.0
      %873 = vmatmul.mubr.f32.gmra.mxu0 %v413
      %v874 = vpop.f32.mrf.mxu0
      %v875 = vadd.f32 %v292, %v874
      %v876 = vpop.f32.mrf.mxu0
      %877 = vmatprep.mubr.f32.mxu0 0.0
      %878 = vmatmul.mubr.f32.gmra.mxu0 %v416
      %v879 = vpop.f32.mrf.mxu0
      %v880 = vadd.f32 %v292, %v879
      %v881 = vpop.f32.mrf.mxu0
      %882 = vmatprep.mubr.f32.mxu0 0.0
      %883 = vmatmul.mubr.f32.gmra.mxu0 %v419
      %v884 = vpop.f32.mrf.mxu0
      %v885 = vadd.f32 %v292, %v884
      %v886 = vpop.f32.mrf.mxu0
      %887 = vmatprep.mubr.f32.mxu0 0.0
      %888 = vmatmul.mubr.f32.gmra.mxu0 %v422
      %v889 = vpop.f32.mrf.mxu0
      %v890 = vadd.f32 %v292, %v889
      %v891 = vpop.f32.mrf.mxu0
      %892 = vmatprep.mubr.f32.mxu0 0.0
      %893 = vmatmul.mubr.f32.gmra.mxu0 %v425
      %v894 = vpop.f32.mrf.mxu0
      %v895 = vadd.f32 %v292, %v894
      %v896 = vpop.f32.mrf.mxu0
      %897 = vmatprep.mubr.f32.mxu0 0.0
      %898 = vmatmul.mubr.f32.gmra.mxu0 %v428
      %v899 = vpop.f32.mrf.mxu0
      %v900 = vadd.f32 %v292, %v899
      %v901 = vpop.f32.mrf.mxu0
      %902 = vmatprep.mubr.f32.mxu0 0.0
      %903 = vmatmul.mubr.f32.gmra.mxu0 %v431
      %v904 = vpop.f32.mrf.mxu0
      %v905 = vadd.f32 %v292, %v904
      %v906 = vpop.f32.mrf.mxu0
      %907 = vmatprep.mubr.f32.mxu0 0.0
      %908 = vmatmul.mubr.f32.gmra.mxu0 %v434
      %v909 = vpop.f32.mrf.mxu0
      %v910 = vadd.f32 %v292, %v909
      %v911 = vpop.f32.mrf.mxu0
      %912 = vmatprep.mubr.f32.mxu0 0.0
      %913 = vmatmul.mubr.f32.gmra.mxu0 %v437
      %v914 = vpop.f32.mrf.mxu0
      %v915 = vadd.f32 %v292, %v914
      %v916 = vpop.f32.mrf.mxu0
      %917 = vmatprep.mubr.f32.mxu0 0.0
      %918 = vmatmul.mubr.f32.gmra.mxu0 %v440
      %v919 = vpop.f32.mrf.mxu0
      %v920 = vadd.f32 %v292, %v919
      %v921 = vpop.f32.mrf.mxu0
      %922 = vmatprep.mubr.f32.mxu0 0.0
      %923 = vmatmul.mubr.f32.gmra.mxu0 %v443
      %v924 = vpop.f32.mrf.mxu0
      %v925 = vadd.f32 %v292, %v924
      %v926 = vpop.f32.mrf.mxu0
      %927 = vmatprep.mubr.f32.mxu0 0.0
      %928 = vmatmul.mubr.f32.gmra.mxu0 %v446
      %v929 = vpop.f32.mrf.mxu0
      %v930 = vadd.f32 %v292, %v929
      %v931 = vpop.f32.mrf.mxu0
      %932 = vmatprep.mubr.f32.mxu0 0.0
      %933 = vmatmul.mubr.f32.gmra.mxu0 %v449
      %v934 = vpop.f32.mrf.mxu0
      %v935 = vadd.f32 %v292, %v934
      %v936 = vpop.f32.mrf.mxu0
      %937 = vmatprep.mubr.f32.mxu0 0.0
      %938 = vmatmul.mubr.f32.gmra.mxu0 %v452
      %v939 = vpop.f32.mrf.mxu0
      %v940 = vadd.f32 %v292, %v939
      %v941 = vpop.f32.mrf.mxu0
      %942 = vmatprep.mubr.f32.mxu0 0.0
      %943 = vmatmul.mubr.f32.gmra.mxu0 %v455
      %v944 = vpop.f32.mrf.mxu0
      %v945 = vadd.f32 %v292, %v944
      %v946 = vpop.f32.mrf.mxu0
      %947 = vmatprep.mubr.f32.mxu0 0.0
      %948 = vmatmul.mubr.f32.gmra.mxu0 %v458
      %v949 = vpop.f32.mrf.mxu0
      %v950 = vadd.f32 %v292, %v949
      %v951 = vpop.f32.mrf.mxu0
      %952 = vmatprep.mubr.f32.mxu0 0.0
      %953 = vmatmul.mubr.f32.gmra.mxu0 %v461
      %v954 = vpop.f32.mrf.mxu0
      %v955 = vadd.f32 %v292, %v954
      %v956 = vpop.f32.mrf.mxu0
      %957 = vmatprep.mubr.f32.mxu0 0.0
      %958 = vmatmul.mubr.f32.gmra.mxu0 %v464
      %v959 = vpop.f32.mrf.mxu0
      %v960 = vadd.f32 %v292, %v959
      %v961 = vpop.f32.mrf.mxu0
      %962 = vmatprep.mubr.f32.mxu0 0.0
      %963 = vmatmul.mubr.f32.gmra.mxu0 %v467
      %v964 = vpop.f32.mrf.mxu0
      %v965 = vadd.f32 %v292, %v964
      %v966 = vpop.f32.mrf.mxu0
      %967 = vmatprep.mubr.f32.mxu0 0.0
      %968 = vmatmul.mubr.f32.gmra.mxu0 %v470
      %v969 = vpop.f32.mrf.mxu0
      %v970 = vadd.f32 %v292, %v969
      %v971 = vpop.f32.mrf.mxu0
      %972 = vmatprep.mubr.f32.mxu0 0.0
      %973 = vmatmul.mubr.f32.gmra.mxu0 %v473
      %v974 = vpop.f32.mrf.mxu0
      %v975 = vadd.f32 %v292, %v974
      %v976 = vpop.f32.mrf.mxu0
      %977 = vmatprep.mubr.f32.mxu0 0.0
      %978 = vmatmul.mubr.f32.gmra.mxu0 %v476
      %v979 = vpop.f32.mrf.mxu0
      %v980 = vadd.f32 %v292, %v979
      %v981 = vpop.f32.mrf.mxu0
      %982 = vmatprep.mubr.f32.mxu0 0.0
      %983 = vmatmul.mubr.f32.gmra.mxu0 %v479
      %v984 = vpop.f32.mrf.mxu0
      %v985 = vadd.f32 %v292, %v984
      %v986 = vpop.f32.mrf.mxu0
      %987 = vmatprep.mubr.f32.mxu0 0.0
      %988 = vmatmul.mubr.f32.gmra.mxu0 %v482
      %v989 = vpop.f32.mrf.mxu0
      %v990 = vadd.f32 %v292, %v989
      %v991 = vpop.f32.mrf.mxu0
      %992 = vmatprep.mubr.f32.mxu0 0.0
      %993 = vmatmul.mubr.f32.gmra.mxu0 %v485
      %v994 = vpop.f32.mrf.mxu0
      %v995 = vadd.f32 %v292, %v994
      %v996 = vpop.f32.mrf.mxu0
      %997 = vmatprep.mubr.f32.mxu0 0.0
      %998 = vmatmul.mubr.f32.gmra.mxu0 %v488
      %v999 = vpop.f32.mrf.mxu0
      %v1000 = vadd.f32 %v292, %v999
      %v1001 = vpop.f32.mrf.mxu0
      %1002 = vmatprep.mubr.f32.mxu0 0.0
      %1003 = vmatmul.mubr.f32.gmra.mxu0 %v491
      %v1004 = vpop.f32.mrf.mxu0
      %v1005 = vadd.f32 %v292, %v1004
      %v1006 = vpop.f32.mrf.mxu0
      %1007 = vmatprep.mubr.f32.mxu0 0.0
      %1008 = vmatmul.mubr.f32.gmra.mxu0 %v494
      %v1009 = vpop.f32.mrf.mxu0
      %v1010 = vadd.f32 %v292, %v1009
      %v1011 = vpop.f32.mrf.mxu0
      %1012 = vmatprep.mubr.f32.mxu0 0.0
      %1013 = vmatmul.mubr.f32.gmra.mxu0 %v497
      %v1014 = vpop.f32.mrf.mxu0
      %v1015 = vadd.f32 %v292, %v1014
      %v1016 = vpop.f32.mrf.mxu0
      %1017 = vmatprep.mubr.f32.mxu0 0.0
      %1018 = vmatmul.mubr.f32.gmra.mxu0 %v500
      %v1019 = vpop.f32.mrf.mxu0
      %v1020 = vadd.f32 %v292, %v1019
      %v1021 = vpop.f32.mrf.mxu0
      %1022 = vmatprep.mubr.f32.mxu0 0.0
      %1023 = vmatmul.mubr.f32.gmra.mxu0 %v503
      %v1024 = vpop.f32.mrf.mxu0
      %v1025 = vadd.f32 %v292, %v1024
      %v1026 = vpop.f32.mrf.mxu0
      %1027 = vmatprep.mubr.f32.mxu0 0.0
      %1028 = vmatmul.mubr.f32.gmra.mxu0 %v506
      %v1029 = vpop.f32.mrf.mxu0
      %v1030 = vadd.f32 %v292, %v1029
      %v1031 = vpop.f32.mrf.mxu0
      %1032 = vmatprep.mubr.f32.mxu0 0.0
      %1033 = vmatmul.mubr.f32.gmra.mxu0 %v509
      %v1034 = vpop.f32.mrf.mxu0
      %v1035 = vadd.f32 %v292, %v1034
      %v1036 = vpop.f32.mrf.mxu0
      %1037 = vmatprep.mubr.f32.mxu0 0.0
      %1038 = vmatmul.mubr.f32.gmra.mxu0 %v512
      %v1039 = vpop.f32.mrf.mxu0
      %v1040 = vadd.f32 %v292, %v1039
      %v1041 = vpop.f32.mrf.mxu0
      %1042 = vmatprep.mubr.f32.mxu0 0.0
      %1043 = vmatmul.mubr.f32.gmra.mxu0 %v515
      %v1044 = vpop.f32.mrf.mxu0
      %v1045 = vadd.f32 %v292, %v1044
      %v1046 = vpop.f32.mrf.mxu0
      %1047 = vmatprep.mubr.f32.mxu0 0.0
      %1048 = vmatmul.mubr.f32.gmra.mxu0 %v518
      %v1049 = vpop.f32.mrf.mxu0
      %v1050 = vadd.f32 %v292, %v1049
      %v1051 = vpop.f32.mrf.mxu0
      %1052 = vmatprep.mubr.f32.mxu0 0.0
      %1053 = vmatmul.mubr.f32.gmra.mxu0 %v521
      %v1054 = vpop.f32.mrf.mxu0
      %v1055 = vadd.f32 %v292, %v1054
      %v1056 = vpop.f32.mrf.mxu0
      %1057 = vmatprep.mubr.f32.mxu0 0.0
      %1058 = vmatmul.mubr.f32.gmra.mxu0 %v524
      %v1059 = vpop.f32.mrf.mxu0
      %v1060 = vadd.f32 %v292, %v1059
      %v1061 = vpop.f32.mrf.mxu0
      %1062 = vmatprep.mubr.f32.mxu0 0.0
      %1063 = vmatmul.mubr.f32.gmra.mxu0 %v527
      %v1064 = vpop.f32.mrf.mxu0
      %v1065 = vadd.f32 %v292, %v1064
      %v1066 = vpop.f32.mrf.mxu0
      %1067 = vmatprep.mubr.f32.mxu0 0.0
      %1068 = vmatmul.mubr.f32.gmra.mxu0 %v530
      %v1069 = vpop.f32.mrf.mxu0
      %v1070 = vadd.f32 %v292, %v1069
      %v1071 = vpop.f32.mrf.mxu0
      %1072 = vmatprep.mubr.f32.mxu0 0.0
      %1073 = vmatmul.mubr.f32.gmra.mxu0 %v533
      %v1074 = vpop.f32.mrf.mxu0
      %v1075 = vadd.f32 %v292, %v1074
      %v1076 = vpop.f32.mrf.mxu0
      %1077 = vmatprep.mubr.f32.mxu0 0.0
      %1078 = vmatmul.mubr.f32.gmra.mxu0 %v536
      %v1079 = vpop.f32.mrf.mxu0
      %v1080 = vadd.f32 %v292, %v1079
      %v1081 = vpop.f32.mrf.mxu0
      %1082 = vmatprep.mubr.f32.mxu0 0.0
      %1083 = vmatmul.mubr.f32.gmra.mxu0 %v539
      %v1084 = vpop.f32.mrf.mxu0
      %v1085 = vadd.f32 %v292, %v1084
      %v1086 = vpop.f32.mrf.mxu0
      %1087 = vmatprep.mubr.f32.mxu0 0.0
      %1088 = vmatmul.mubr.f32.gmra.mxu0 %v542
      %v1089 = vpop.f32.mrf.mxu0
      %v1090 = vadd.f32 %v292, %v1089
      %v1091 = vpop.f32.mrf.mxu0
      %1092 = vmatprep.mubr.f32.mxu0 0.0
      %1093 = vmatmul.mubr.f32.gmra.mxu0 %v545
      %v1094 = vpop.f32.mrf.mxu0
      %v1095 = vadd.f32 %v292, %v1094
      %v1096 = vpop.f32.mrf.mxu0
      %1097 = vmatprep.mubr.f32.mxu0 0.0
      %1098 = vmatmul.mubr.f32.gmra.mxu0 %v548
      %v1099 = vpop.f32.mrf.mxu0
      %v1100 = vadd.f32 %v292, %v1099
      %v1101 = vpop.f32.mrf.mxu0
      %1102 = vmatprep.mubr.f32.mxu0 0.0
      %1103 = vmatmul.mubr.f32.gmra.mxu0 %v551
      %v1104 = vpop.f32.mrf.mxu0
      %v1105 = vadd.f32 %v292, %v1104
      %v1106 = vpop.f32.mrf.mxu0
      %1107 = vmatprep.mubr.f32.mxu0 0.0
      %1108 = vmatmul.mubr.f32.gmra.mxu0 %v554
      %v1109 = vpop.f32.mrf.mxu0
      %v1110 = vadd.f32 %v292, %v1109
      %v1111 = vpop.f32.mrf.mxu0
      %1112 = vmatprep.mubr.f32.mxu0 0.0
      %1113 = vmatmul.mubr.f32.gmra.mxu0 %v557
      %v1114 = vpop.f32.mrf.mxu0
      %v1115 = vadd.f32 %v292, %v1114
      %v1116 = vpop.f32.mrf.mxu0
      %1117 = vmatprep.mubr.f32.mxu0 0.0
      %1118 = vmatmul.mubr.f32.gmra.mxu0 %v560
      %v1119 = vpop.f32.mrf.mxu0
      %v1120 = vadd.f32 %v292, %v1119
      %v1121 = vpop.f32.mrf.mxu0
      %1122 = vmatprep.mubr.f32.mxu0 0.0
      %1123 = vmatmul.mubr.f32.gmra.mxu0 %v563
      %v1124 = vpop.f32.mrf.mxu0
      %v1125 = vadd.f32 %v292, %v1124
      %v1126 = vpop.f32.mrf.mxu0
      %1127 = vmatprep.mubr.f32.mxu0 0.0
      %1128 = vmatmul.mubr.f32.gmra.mxu0 %v566
      %v1129 = vpop.f32.mrf.mxu0
      %v1130 = vadd.f32 %v292, %v1129
      %v1131 = vpop.f32.mrf.mxu0
      %1132 = vmatprep.mubr.f32.mxu0 0.0
      %1133 = vmatmul.mubr.f32.gmra.mxu0 %v569
      %v1134 = vpop.f32.mrf.mxu0
      %v1135 = vadd.f32 %v292, %v1134
      %v1136 = vpop.f32.mrf.mxu0
      %1137 = vmatprep.mubr.f32.mxu0 0.0
      %1138 = vmatmul.mubr.f32.gmra.mxu0 %v572
      %v1139 = vpop.f32.mrf.mxu0
      %v1140 = vadd.f32 %v292, %v1139
      %v1141 = vpop.f32.mrf.mxu0
      %1142 = vmatprep.mubr.f32.mxu0 0.0
      %1143 = vmatmul.mubr.f32.gmra.mxu0 %v575
      %v1144 = vpop.f32.mrf.mxu0
      %v1145 = vadd.f32 %v292, %v1144
      %v1146 = vpop.f32.mrf.mxu0
      %1147 = vmatprep.mubr.f32.mxu0 0.0
      %1148 = vmatmul.mubr.f32.gmra.mxu0 %v578
      %v1149 = vpop.f32.mrf.mxu0
      %v1150 = vadd.f32 %v292, %v1149
      %v1151 = vpop.f32.mrf.mxu0
      %1152 = vmatprep.mubr.f32.mxu0 0.0
      %1153 = vmatmul.mubr.f32.gmra.mxu0 %v581
      %v1154 = vpop.f32.mrf.mxu0
      %v1155 = vadd.f32 %v292, %v1154
      %v1156 = vpop.f32.mrf.mxu0
      %1157 = vmatprep.mubr.f32.mxu0 0.0
      %1158 = vmatmul.mubr.f32.gmra.mxu0 %v584
      %v1159 = vpop.f32.mrf.mxu0
      %v1160 = vadd.f32 %v292, %v1159
      %v1161 = vpop.f32.mrf.mxu0
      %1162 = vmatprep.mubr.f32.mxu0 0.0
      %1163 = vmatmul.mubr.f32.gmra.mxu0 %v587
      %v1164 = vpop.f32.mrf.mxu0
      %v1165 = vadd.f32 %v292, %v1164
      %v1166 = vpop.f32.mrf.mxu0
      %1167 = vmatprep.mubr.f32.mxu0 0.0
      %1168 = vmatmul.mubr.f32.gmra.mxu0 %v590
      %v1169 = vpop.f32.mrf.mxu0
      %v1170 = vadd.f32 %v292, %v1169
      %v1171 = vpop.f32.mrf.mxu0
      %1172 = vmatprep.mubr.f32.mxu0 0.0
      %1173 = vmatmul.mubr.f32.gmra.mxu0 %v593
      %v1174 = vpop.f32.mrf.mxu0
      %v1175 = vadd.f32 %v292, %v1174
      %v1176 = vpop.f32.mrf.mxu0
      %1177 = vmatprep.mubr.f32.mxu0 0.0
      %1178 = vmatmul.mubr.f32.gmra.mxu0 %v596
      %v1179 = vpop.f32.mrf.mxu0
      %v1180 = vadd.f32 %v292, %v1179
      %v1181 = vpop.f32.mrf.mxu0
      %1182 = vmatprep.mubr.f32.mxu0 0.0
      %1183 = vmatmul.mubr.f32.gmra.mxu0 %v599
      %v1184 = vpop.f32.mrf.mxu0
      %v1185 = vadd.f32 %v292, %v1184
      %v1186 = vpop.f32.mrf.mxu0
      %1187 = vmatprep.mubr.f32.mxu0 0.0
      %1188 = vmatmul.mubr.f32.gmra.mxu0 %v602
      %v1189 = vpop.f32.mrf.mxu0
      %v1190 = vadd.f32 %v292, %v1189
      %v1191 = vpop.f32.mrf.mxu0
      %1192 = vmatprep.mubr.f32.mxu0 0.0
      %1193 = vmatmul.mubr.f32.gmra.mxu0 %v605
      %v1194 = vpop.f32.mrf.mxu0
      %v1195 = vadd.f32 %v292, %v1194
      %v1196 = vpop.f32.mrf.mxu0
      %1197 = vmatprep.mubr.f32.mxu0 0.0
      %1198 = vmatmul.mubr.f32.gmra.mxu0 %v608
      %v1199 = vpop.f32.mrf.mxu0
      %v1200 = vadd.f32 %v292, %v1199
      %v1201 = vpop.f32.mrf.mxu0
      %1202 = vmatprep.mubr.f32.mxu0 0.0
      %1203 = vmatmul.mubr.f32.gmra.mxu0 %v611
      %v1204 = vpop.f32.mrf.mxu0
      %v1205 = vadd.f32 %v292, %v1204
      %v1206 = vpop.f32.mrf.mxu0
      %1207 = vdwg.mxu0
      %vm1208 = vcmp.gt.f32.partialorder %v680, 0.0
      %vm1209 = vcmp.gt.f32.partialorder %v685, 0.0
      %vm1210 = vcmp.gt.f32.partialorder %v690, 0.0
      %vm1211 = vcmp.gt.f32.partialorder %v695, 0.0
      %vm1212 = vcmp.gt.f32.partialorder %v700, 0.0
      %vm1213 = vcmp.gt.f32.partialorder %v705, 0.0
      %vm1214 = vcmp.gt.f32.partialorder %v710, 0.0
      %vm1215 = vcmp.gt.f32.partialorder %v715, 0.0
      %vm1216 = vcmp.gt.f32.partialorder %v720, 0.0
      %vm1217 = vcmp.gt.f32.partialorder %v725, 0.0
      %vm1218 = vcmp.gt.f32.partialorder %v730, 0.0
      %vm1219 = vcmp.gt.f32.partialorder %v735, 0.0
      %vm1220 = vcmp.gt.f32.partialorder %v740, 0.0
      %vm1221 = vcmp.gt.f32.partialorder %v745, 0.0
      %vm1222 = vcmp.gt.f32.partialorder %v750, 0.0
      %vm1223 = vcmp.gt.f32.partialorder %v755, 0.0
      %vm1224 = vcmp.gt.f32.partialorder %v760, 0.0
      %vm1225 = vcmp.gt.f32.partialorder %v765, 0.0
      %vm1226 = vcmp.gt.f32.partialorder %v770, 0.0
      %vm1227 = vcmp.gt.f32.partialorder %v775, 0.0
      %vm1228 = vcmp.gt.f32.partialorder %v780, 0.0
      %vm1229 = vcmp.gt.f32.partialorder %v785, 0.0
      %vm1230 = vcmp.gt.f32.partialorder %v790, 0.0
      %vm1231 = vcmp.gt.f32.partialorder %v795, 0.0
      %vm1232 = vcmp.gt.f32.partialorder %v800, 0.0
      %vm1233 = vcmp.gt.f32.partialorder %v805, 0.0
      %vm1234 = vcmp.gt.f32.partialorder %v810, 0.0
      %vm1235 = vcmp.gt.f32.partialorder %v815, 0.0
      %vm1236 = vcmp.gt.f32.partialorder %v820, 0.0
      %vm1237 = vcmp.gt.f32.partialorder %v825, 0.0
      %vm1238 = vcmp.gt.f32.partialorder %v830, 0.0
      %vm1239 = vcmp.gt.f32.partialorder %v835, 0.0
      %vm1240 = vcmp.gt.f32.partialorder %v840, 0.0
      %vm1241 = vcmp.gt.f32.partialorder %v845, 0.0
      %vm1242 = vcmp.gt.f32.partialorder %v850, 0.0
      %vm1243 = vcmp.gt.f32.partialorder %v855, 0.0
      %vm1244 = vcmp.gt.f32.partialorder %v860, 0.0
      %vm1245 = vcmp.gt.f32.partialorder %v865, 0.0
      %vm1246 = vcmp.gt.f32.partialorder %v870, 0.0
      %vm1247 = vcmp.gt.f32.partialorder %v875, 0.0
      %vm1248 = vcmp.gt.f32.partialorder %v880, 0.0
      %vm1249 = vcmp.gt.f32.partialorder %v885, 0.0
      %vm1250 = vcmp.gt.f32.partialorder %v890, 0.0
      %vm1251 = vcmp.gt.f32.partialorder %v895, 0.0
      %vm1252 = vcmp.gt.f32.partialorder %v900, 0.0
      %vm1253 = vcmp.gt.f32.partialorder %v905, 0.0
      %vm1254 = vcmp.gt.f32.partialorder %v910, 0.0
      %vm1255 = vcmp.gt.f32.partialorder %v915, 0.0
      %vm1256 = vcmp.gt.f32.partialorder %v920, 0.0
      %vm1257 = vcmp.gt.f32.partialorder %v925, 0.0
      %vm1258 = vcmp.gt.f32.partialorder %v930, 0.0
      %vm1259 = vcmp.gt.f32.partialorder %v935, 0.0
      %vm1260 = vcmp.gt.f32.partialorder %v940, 0.0
      %vm1261 = vcmp.gt.f32.partialorder %v945, 0.0
      %vm1262 = vcmp.gt.f32.partialorder %v950, 0.0
      %vm1263 = vcmp.gt.f32.partialorder %v955, 0.0
      %vm1264 = vcmp.gt.f32.partialorder %v960, 0.0
      %vm1265 = vcmp.gt.f32.partialorder %v965, 0.0
      %vm1266 = vcmp.gt.f32.partialorder %v970, 0.0
      %vm1267 = vcmp.gt.f32.partialorder %v975, 0.0
      %vm1268 = vcmp.gt.f32.partialorder %v980, 0.0
      %vm1269 = vcmp.gt.f32.partialorder %v985, 0.0
      %vm1270 = vcmp.gt.f32.partialorder %v990, 0.0
      %vm1271 = vcmp.gt.f32.partialorder %v995, 0.0
      %vm1272 = vcmp.gt.f32.partialorder %v1000, 0.0
      %vm1273 = vcmp.gt.f32.partialorder %v1005, 0.0
      %vm1274 = vcmp.gt.f32.partialorder %v1010, 0.0
      %vm1275 = vcmp.gt.f32.partialorder %v1015, 0.0
      %vm1276 = vcmp.gt.f32.partialorder %v1020, 0.0
      %vm1277 = vcmp.gt.f32.partialorder %v1025, 0.0
      %vm1278 = vcmp.gt.f32.partialorder %v1030, 0.0
      %vm1279 = vcmp.gt.f32.partialorder %v1035, 0.0
      %vm1280 = vcmp.gt.f32.partialorder %v1040, 0.0
      %vm1281 = vcmp.gt.f32.partialorder %v1045, 0.0
      %vm1282 = vcmp.gt.f32.partialorder %v1050, 0.0
      %vm1283 = vcmp.gt.f32.partialorder %v1055, 0.0
      %vm1284 = vcmp.gt.f32.partialorder %v1060, 0.0
      %vm1285 = vcmp.gt.f32.partialorder %v1065, 0.0
      %vm1286 = vcmp.gt.f32.partialorder %v1070, 0.0
      %vm1287 = vcmp.gt.f32.partialorder %v1075, 0.0
      %vm1288 = vcmp.gt.f32.partialorder %v1080, 0.0
      %vm1289 = vcmp.gt.f32.partialorder %v1085, 0.0
      %vm1290 = vcmp.gt.f32.partialorder %v1090, 0.0
      %vm1291 = vcmp.gt.f32.partialorder %v1095, 0.0
      %vm1292 = vcmp.gt.f32.partialorder %v1100, 0.0
      %vm1293 = vcmp.gt.f32.partialorder %v1105, 0.0
      %vm1294 = vcmp.gt.f32.partialorder %v1110, 0.0
      %vm1295 = vcmp.gt.f32.partialorder %v1115, 0.0
      %vm1296 = vcmp.gt.f32.partialorder %v1120, 0.0
      %vm1297 = vcmp.gt.f32.partialorder %v1125, 0.0
      %vm1298 = vcmp.gt.f32.partialorder %v1130, 0.0
      %vm1299 = vcmp.gt.f32.partialorder %v1135, 0.0
      %vm1300 = vcmp.gt.f32.partialorder %v1140, 0.0
      %vm1301 = vcmp.gt.f32.partialorder %v1145, 0.0
      %vm1302 = vcmp.gt.f32.partialorder %v1150, 0.0
      %vm1303 = vcmp.gt.f32.partialorder %v1155, 0.0
      %vm1304 = vcmp.gt.f32.partialorder %v1160, 0.0
      %vm1305 = vcmp.gt.f32.partialorder %v1165, 0.0
      %vm1306 = vcmp.gt.f32.partialorder %v1170, 0.0
      %vm1307 = vcmp.gt.f32.partialorder %v1175, 0.0
      %vm1308 = vcmp.gt.f32.partialorder %v1180, 0.0
      %vm1309 = vcmp.gt.f32.partialorder %v1185, 0.0
      %vm1310 = vcmp.gt.f32.partialorder %v1190, 0.0
      %vm1311 = vcmp.gt.f32.partialorder %v1195, 0.0
      %vm1312 = vcmp.gt.f32.partialorder %v1200, 0.0
      %vm1313 = vcmp.gt.f32.partialorder %v1205, 0.0
      %v1314 = vmul.f32 %v680, 0.1
      %v1315 = vmul.f32 %v685, 0.1
      %v1316 = vmul.f32 %v690, 0.1
      %v1317 = vmul.f32 %v695, 0.1
      %v1318 = vmul.f32 %v700, 0.1
      %v1319 = vmul.f32 %v705, 0.1
      %v1320 = vmul.f32 %v710, 0.1
      %v1321 = vmul.f32 %v715, 0.1
      %v1322 = vmul.f32 %v720, 0.1
      %v1323 = vmul.f32 %v725, 0.1
      %v1324 = vmul.f32 %v730, 0.1
      %v1325 = vmul.f32 %v735, 0.1
      %v1326 = vmul.f32 %v740, 0.1
      %v1327 = vmul.f32 %v745, 0.1
      %v1328 = vmul.f32 %v750, 0.1
      %v1329 = vmul.f32 %v755, 0.1
      %v1330 = vmul.f32 %v760, 0.1
      %v1331 = vmul.f32 %v765, 0.1
      %v1332 = vmul.f32 %v770, 0.1
      %v1333 = vmul.f32 %v775, 0.1
      %v1334 = vmul.f32 %v780, 0.1
      %v1335 = vmul.f32 %v785, 0.1
      %v1336 = vmul.f32 %v790, 0.1
      %v1337 = vmul.f32 %v795, 0.1
      %v1338 = vmul.f32 %v800, 0.1
      %v1339 = vmul.f32 %v805, 0.1
      %v1340 = vmul.f32 %v810, 0.1
      %v1341 = vmul.f32 %v815, 0.1
      %v1342 = vmul.f32 %v820, 0.1
      %v1343 = vmul.f32 %v825, 0.1
      %v1344 = vmul.f32 %v830, 0.1
      %v1345 = vmul.f32 %v835, 0.1
      %v1346 = vmul.f32 %v840, 0.1
      %v1347 = vmul.f32 %v845, 0.1
      %v1348 = vmul.f32 %v850, 0.1
      %v1349 = vmul.f32 %v855, 0.1
      %v1350 = vmul.f32 %v860, 0.1
      %v1351 = vmul.f32 %v865, 0.1
      %v1352 = vmul.f32 %v870, 0.1
      %v1353 = vmul.f32 %v875, 0.1
      %v1354 = vmul.f32 %v880, 0.1
      %v1355 = vmul.f32 %v885, 0.1
      %v1356 = vmul.f32 %v890, 0.1
      %v1357 = vmul.f32 %v895, 0.1
      %v1358 = vmul.f32 %v900, 0.1
      %v1359 = vmul.f32 %v905, 0.1
      %v1360 = vmul.f32 %v910, 0.1
      %v1361 = vmul.f32 %v915, 0.1
      %v1362 = vmul.f32 %v920, 0.1
      %v1363 = vmul.f32 %v925, 0.1
      %v1364 = vmul.f32 %v930, 0.1
      %v1365 = vmul.f32 %v935, 0.1
      %v1366 = vmul.f32 %v940, 0.1
      %v1367 = vmul.f32 %v945, 0.1
      %v1368 = vmul.f32 %v950, 0.1
      %v1369 = vmul.f32 %v955, 0.1
      %v1370 = vmul.f32 %v960, 0.1
      %v1371 = vmul.f32 %v965, 0.1
      %v1372 = vmul.f32 %v970, 0.1
      %v1373 = vmul.f32 %v975, 0.1
      %v1374 = vmul.f32 %v980, 0.1
      %v1375 = vmul.f32 %v985, 0.1
      %v1376 = vmul.f32 %v990, 0.1
      %v1377 = vmul.f32 %v995, 0.1
      %v1378 = vmul.f32 %v1000, 0.1
      %v1379 = vmul.f32 %v1005, 0.1
      %v1380 = vmul.f32 %v1010, 0.1
      %v1381 = vmul.f32 %v1015, 0.1
      %v1382 = vmul.f32 %v1020, 0.1
      %v1383 = vmul.f32 %v1025, 0.1
      %v1384 = vmul.f32 %v1030, 0.1
      %v1385 = vmul.f32 %v1035, 0.1
      %v1386 = vmul.f32 %v1040, 0.1
      %v1387 = vmul.f32 %v1045, 0.1
      %v1388 = vmul.f32 %v1050, 0.1
      %v1389 = vmul.f32 %v1055, 0.1
      %v1390 = vmul.f32 %v1060, 0.1
      %v1391 = vmul.f32 %v1065, 0.1
      %v1392 = vmul.f32 %v1070, 0.1
      %v1393 = vmul.f32 %v1075, 0.1
      %v1394 = vmul.f32 %v1080, 0.1
      %v1395 = vmul.f32 %v1085, 0.1
      %v1396 = vmul.f32 %v1090, 0.1
      %v1397 = vmul.f32 %v1095, 0.1
      %v1398 = vmul.f32 %v1100, 0.1
      %v1399 = vmul.f32 %v1105, 0.1
      %v1400 = vmul.f32 %v1110, 0.1
      %v1401 = vmul.f32 %v1115, 0.1
      %v1402 = vmul.f32 %v1120, 0.1
      %v1403 = vmul.f32 %v1125, 0.1
      %v1404 = vmul.f32 %v1130, 0.1
      %v1405 = vmul.f32 %v1135, 0.1
      %v1406 = vmul.f32 %v1140, 0.1
      %v1407 = vmul.f32 %v1145, 0.1
      %v1408 = vmul.f32 %v1150, 0.1
      %v1409 = vmul.f32 %v1155, 0.1
      %v1410 = vmul.f32 %v1160, 0.1
      %v1411 = vmul.f32 %v1165, 0.1
      %v1412 = vmul.f32 %v1170, 0.1
      %v1413 = vmul.f32 %v1175, 0.1
      %v1414 = vmul.f32 %v1180, 0.1
      %v1415 = vmul.f32 %v1185, 0.1
      %v1416 = vmul.f32 %v1190, 0.1
      %v1417 = vmul.f32 %v1195, 0.1
      %v1418 = vmul.f32 %v1200, 0.1
      %v1419 = vmul.f32 %v1205, 0.1
      %v1420 = vsel %vm1208, %v680, %v1314
      %v1421 = vsel %vm1209, %v685, %v1315
      %v1422 = vsel %vm1210, %v690, %v1316
      %v1423 = vsel %vm1211, %v695, %v1317
      %v1424 = vsel %vm1212, %v700, %v1318
      %v1425 = vsel %vm1213, %v705, %v1319
      %v1426 = vsel %vm1214, %v710, %v1320
      %v1427 = vsel %vm1215, %v715, %v1321
      %v1428 = vsel %vm1216, %v720, %v1322
      %v1429 = vsel %vm1217, %v725, %v1323
      %v1430 = vsel %vm1218, %v730, %v1324
      %v1431 = vsel %vm1219, %v735, %v1325
      %v1432 = vsel %vm1220, %v740, %v1326
      %v1433 = vsel %vm1221, %v745, %v1327
      %v1434 = vsel %vm1222, %v750, %v1328
      %v1435 = vsel %vm1223, %v755, %v1329
      %v1436 = vsel %vm1224, %v760, %v1330
      %v1437 = vsel %vm1225, %v765, %v1331
      %v1438 = vsel %vm1226, %v770, %v1332
      %v1439 = vsel %vm1227, %v775, %v1333
      %v1440 = vsel %vm1228, %v780, %v1334
      %v1441 = vsel %vm1229, %v785, %v1335
      %v1442 = vsel %vm1230, %v790, %v1336
      %v1443 = vsel %vm1231, %v795, %v1337
      %v1444 = vsel %vm1232, %v800, %v1338
      %v1445 = vsel %vm1233, %v805, %v1339
      %v1446 = vsel %vm1234, %v810, %v1340
      %v1447 = vsel %vm1235, %v815, %v1341
      %v1448 = vsel %vm1236, %v820, %v1342
      %v1449 = vsel %vm1237, %v825, %v1343
      %v1450 = vsel %vm1238, %v830, %v1344
      %v1451 = vsel %vm1239, %v835, %v1345
      %v1452 = vsel %vm1240, %v840, %v1346
      %v1453 = vsel %vm1241, %v845, %v1347
      %v1454 = vsel %vm1242, %v850, %v1348
      %v1455 = vsel %vm1243, %v855, %v1349
      %v1456 = vsel %vm1244, %v860, %v1350
      %v1457 = vsel %vm1245, %v865, %v1351
      %v1458 = vsel %vm1246, %v870, %v1352
      %v1459 = vsel %vm1247, %v875, %v1353
      %v1460 = vsel %vm1248, %v880, %v1354
      %v1461 = vsel %vm1249, %v885, %v1355
      %v1462 = vsel %vm1250, %v890, %v1356
      %v1463 = vsel %vm1251, %v895, %v1357
      %v1464 = vsel %vm1252, %v900, %v1358
      %v1465 = vsel %vm1253, %v905, %v1359
      %v1466 = vsel %vm1254, %v910, %v1360
      %v1467 = vsel %vm1255, %v915, %v1361
      %v1468 = vsel %vm1256, %v920, %v1362
      %v1469 = vsel %vm1257, %v925, %v1363
      %v1470 = vsel %vm1258, %v930, %v1364
      %v1471 = vsel %vm1259, %v935, %v1365
      %v1472 = vsel %vm1260, %v940, %v1366
      %v1473 = vsel %vm1261, %v945, %v1367
      %v1474 = vsel %vm1262, %v950, %v1368
      %v1475 = vsel %vm1263, %v955, %v1369
      %v1476 = vsel %vm1264, %v960, %v1370
      %v1477 = vsel %vm1265, %v965, %v1371
      %v1478 = vsel %vm1266, %v970, %v1372
      %v1479 = vsel %vm1267, %v975, %v1373
      %v1480 = vsel %vm1268, %v980, %v1374
      %v1481 = vsel %vm1269, %v985, %v1375
      %v1482 = vsel %vm1270, %v990, %v1376
      %v1483 = vsel %vm1271, %v995, %v1377
      %v1484 = vsel %vm1272, %v1000, %v1378
      %v1485 = vsel %vm1273, %v1005, %v1379
      %v1486 = vsel %vm1274, %v1010, %v1380
      %v1487 = vsel %vm1275, %v1015, %v1381
      %v1488 = vsel %vm1276, %v1020, %v1382
      %v1489 = vsel %vm1277, %v1025, %v1383
      %v1490 = vsel %vm1278, %v1030, %v1384
      %v1491 = vsel %vm1279, %v1035, %v1385
      %v1492 = vsel %vm1280, %v1040, %v1386
      %v1493 = vsel %vm1281, %v1045, %v1387
      %v1494 = vsel %vm1282, %v1050, %v1388
      %v1495 = vsel %vm1283, %v1055, %v1389
      %v1496 = vsel %vm1284, %v1060, %v1390
      %v1497 = vsel %vm1285, %v1065, %v1391
      %v1498 = vsel %vm1286, %v1070, %v1392
      %v1499 = vsel %vm1287, %v1075, %v1393
      %v1500 = vsel %vm1288, %v1080, %v1394
      %v1501 = vsel %vm1289, %v1085, %v1395
      %v1502 = vsel %vm1290, %v1090, %v1396
      %v1503 = vsel %vm1291, %v1095, %v1397
      %v1504 = vsel %vm1292, %v1100, %v1398
      %v1505 = vsel %vm1293, %v1105, %v1399
      %v1506 = vsel %vm1294, %v1110, %v1400
      %v1507 = vsel %vm1295, %v1115, %v1401
      %v1508 = vsel %vm1296, %v1120, %v1402
      %v1509 = vsel %vm1297, %v1125, %v1403
      %v1510 = vsel %vm1298, %v1130, %v1404
      %v1511 = vsel %vm1299, %v1135, %v1405
      %v1512 = vsel %vm1300, %v1140, %v1406
      %v1513 = vsel %vm1301, %v1145, %v1407
      %v1514 = vsel %vm1302, %v1150, %v1408
      %v1515 = vsel %vm1303, %v1155, %v1409
      %v1516 = vsel %vm1304, %v1160, %v1410
      %v1517 = vsel %vm1305, %v1165, %v1411
      %v1518 = vsel %vm1306, %v1170, %v1412
      %v1519 = vsel %vm1307, %v1175, %v1413
      %v1520 = vsel %vm1308, %v1180, %v1414
      %v1521 = vsel %vm1309, %v1185, %v1415
      %v1522 = vsel %vm1310, %v1190, %v1416
      %v1523 = vsel %vm1311, %v1195, %v1417
      %v1524 = vsel %vm1312, %v1200, %v1418
      %v1525 = vsel %vm1313, %v1205, %v1419
      %1526 = vst [vmem:[%s172] sm:$0xff] %v1420
      %1527 = vst [vmem:[%s172 + $0x8] sm:$0xff] %v1421
      %1528 = vst [vmem:[%s172 + $0x10] sm:$0xff] %v1422
      %1529 = vst [vmem:[%s172 + $0x18] sm:$0xff] %v1423
      %1530 = vst [vmem:[%s172 + $0x20] sm:$0xff] %v1424
      %1531 = vst [vmem:[%s172 + $0x28] sm:$0xff] %v1425
      %1532 = vst [vmem:[%s172 + $0x30] sm:$0xff] %v1426
      %1533 = vst [vmem:[%s172 + $0x38] sm:$0xff] %v1427
      %1534 = vst [vmem:[%s172 + $0x40] sm:$0xff] %v1428
      %1535 = vst [vmem:[%s172 + $0x48] sm:$0xff] %v1429
      %1536 = vst [vmem:[%s172 + $0x50] sm:$0xff] %v1430
      %1537 = vst [vmem:[%s172 + $0x58] sm:$0xff] %v1431
      %1538 = vst [vmem:[%s172 + $0x60] sm:$0xff] %v1432
      %1539 = vst [vmem:[%s172 + $0x68] sm:$0xff] %v1433
      %1540 = vst [vmem:[%s172 + $0x70] sm:$0xff] %v1434
      %1541 = vst [vmem:[%s172 + $0x78] sm:$0xff] %v1435
      %1542 = vst [vmem:[%s172 + $0x80] sm:$0xff] %v1436
      %1543 = vst [vmem:[%s172 + $0x88] sm:$0xff] %v1437
      %1544 = vst [vmem:[%s172 + $0x90] sm:$0xff] %v1438
      %1545 = vst [vmem:[%s172 + $0x98] sm:$0xff] %v1439
      %1546 = vst [vmem:[%s172 + $0xa0] sm:$0xff] %v1440
      %1547 = vst [vmem:[%s172 + $0xa8] sm:$0xff] %v1441
      %1548 = vst [vmem:[%s172 + $0xb0] sm:$0xff] %v1442
      %1549 = vst [vmem:[%s172 + $0xb8] sm:$0xff] %v1443
      %1550 = vst [vmem:[%s172 + $0xc0] sm:$0xff] %v1444
      %1551 = vst [vmem:[%s172 + $0xc8] sm:$0xff] %v1445
      %1552 = vst [vmem:[%s172 + $0xd0] sm:$0xff] %v1446
      %1553 = vst [vmem:[%s172 + $0xd8] sm:$0xff] %v1447
      %1554 = vst [vmem:[%s172 + $0xe0] sm:$0xff] %v1448
      %1555 = vst [vmem:[%s172 + $0xe8] sm:$0xff] %v1449
      %1556 = vst [vmem:[%s172 + $0xf0] sm:$0xff] %v1450
      %1557 = vst [vmem:[%s172 + $0xf8] sm:$0xff] %v1451
      %1558 = vst [vmem:[%s172 + $0x100] sm:$0xff] %v1452
      %1559 = vst [vmem:[%s172 + $0x108] sm:$0xff] %v1453
      %1560 = vst [vmem:[%s172 + $0x110] sm:$0xff] %v1454
      %1561 = vst [vmem:[%s172 + $0x118] sm:$0xff] %v1455
      %1562 = vst [vmem:[%s172 + $0x120] sm:$0xff] %v1456
      %1563 = vst [vmem:[%s172 + $0x128] sm:$0xff] %v1457
      %1564 = vst [vmem:[%s172 + $0x130] sm:$0xff] %v1458
      %1565 = vst [vmem:[%s172 + $0x138] sm:$0xff] %v1459
      %1566 = vst [vmem:[%s172 + $0x140] sm:$0xff] %v1460
      %1567 = vst [vmem:[%s172 + $0x148] sm:$0xff] %v1461
      %1568 = vst [vmem:[%s172 + $0x150] sm:$0xff] %v1462
      %1569 = vst [vmem:[%s172 + $0x158] sm:$0xff] %v1463
      %1570 = vst [vmem:[%s172 + $0x160] sm:$0xff] %v1464
      %1571 = vst [vmem:[%s172 + $0x168] sm:$0xff] %v1465
      %1572 = vst [vmem:[%s172 + $0x170] sm:$0xff] %v1466
      %1573 = vst [vmem:[%s172 + $0x178] sm:$0xff] %v1467
      %1574 = vst [vmem:[%s172 + $0x180] sm:$0xff] %v1468
      %1575 = vst [vmem:[%s172 + $0x188] sm:$0xff] %v1469
      %1576 = vst [vmem:[%s172 + $0x190] sm:$0xff] %v1470
      %1577 = vst [vmem:[%s172 + $0x198] sm:$0xff] %v1471
      %1578 = vst [vmem:[%s172 + $0x1a0] sm:$0xff] %v1472
      %1579 = vst [vmem:[%s172 + $0x1a8] sm:$0xff] %v1473
      %1580 = vst [vmem:[%s172 + $0x1b0] sm:$0xff] %v1474
      %1581 = vst [vmem:[%s172 + $0x1b8] sm:$0xff] %v1475
      %1582 = vst [vmem:[%s172 + $0x1c0] sm:$0xff] %v1476
      %1583 = vst [vmem:[%s172 + $0x1c8] sm:$0xff] %v1477
      %1584 = vst [vmem:[%s172 + $0x1d0] sm:$0xff] %v1478
      %1585 = vst [vmem:[%s172 + $0x1d8] sm:$0xff] %v1479
      %1586 = vst [vmem:[%s172 + $0x1e0] sm:$0xff] %v1480
      %1587 = vst [vmem:[%s172 + $0x1e8] sm:$0xff] %v1481
      %1588 = vst [vmem:[%s172 + $0x1f0] sm:$0xff] %v1482
      %1589 = vst [vmem:[%s172 + $0x1f8] sm:$0xff] %v1483
      %1590 = vst [vmem:[%s172 + $0x200] sm:$0xff] %v1484
      %1591 = vst [vmem:[%s172 + $0x208] sm:$0xff] %v1485
      %1592 = vst [vmem:[%s172 + $0x210] sm:$0xff] %v1486
      %1593 = vst [vmem:[%s172 + $0x218] sm:$0xff] %v1487
      %1594 = vst [vmem:[%s172 + $0x220] sm:$0xff] %v1488
      %1595 = vst [vmem:[%s172 + $0x228] sm:$0xff] %v1489
      %1596 = vst [vmem:[%s172 + $0x230] sm:$0xff] %v1490
      %1597 = vst [vmem:[%s172 + $0x238] sm:$0xff] %v1491
      %1598 = vst [vmem:[%s172 + $0x240] sm:$0xff] %v1492
      %1599 = vst [vmem:[%s172 + $0x248] sm:$0xff] %v1493
      %1600 = vst [vmem:[%s172 + $0x250] sm:$0xff] %v1494
      %1601 = vst [vmem:[%s172 + $0x258] sm:$0xff] %v1495
      %1602 = vst [vmem:[%s172 + $0x260] sm:$0xff] %v1496
      %1603 = vst [vmem:[%s172 + $0x268] sm:$0xff] %v1497
      %1604 = vst [vmem:[%s172 + $0x270] sm:$0xff] %v1498
      %1605 = vst [vmem:[%s172 + $0x278] sm:$0xff] %v1499
      %1606 = vst [vmem:[%s172 + $0x280] sm:$0xff] %v1500
      %1607 = vst [vmem:[%s172 + $0x288] sm:$0xff] %v1501
      %1608 = vst [vmem:[%s172 + $0x290] sm:$0xff] %v1502
      %1609 = vst [vmem:[%s172 + $0x298] sm:$0xff] %v1503
      %1610 = vst [vmem:[%s172 + $0x2a0] sm:$0xff] %v1504
      %1611 = vst [vmem:[%s172 + $0x2a8] sm:$0xff] %v1505
      %1612 = vst [vmem:[%s172 + $0x2b0] sm:$0xff] %v1506
      %1613 = vst [vmem:[%s172 + $0x2b8] sm:$0xff] %v1507
      %1614 = vst [vmem:[%s172 + $0x2c0] sm:$0xff] %v1508
      %1615 = vst [vmem:[%s172 + $0x2c8] sm:$0xff] %v1509
      %1616 = vst [vmem:[%s172 + $0x2d0] sm:$0xff] %v1510
      %1617 = vst [vmem:[%s172 + $0x2d8] sm:$0xff] %v1511
      %1618 = vst [vmem:[%s172 + $0x2e0] sm:$0xff] %v1512
      %1619 = vst [vmem:[%s172 + $0x2e8] sm:$0xff] %v1513
      %1620 = vst [vmem:[%s172 + $0x2f0] sm:$0xff] %v1514
      %1621 = vst [vmem:[%s172 + $0x2f8] sm:$0xff] %v1515
      %1622 = vst [vmem:[%s172 + $0x300] sm:$0xff] %v1516
      %1623 = vst [vmem:[%s172 + $0x308] sm:$0xff] %v1517
      %1624 = vst [vmem:[%s172 + $0x310] sm:$0xff] %v1518
      %1625 = vst [vmem:[%s172 + $0x318] sm:$0xff] %v1519
      %1626 = vst [vmem:[%s172 + $0x320] sm:$0xff] %v1520
      %1627 = vst [vmem:[%s172 + $0x328] sm:$0xff] %v1521
      %1628 = vst [vmem:[%s172 + $0x330] sm:$0xff] %v1522
      %1629 = vst [vmem:[%s172 + $0x338] sm:$0xff] %v1523
      %1630 = vst [vmem:[%s172 + $0x340] sm:$0xff] %v1524
      %1631 = vst [vmem:[%s172 + $0x348] sm:$0xff] %v1525
      %s1632 = smul.u32 106, %s14
      %p1633 = scmp.lt.s32.totalorder %s1632, 211
      %s1634 = scalar_select %p1633, %s1632, 211
      %s1635 = smul.addr %s1634, 8
      %s1636 = scalar_lea.vmem %s3, %s1635
      // Predicated region
      $region33: #{voxaenet_forward.3} parent=31 // pred_check
        %p1637 = pneg %p100
      $region34: #{voxaenet_forward.3} parent=31 // pred_check_branch
        %1639 = sbr.rel (%p1637) target = $region36
      $region35: #{voxaenet_forward.3} parent=31 // pred_region
        %s1640 = smul.u32 106, %s14
      $region36: #{voxaenet_forward.3} parent=31 // pred_fallthru
        _
    $region32: #{voxaenet_forward.3} parent=5 // pred_fallthru
      _
    %p1641 = scmp.le.s32.totalorder 2, %s9
    // Predicated region
    $region37: #{voxaenet_forward.3} parent=5 // pred_check
      %p1642 = pneg %p1641
    $region38: #{voxaenet_forward.3} parent=5 // pred_check_branch
      %1644 = sbr.rel (%p1642) target = $region40
    $region39: #{voxaenet_forward.3} parent=5 // pred_region
      %s1645 = ssub.s32 %s9, 2
      // Predicated region
      $region41: #{voxaenet_forward.3} parent=39 // pred_check
        %p1646 = pneg %p106
      $region42: #{voxaenet_forward.3} parent=39 // pred_check_branch
        %1648 = sbr.rel (%p1646) target = $region44
      $region43: #{voxaenet_forward.3} parent=39 // pred_region
        %s1649 = smul.u32 106, %s15
        %p1650 = scmp.lt.s32.totalorder %s1649, 211
        %s1651 = scalar_select %p1650, %s1649, 211
        %s1652 = smul.addr %s1651, 8
        %s1653 = scalar_lea.vmem %s3, %s1652
      $region44: #{voxaenet_forward.3} parent=39 // pred_fallthru
        _
    $region40: #{voxaenet_forward.3} parent=5 // pred_fallthru
      _
  $region6: #{voxaenet_forward.3} parent=0 // loop_footer
    %s13 = sadd.s32 1, %s9
  $region7: #{voxaenet_forward.3} parent=0 // loop_footer_branch
    %8 = sbr.rel target = $region3
  $region8: #{voxaenet_forward.3} parent=0 // loop_exit
    _

// kernel: voxaenet_forward.5
$region0: #{voxaenet_forward.5}
  #allocation0 [shape = 'u32[]', space=smem, size = 0x4, offset = 0x4, fixed_abs, tag = 'smem constant byte address 0x4 - core index']
  #allocation1 [shape = 'u32[144,128]{1,0:T(1,128)}', space=vmem, size = 0x12000, scoped, tag = 'internal scratch']
  %s0 = inlined_call_operand.vmem [shape: f32[4,8,576], index: 0, kind: input, shape index: {}]
  %s1 = inlined_call_operand.vmem [shape: f32[576,128], index: 1, kind: input, shape index: {}]
  %s2 = inlined_call_operand.vmem [shape: f32[1,128], index: 2, kind: input, shape index: {}]
  %s3 = inlined_call_operand.vmem [shape: f32[128,64], index: 3, kind: input, shape index: {}]
  %s4 = inlined_call_operand.vmem [shape: f32[1,64], index: 4, kind: input, shape index: {}]
  %s5 = inlined_call_operand.vmem [shape: f32[64,32], index: 5, kind: input, shape index: {}]
  %s6 = inlined_call_operand.vmem [shape: f32[1,32], index: 6, kind: input, shape index: {}]
  %s7 = inlined_call_operand.vmem [shape: f32[8,32], index: 7, kind: output, shape index: {}]
  %s8 = sld [smem:[#allocation0]]
  $region38: #{voxaenet_forward.5} parent=0
    _
  %s10 = ssub.s32 1, %s8
  %s11 = scalar_select 0, %s10, %s8
  // Predicated region
  $region2: #{voxaenet_forward.5} parent=0 // pred_check
    _
  $region3: #{voxaenet_forward.5} parent=0 // pred_check_branch
    %13 = sbr.rel (0) target = $region5
  $region4: #{voxaenet_forward.5} parent=0 // pred_region
    _
  $region5: #{voxaenet_forward.5} parent=0 // pred_fallthru
    _
  // Predicated region
  $region6: #{voxaenet_forward.5} parent=0 // pred_check
    _
  $region7: #{voxaenet_forward.5} parent=0 // pred_check_branch
    %15 = sbr.rel (0) target = $region9
  $region8: #{voxaenet_forward.5} parent=0 // pred_region
    _
  $region9: #{voxaenet_forward.5} parent=0 // pred_fallthru
    _
  // Predicated region
  $region10: #{voxaenet_forward.5} parent=0 // pred_check
    _
  $region11: #{voxaenet_forward.5} parent=0 // pred_check_branch
    %17 = sbr.rel (0) target = $region13
  $region12: #{voxaenet_forward.5} parent=0 // pred_region
    _
  $region13: #{voxaenet_forward.5} parent=0 // pred_fallthru
    _
  // Predicated region
  $region14: #{voxaenet_forward.5} parent=0 // pred_check
    _
  $region15: #{voxaenet_forward.5} parent=0 // pred_check_branch
    %19 = sbr.rel (0) target = $region17
  $region16: #{voxaenet_forward.5} parent=0 // pred_region
    _
  $region17: #{voxaenet_forward.5} parent=0 // pred_fallthru
    _
  // Predicated region
  $region18: #{voxaenet_forward.5} parent=0 // pred_check
    _
  $region19: #{voxaenet_forward.5} parent=0 // pred_check_branch
    %21 = sbr.rel (0) target = $region21
  $region20: #{voxaenet_forward.5} parent=0 // pred_region
    _
  $region21: #{voxaenet_forward.5} parent=0 // pred_fallthru
    _
  // Predicated region
  $region22: #{voxaenet_forward.5} parent=0 // pred_check
    _
  $region23: #{voxaenet_forward.5} parent=0 // pred_check_branch
    %23 = sbr.rel (0) target = $region25
  $region24: #{voxaenet_forward.5} parent=0 // pred_region
    _
  $region25: #{voxaenet_forward.5} parent=0 // pred_fallthru
    _
  // Predicated region
  $region26: #{voxaenet_forward.5} parent=0 // pred_check
    _
  $region27: #{voxaenet_forward.5} parent=0 // pred_check_branch
    %25 = sbr.rel (0) target = $region29
  $region28: #{voxaenet_forward.5} parent=0 // pred_region
    _
  $region29: #{voxaenet_forward.5} parent=0 // pred_fallthru
    _
  %v26 = vld [vmem:[%s1] sm:$0xff]
  %v27 = vld [vmem:[%s1 + $0x8] sm:$0xff]
  %v28 = vld [vmem:[%s1 + $0x10] sm:$0xff]
  %v29 = vld [vmem:[%s1 + $0x18] sm:$0xff]
  %v30 = vld [vmem:[%s1 + $0x20] sm:$0xff]
  %v31 = vld [vmem:[%s1 + $0x28] sm:$0xff]
  %v32 = vld [vmem:[%s1 + $0x30] sm:$0xff]
  %v33 = vld [vmem:[%s1 + $0x38] sm:$0xff]
  %v34 = vld [vmem:[%s1 + $0x40] sm:$0xff]
  %v35 = vld [vmem:[%s1 + $0x48] sm:$0xff]
  %v36 = vld [vmem:[%s1 + $0x50] sm:$0xff]
  %v37 = vld [vmem:[%s1 + $0x58] sm:$0xff]
  %v38 = vld [vmem:[%s1 + $0x60] sm:$0xff]
  %v39 = vld [vmem:[%s1 + $0x68] sm:$0xff]
  %v40 = vld [vmem:[%s1 + $0x70] sm:$0xff]
  %v41 = vld [vmem:[%s1 + $0x78] sm:$0xff]
  %v42 = vld [vmem:[%s1 + $0x80] sm:$0xff]
  %v43 = vld [vmem:[%s1 + $0x88] sm:$0xff]
  %v44 = vld [vmem:[%s1 + $0x90] sm:$0xff]
  %v45 = vld [vmem:[%s1 + $0x98] sm:$0xff]
  %v46 = vld [vmem:[%s1 + $0xa0] sm:$0xff]
  %v47 = vld [vmem:[%s1 + $0xa8] sm:$0xff]
  %v48 = vld [vmem:[%s1 + $0xb0] sm:$0xff]
  %v49 = vld [vmem:[%s1 + $0xb8] sm:$0xff]
  %v50 = vld [vmem:[%s1 + $0xc0] sm:$0xff]
  %v51 = vld [vmem:[%s1 + $0xc8] sm:$0xff]
  %v52 = vld [vmem:[%s1 + $0xd0] sm:$0xff]
  %v53 = vld [vmem:[%s1 + $0xd8] sm:$0xff]
  %v54 = vld [vmem:[%s1 + $0xe0] sm:$0xff]
  %v55 = vld [vmem:[%s1 + $0xe8] sm:$0xff]
  %v56 = vld [vmem:[%s1 + $0xf0] sm:$0xff]
  %v57 = vld [vmem:[%s1 + $0xf8] sm:$0xff]
  %v58 = vld [vmem:[%s1 + $0x100] sm:$0xff]
  %v59 = vld [vmem:[%s1 + $0x108] sm:$0xff]
  %v60 = vld [vmem:[%s1 + $0x110] sm:$0xff]
  %v61 = vld [vmem:[%s1 + $0x118] sm:$0xff]
  %v62 = vld [vmem:[%s1 + $0x120] sm:$0xff]
  %v63 = vld [vmem:[%s1 + $0x128] sm:$0xff]
  %v64 = vld [vmem:[%s1 + $0x130] sm:$0xff]
  %v65 = vld [vmem:[%s1 + $0x138] sm:$0xff]
  %v66 = vld [vmem:[%s1 + $0x140] sm:$0xff]
  %v67 = vld [vmem:[%s1 + $0x148] sm:$0xff]
  %v68 = vld [vmem:[%s1 + $0x150] sm:$0xff]
  %v69 = vld [vmem:[%s1 + $0x158] sm:$0xff]
  %v70 = vld [vmem:[%s1 + $0x160] sm:$0xff]
  %v71 = vld [vmem:[%s1 + $0x168] sm:$0xff]
  %v72 = vld [vmem:[%s1 + $0x170] sm:$0xff]
  %v73 = vld [vmem:[%s1 + $0x178] sm:$0xff]
  %v74 = vld [vmem:[%s1 + $0x180] sm:$0xff]
  %v75 = vld [vmem:[%s1 + $0x188] sm:$0xff]
  %v76 = vld [vmem:[%s1 + $0x190] sm:$0xff]
  %v77 = vld [vmem:[%s1 + $0x198] sm:$0xff]
  %v78 = vld [vmem:[%s1 + $0x1a0] sm:$0xff]
  %v79 = vld [vmem:[%s1 + $0x1a8] sm:$0xff]
  %v80 = vld [vmem:[%s1 + $0x1b0] sm:$0xff]
  %v81 = vld [vmem:[%s1 + $0x1b8] sm:$0xff]
  %v82 = vld [vmem:[%s1 + $0x1c0] sm:$0xff]
  %v83 = vld [vmem:[%s1 + $0x1c8] sm:$0xff]
  %v84 = vld [vmem:[%s1 + $0x1d0] sm:$0xff]
  %v85 = vld [vmem:[%s1 + $0x1d8] sm:$0xff]
  %v86 = vld [vmem:[%s1 + $0x1e0] sm:$0xff]
  %v87 = vld [vmem:[%s1 + $0x1e8] sm:$0xff]
  %v88 = vld [vmem:[%s1 + $0x1f0] sm:$0xff]
  %v89 = vld [vmem:[%s1 + $0x1f8] sm:$0xff]
  %v90 = vld [vmem:[%s1 + $0x200] sm:$0xff]
  %v91 = vld [vmem:[%s1 + $0x208] sm:$0xff]
  %v92 = vld [vmem:[%s1 + $0x210] sm:$0xff]
  %v93 = vld [vmem:[%s1 + $0x218] sm:$0xff]
  %v94 = vld [vmem:[%s1 + $0x220] sm:$0xff]
  %v95 = vld [vmem:[%s1 + $0x228] sm:$0xff]
  %v96 = vld [vmem:[%s1 + $0x230] sm:$0xff]
  %v97 = vld [vmem:[%s1 + $0x238] sm:$0xff]
  %v98 = vld [vmem:[%s2] sm:$0x1]
  %v99 = vld [vmem:[%s0] sm:$0xff]
  %v100 = vld [vmem:[%s0 + $0x8] sm:$0xff]
  %v101 = vld [vmem:[%s0 + $0x10] sm:$0xff]
  %v102 = vld [vmem:[%s0 + $0x18] sm:$0xff]
  %v103 = vld [vmem:[%s0 + $0x20] sm:$0xff]
  %v105 = vlaneseq
  %v106 = vshrl.u32 %v105, 7
  %v107 = vsub.s32 0, %v106
  %v108 = vrot.slane %v98, %v107
  %vm110 = vcmask 523264
  %v112 = vsel %vm110, %v103, 0
  %114 = vmatprep.subr.mxu0 0.0
  %115 = vmatpush1.msra.mxu0 %v41
  %116 = vmatprep.subr.mxu0 0.0
  %117 = vmatpush1.msra.mxu0 %v40
  %118 = vmatprep.subr.mxu0 0.0
  %119 = vmatpush1.msra.mxu0 %v39
  %120 = vmatprep.subr.mxu0 0.0
  %121 = vmatpush1.msra.mxu0 %v38
  %122 = vmatprep.subr.mxu0 0.0
  %123 = vmatpush1.msra.mxu0 %v37
  %124 = vmatprep.subr.mxu0 0.0
  %125 = vmatpush1.msra.mxu0 %v36
  %126 = vmatprep.subr.mxu0 0.0
  %127 = vmatpush1.msra.mxu0 %v35
  %128 = vmatprep.subr.mxu0 0.0
  %129 = vmatpush1.msra.mxu0 %v34
  %130 = vmatprep.subr.mxu0 0.0
  %131 = vmatpush1.msra.mxu0 %v33
  %132 = vmatprep.subr.mxu0 0.0
  %133 = vmatpush1.msra.mxu0 %v32
  %134 = vmatprep.subr.mxu0 0.0
  %135 = vmatpush1.msra.mxu0 %v31
  %136 = vmatprep.subr.mxu0 0.0
  %137 = vmatpush1.msra.mxu0 %v30
  %138 = vmatprep.subr.mxu0 0.0
  %139 = vmatpush1.msra.mxu0 %v29
  %140 = vmatprep.subr.mxu0 0.0
  %141 = vmatpush1.msra.mxu0 %v28
  %142 = vmatprep.subr.mxu0 0.0
  %143 = vmatpush1.msra.mxu0 %v27
  %144 = vmatprep.subr.mxu0 0.0
  %145 = vmatpush1.msra.mxu0 %v26
  %146 = vmatprep.subr.mxu0 0.0
  %147 = vmatpush2.msra.mxu0 %v57
  %148 = vmatprep.subr.mxu0 0.0
  %149 = vmatpush2.msra.mxu0 %v56
  %150 = vmatprep.subr.mxu0 0.0
  %151 = vmatpush2.msra.mxu0 %v55
  %152 = vmatprep.subr.mxu0 0.0
  %153 = vmatpush2.msra.mxu0 %v54
  %154 = vmatprep.subr.mxu0 0.0
  %155 = vmatpush2.msra.mxu0 %v53
  %156 = vmatprep.subr.mxu0 0.0
  %157 = vmatpush2.msra.mxu0 %v52
  %158 = vmatprep.subr.mxu0 0.0
  %159 = vmatpush2.msra.mxu0 %v51
  %160 = vmatprep.subr.mxu0 0.0
  %161 = vmatpush2.msra.mxu0 %v50
  %162 = vmatprep.subr.mxu0 0.0
  %163 = vmatpush2.msra.mxu0 %v49
  %164 = vmatprep.subr.mxu0 0.0
  %165 = vmatpush2.msra.mxu0 %v48
  %166 = vmatprep.subr.mxu0 0.0
  %167 = vmatpush2.msra.mxu0 %v47
  %168 = vmatprep.subr.mxu0 0.0
  %169 = vmatpush2.msra.mxu0 %v46
  %170 = vmatprep.subr.mxu0 0.0
  %171 = vmatpush2.msra.mxu0 %v45
  %172 = vmatprep.subr.mxu0 0.0
  %173 = vmatpush2.msra.mxu0 %v44
  %174 = vmatprep.subr.mxu0 0.0
  %175 = vmatpush2.msra.mxu0 %v43
  %176 = vmatprep.subr.mxu0 0.0
  %177 = vmatpush2.msra.mxu0 %v42
  %178 = vmatprep.mubr.f32.mxu0 %v100
  %179 = vmatmul.mubr.f32.gmra.mxu0 %v99
  %v180 = vpop.f32.mrf.mxu0
  %v181 = vadd.f32 %v108, %v180
  %v182 = vpop.f32.mrf.mxu0
  %183 = vdwg.mxu0
  %184 = vmatprep.subr.mxu0 0.0
  %185 = vmatpush1.msra.mxu0 %v73
  %186 = vmatprep.subr.mxu0 0.0
  %187 = vmatpush1.msra.mxu0 %v72
  %188 = vmatprep.subr.mxu0 0.0
  %189 = vmatpush1.msra.mxu0 %v71
  %190 = vmatprep.subr.mxu0 0.0
  %191 = vmatpush1.msra.mxu0 %v70
  %192 = vmatprep.subr.mxu0 0.0
  %193 = vmatpush1.msra.mxu0 %v69
  %194 = vmatprep.subr.mxu0 0.0
  %195 = vmatpush1.msra.mxu0 %v68
  %196 = vmatprep.subr.mxu0 0.0
  %197 = vmatpush1.msra.mxu0 %v67
  %198 = vmatprep.subr.mxu0 0.0
  %199 = vmatpush1.msra.mxu0 %v66
  %200 = vmatprep.subr.mxu0 0.0
  %201 = vmatpush1.msra.mxu0 %v65
  %202 = vmatprep.subr.mxu0 0.0
  %203 = vmatpush1.msra.mxu0 %v64
  %204 = vmatprep.subr.mxu0 0.0
  %205 = vmatpush1.msra.mxu0 %v63
  %206 = vmatprep.subr.mxu0 0.0
  %207 = vmatpush1.msra.mxu0 %v62
  %208 = vmatprep.subr.mxu0 0.0
  %209 = vmatpush1.msra.mxu0 %v61
  %210 = vmatprep.subr.mxu0 0.0
  %211 = vmatpush1.msra.mxu0 %v60
  %212 = vmatprep.subr.mxu0 0.0
  %213 = vmatpush1.msra.mxu0 %v59
  %214 = vmatprep.subr.mxu0 0.0
  %215 = vmatpush1.msra.mxu0 %v58
  %216 = vmatprep.subr.mxu0 0.0
  %217 = vmatpush2.msra.mxu0 %v89
  %218 = vmatprep.subr.mxu0 0.0
  %219 = vmatpush2.msra.mxu0 %v88
  %220 = vmatprep.subr.mxu0 0.0
  %221 = vmatpush2.msra.mxu0 %v87
  %222 = vmatprep.subr.mxu0 0.0
  %223 = vmatpush2.msra.mxu0 %v86
  %224 = vmatprep.subr.mxu0 0.0
  %225 = vmatpush2.msra.mxu0 %v85
  %226 = vmatprep.subr.mxu0 0.0
  %227 = vmatpush2.msra.mxu0 %v84
  %228 = vmatprep.subr.mxu0 0.0
  %229 = vmatpush2.msra.mxu0 %v83
  %230 = vmatprep.subr.mxu0 0.0
  %231 = vmatpush2.msra.mxu0 %v82
  %232 = vmatprep.subr.mxu0 0.0
  %233 = vmatpush2.msra.mxu0 %v81
  %234 = vmatprep.subr.mxu0 0.0
  %235 = vmatpush2.msra.mxu0 %v80
  %236 = vmatprep.subr.mxu0 0.0
  %237 = vmatpush2.msra.mxu0 %v79
  %238 = vmatprep.subr.mxu0 0.0
  %239 = vmatpush2.msra.mxu0 %v78
  %240 = vmatprep.subr.mxu0 0.0
  %241 = vmatpush2.msra.mxu0 %v77
  %242 = vmatprep.subr.mxu0 0.0
  %243 = vmatpush2.msra.mxu0 %v76
  %244 = vmatprep.subr.mxu0 0.0
  %245 = vmatpush2.msra.mxu0 %v75
  %246 = vmatprep.subr.mxu0 0.0
  %247 = vmatpush2.msra.mxu0 %v74
  %248 = vmatprep.mubr.f32.mxu0 %v102
  %249 = vmatmul.mubr.f32.gmra.mxu0 %v101
  %v250 = vpop.f32.mrf.mxu0
  %v251 = vadd.f32 %v181, %v250
  %v252 = vpop.f32.mrf.mxu0
  %253 = vdwg.mxu0
  %254 = vmatprep.subr.mxu0 0.0
  %255 = vmatpush1.msra.mxu0 0.0
  %256 = vmatprep.subr.mxu0 0.0
  %257 = vmatpush1.msra.mxu0 0.0
  %258 = vmatprep.subr.mxu0 0.0
  %259 = vmatpush1.msra.mxu0 0.0
  %260 = vmatprep.subr.mxu0 0.0
  %261 = vmatpush1.msra.mxu0 0.0
  %262 = vmatprep.subr.mxu0 0.0
  %263 = vmatpush1.msra.mxu0 0.0
  %264 = vmatprep.subr.mxu0 0.0
  %265 = vmatpush1.msra.mxu0 0.0
  %266 = vmatprep.subr.mxu0 0.0
  %267 = vmatpush1.msra.mxu0 0.0
  %268 = vmatprep.subr.mxu0 0.0
  %269 = vmatpush1.msra.mxu0 0.0
  %270 = vmatprep.subr.mxu0 0.0
  %271 = vmatpush1.msra.mxu0 %v97
  %272 = vmatprep.subr.mxu0 0.0
  %273 = vmatpush1.msra.mxu0 %v96
  %274 = vmatprep.subr.mxu0 0.0
  %275 = vmatpush1.msra.mxu0 %v95
  %276 = vmatprep.subr.mxu0 0.0
  %277 = vmatpush1.msra.mxu0 %v94
  %278 = vmatprep.subr.mxu0 0.0
  %279 = vmatpush1.msra.mxu0 %v93
  %280 = vmatprep.subr.mxu0 0.0
  %281 = vmatpush1.msra.mxu0 %v92
  %282 = vmatprep.subr.mxu0 0.0
  %283 = vmatpush1.msra.mxu0 %v91
  %284 = vmatprep.subr.mxu0 0.0
  %285 = vmatpush1.msra.mxu0 %v90
  %286 = vmatprep.subr.mxu0 0.0
  %287 = vmatpush2.msra.mxu0 0.0
  %288 = vmatprep.subr.mxu0 0.0
  %289 = vmatpush2.msra.mxu0 0.0
  %290 = vmatprep.subr.mxu0 0.0
  %291 = vmatpush2.msra.mxu0 0.0
  %292 = vmatprep.subr.mxu0 0.0
  %293 = vmatpush2.msra.mxu0 0.0
  %294 = vmatprep.subr.mxu0 0.0
  %295 = vmatpush2.msra.mxu0 0.0
  %296 = vmatprep.subr.mxu0 0.0
  %297 = vmatpush2.msra.mxu0 0.0
  %298 = vmatprep.subr.mxu0 0.0
  %299 = vmatpush2.msra.mxu0 0.0
  %300 = vmatprep.subr.mxu0 0.0
  %301 = vmatpush2.msra.mxu0 0.0
  %302 = vmatprep.subr.mxu0 0.0
  %303 = vmatpush2.msra.mxu0 0.0
  %304 = vmatprep.subr.mxu0 0.0
  %305 = vmatpush2.msra.mxu0 0.0
  %306 = vmatprep.subr.mxu0 0.0
  %307 = vmatpush2.msra.mxu0 0.0
  %308 = vmatprep.subr.mxu0 0.0
  %309 = vmatpush2.msra.mxu0 0.0
  %310 = vmatprep.subr.mxu0 0.0
  %311 = vmatpush2.msra.mxu0 0.0
  %312 = vmatprep.subr.mxu0 0.0
  %313 = vmatpush2.msra.mxu0 0.0
  %314 = vmatprep.subr.mxu0 0.0
  %315 = vmatpush2.msra.mxu0 0.0
  %316 = vmatprep.subr.mxu0 0.0
  %317 = vmatpush2.msra.mxu0 0.0
  %318 = vmatprep.mubr.f32.mxu0 0.0
  %319 = vmatmul.mubr.f32.gmra.mxu0 %v112
  %v320 = vpop.f32.mrf.mxu0
  %v321 = vadd.f32 %v251, %v320
  %v322 = vpop.f32.mrf.mxu0
  %323 = vdwg.mxu0
  %vm324 = vcmp.gt.f32.partialorder %v321, 0.0
  %v325 = vmul.f32 %v321, 0.1
  %v326 = vsel %vm324, %v321, %v325
  %s327 = scalar_lea.vmem %s0, 40
  %v328 = vld [vmem:[%s327] sm:$0xff]
  %v329 = vld [vmem:[%s327 + $0x8] sm:$0xff]
  %v330 = vld [vmem:[%s327 + $0x10] sm:$0xff]
  %v331 = vld [vmem:[%s327 + $0x18] sm:$0xff]
  %v332 = vld [vmem:[%s327 + $0x20] sm:$0xff]
  %v334 = vsel %vm110, %v332, 0
  %336 = vmatprep.subr.mxu0 0.0
  %337 = vmatpush1.msra.mxu0 %v41
  %338 = vmatprep.subr.mxu0 0.0
  %339 = vmatpush1.msra.mxu0 %v40
  %340 = vmatprep.subr.mxu0 0.0
  %341 = vmatpush1.msra.mxu0 %v39
  %342 = vmatprep.subr.mxu0 0.0
  %343 = vmatpush1.msra.mxu0 %v38
  %344 = vmatprep.subr.mxu0 0.0
  %345 = vmatpush1.msra.mxu0 %v37
  %346 = vmatprep.subr.mxu0 0.0
  %347 = vmatpush1.msra.mxu0 %v36
  %348 = vmatprep.subr.mxu0 0.0
  %349 = vmatpush1.msra.mxu0 %v35
  %350 = vmatprep.subr.mxu0 0.0
  %351 = vmatpush1.msra.mxu0 %v34
  %352 = vmatprep.subr.mxu0 0.0
  %353 = vmatpush1.msra.mxu0 %v33
  %354 = vmatprep.subr.mxu0 0.0
  %355 = vmatpush1.msra.mxu0 %v32
  %356 = vmatprep.subr.mxu0 0.0
  %357 = vmatpush1.msra.mxu0 %v31
  %358 = vmatprep.subr.mxu0 0.0
  %359 = vmatpush1.msra.mxu0 %v30
  %360 = vmatprep.subr.mxu0 0.0
  %361 = vmatpush1.msra.mxu0 %v29
  %362 = vmatprep.subr.mxu0 0.0
  %363 = vmatpush1.msra.mxu0 %v28
  %364 = vmatprep.subr.mxu0 0.0
  %365 = vmatpush1.msra.mxu0 %v27
  %366 = vmatprep.subr.mxu0 0.0
  %367 = vmatpush1.msra.mxu0 %v26
  %368 = vmatprep.subr.mxu0 0.0
  %369 = vmatpush2.msra.mxu0 %v57
  %370 = vmatprep.subr.mxu0 0.0
  %371 = vmatpush2.msra.mxu0 %v56
  %372 = vmatprep.subr.mxu0 0.0
  %373 = vmatpush2.msra.mxu0 %v55
  %374 = vmatprep.subr.mxu0 0.0
  %375 = vmatpush2.msra.mxu0 %v54
  %376 = vmatprep.subr.mxu0 0.0
  %377 = vmatpush2.msra.mxu0 %v53
  %378 = vmatprep.subr.mxu0 0.0
  %379 = vmatpush2.msra.mxu0 %v52
  %380 = vmatprep.subr.mxu0 0.0
  %381 = vmatpush2.msra.mxu0 %v51
  %382 = vmatprep.subr.mxu0 0.0
  %383 = vmatpush2.msra.mxu0 %v50
  %384 = vmatprep.subr.mxu0 0.0
  %385 = vmatpush2.msra.mxu0 %v49
  %386 = vmatprep.subr.mxu0 0.0
  %387 = vmatpush2.msra.mxu0 %v48
  %388 = vmatprep.subr.mxu0 0.0
  %389 = vmatpush2.msra.mxu0 %v47
  %390 = vmatprep.subr.mxu0 0.0
  %391 = vmatpush2.msra.mxu0 %v46
  %392 = vmatprep.subr.mxu0 0.0
  %393 = vmatpush2.msra.mxu0 %v45
  %394 = vmatprep.subr.mxu0 0.0
  %395 = vmatpush2.msra.mxu0 %v44
  %396 = vmatprep.subr.mxu0 0.0
  %397 = vmatpush2.msra.mxu0 %v43
  %398 = vmatprep.subr.mxu0 0.0
  %399 = vmatpush2.msra.mxu0 %v42
  %400 = vmatprep.mubr.f32.mxu0 %v329
  %401 = vmatmul.mubr.f32.gmra.mxu0 %v328
  %v402 = vpop.f32.mrf.mxu0
  %v403 = vadd.f32 %v108, %v402
  %v404 = vpop.f32.mrf.mxu0
  %405 = vdwg.mxu0
  %406 = vmatprep.subr.mxu0 0.0
  %407 = vmatpush1.msra.mxu0 %v73
  %408 = vmatprep.subr.mxu0 0.0
  %409 = vmatpush1.msra.mxu0 %v72
  %410 = vmatprep.subr.mxu0 0.0
  %411 = vmatpush1.msra.mxu0 %v71
  %412 = vmatprep.subr.mxu0 0.0
  %413 = vmatpush1.msra.mxu0 %v70
  %414 = vmatprep.subr.mxu0 0.0
  %415 = vmatpush1.msra.mxu0 %v69
  %416 = vmatprep.subr.mxu0 0.0
  %417 = vmatpush1.msra.mxu0 %v68
  %418 = vmatprep.subr.mxu0 0.0
  %419 = vmatpush1.msra.mxu0 %v67
  %420 = vmatprep.subr.mxu0 0.0
  %421 = vmatpush1.msra.mxu0 %v66
  %422 = vmatprep.subr.mxu0 0.0
  %423 = vmatpush1.msra.mxu0 %v65
  %424 = vmatprep.subr.mxu0 0.0
  %425 = vmatpush1.msra.mxu0 %v64
  %426 = vmatprep.subr.mxu0 0.0
  %427 = vmatpush1.msra.mxu0 %v63
  %428 = vmatprep.subr.mxu0 0.0
  %429 = vmatpush1.msra.mxu0 %v62
  %430 = vmatprep.subr.mxu0 0.0
  %431 = vmatpush1.msra.mxu0 %v61
  %432 = vmatprep.subr.mxu0 0.0
  %433 = vmatpush1.msra.mxu0 %v60
  %434 = vmatprep.subr.mxu0 0.0
  %435 = vmatpush1.msra.mxu0 %v59
  %436 = vmatprep.subr.mxu0 0.0
  %437 = vmatpush1.msra.mxu0 %v58
  %438 = vmatprep.subr.mxu0 0.0
  %439 = vmatpush2.msra.mxu0 %v89
  %440 = vmatprep.subr.mxu0 0.0
  %441 = vmatpush2.msra.mxu0 %v88
  %442 = vmatprep.subr.mxu0 0.0
  %443 = vmatpush2.msra.mxu0 %v87
  %444 = vmatprep.subr.mxu0 0.0
  %445 = vmatpush2.msra.mxu0 %v86
  %446 = vmatprep.subr.mxu0 0.0
  %447 = vmatpush2.msra.mxu0 %v85
  %448 = vmatprep.subr.mxu0 0.0
  %449 = vmatpush2.msra.mxu0 %v84
  %450 = vmatprep.subr.mxu0 0.0
  %451 = vmatpush2.msra.mxu0 %v83
  %452 = vmatprep.subr.mxu0 0.0
  %453 = vmatpush2.msra.mxu0 %v82
  %454 = vmatprep.subr.mxu0 0.0
  %455 = vmatpush2.msra.mxu0 %v81
  %456 = vmatprep.subr.mxu0 0.0
  %457 = vmatpush2.msra.mxu0 %v80
  %458 = vmatprep.subr.mxu0 0.0
  %459 = vmatpush2.msra.mxu0 %v79
  %460 = vmatprep.subr.mxu0 0.0
  %461 = vmatpush2.msra.mxu0 %v78
  %462 = vmatprep.subr.mxu0 0.0
  %463 = vmatpush2.msra.mxu0 %v77
  %464 = vmatprep.subr.mxu0 0.0
  %465 = vmatpush2.msra.mxu0 %v76
  %466 = vmatprep.subr.mxu0 0.0
  %467 = vmatpush2.msra.mxu0 %v75
  %468 = vmatprep.subr.mxu0 0.0
  %469 = vmatpush2.msra.mxu0 %v74
  %470 = vmatprep.mubr.f32.mxu0 %v331
  %471 = vmatmul.mubr.f32.gmra.mxu0 %v330
  %v472 = vpop.f32.mrf.mxu0
  %v473 = vadd.f32 %v403, %v472
  %v474 = vpop.f32.mrf.mxu0
  %475 = vdwg.mxu0
  %476 = vmatprep.subr.mxu0 0.0
  %477 = vmatpush1.msra.mxu0 0.0
  %478 = vmatprep.subr.mxu0 0.0
  %479 = vmatpush1.msra.mxu0 0.0
  %480 = vmatprep.subr.mxu0 0.0
  %481 = vmatpush1.msra.mxu0 0.0
  %482 = vmatprep.subr.mxu0 0.0
  %483 = vmatpush1.msra.mxu0 0.0
  %484 = vmatprep.subr.mxu0 0.0
  %485 = vmatpush1.msra.mxu0 0.0
  %486 = vmatprep.subr.mxu0 0.0
  %487 = vmatpush1.msra.mxu0 0.0
  %488 = vmatprep.subr.mxu0 0.0
  %489 = vmatpush1.msra.mxu0 0.0
  %490 = vmatprep.subr.mxu0 0.0
  %491 = vmatpush1.msra.mxu0 0.0
  %492 = vmatprep.subr.mxu0 0.0
  %493 = vmatpush1.msra.mxu0 %v97
  %494 = vmatprep.subr.mxu0 0.0
  %495 = vmatpush1.msra.mxu0 %v96
  %496 = vmatprep.subr.mxu0 0.0
  %497 = vmatpush1.msra.mxu0 %v95
  %498 = vmatprep.subr.mxu0 0.0
  %499 = vmatpush1.msra.mxu0 %v94
  %500 = vmatprep.subr.mxu0 0.0
  %501 = vmatpush1.msra.mxu0 %v93
  %502 = vmatprep.subr.mxu0 0.0
  %503 = vmatpush1.msra.mxu0 %v92
  %504 = vmatprep.subr.mxu0 0.0
  %505 = vmatpush1.msra.mxu0 %v91
  %506 = vmatprep.subr.mxu0 0.0
  %507 = vmatpush1.msra.mxu0 %v90
  %508 = vmatprep.subr.mxu0 0.0
  %509 = vmatpush2.msra.mxu0 0.0
  %510 = vmatprep.subr.mxu0 0.0
  %511 = vmatpush2.msra.mxu0 0.0
  %512 = vmatprep.subr.mxu0 0.0
  %513 = vmatpush2.msra.mxu0 0.0
  %514 = vmatprep.subr.mxu0 0.0
  %515 = vmatpush2.msra.mxu0 0.0
  %516 = vmatprep.subr.mxu0 0.0
  %517 = vmatpush2.msra.mxu0 0.0
  %518 = vmatprep.subr.mxu0 0.0
  %519 = vmatpush2.msra.mxu0 0.0
  %520 = vmatprep.subr.mxu0 0.0
  %521 = vmatpush2.msra.mxu0 0.0
  %522 = vmatprep.subr.mxu0 0.0
  %523 = vmatpush2.msra.mxu0 0.0
  %524 = vmatprep.subr.mxu0 0.0
  %525 = vmatpush2.msra.mxu0 0.0
  %526 = vmatprep.subr.mxu0 0.0
  %527 = vmatpush2.msra.mxu0 0.0
  %528 = vmatprep.subr.mxu0 0.0
  %529 = vmatpush2.msra.mxu0 0.0
  %530 = vmatprep.subr.mxu0 0.0
  %531 = vmatpush2.msra.mxu0 0.0
  %532 = vmatprep.subr.mxu0 0.0
  %533 = vmatpush2.msra.mxu0 0.0
  %534 = vmatprep.subr.mxu0 0.0
  %535 = vmatpush2.msra.mxu0 0.0
  %536 = vmatprep.subr.mxu0 0.0
  %537 = vmatpush2.msra.mxu0 0.0
  %538 = vmatprep.subr.mxu0 0.0
  %539 = vmatpush2.msra.mxu0 0.0
  %540 = vmatprep.mubr.f32.mxu0 0.0
  %541 = vmatmul.mubr.f32.gmra.mxu0 %v334
  %v542 = vpop.f32.mrf.mxu0
  %v543 = vadd.f32 %v473, %v542
  %v544 = vpop.f32.mrf.mxu0
  %545 = vdwg.mxu0
  %vm546 = vcmp.gt.f32.partialorder %v543, 0.0
  %v547 = vmul.f32 %v543, 0.1
  %v548 = vsel %vm546, %v543, %v547
  %v549 = vmax.f32 %v326, %v548
  %s550 = scalar_lea.vmem %s0, 80
  %v551 = vld [vmem:[%s550] sm:$0xff]
  %v552 = vld [vmem:[%s550 + $0x8] sm:$0xff]
  %v553 = vld [vmem:[%s550 + $0x10] sm:$0xff]
  %v554 = vld [vmem:[%s550 + $0x18] sm:$0xff]
  %v555 = vld [vmem:[%s550 + $0x20] sm:$0xff]
  %v557 = vsel %vm110, %v555, 0
  %559 = vmatprep.subr.mxu0 0.0
  %560 = vmatpush1.msra.mxu0 %v41
  %561 = vmatprep.subr.mxu0 0.0
  %562 = vmatpush1.msra.mxu0 %v40
  %563 = vmatprep.subr.mxu0 0.0
  %564 = vmatpush1.msra.mxu0 %v39
  %565 = vmatprep.subr.mxu0 0.0
  %566 = vmatpush1.msra.mxu0 %v38
  %567 = vmatprep.subr.mxu0 0.0
  %568 = vmatpush1.msra.mxu0 %v37
  %569 = vmatprep.subr.mxu0 0.0
  %570 = vmatpush1.msra.mxu0 %v36
  %571 = vmatprep.subr.mxu0 0.0
  %572 = vmatpush1.msra.mxu0 %v35
  %573 = vmatprep.subr.mxu0 0.0
  %574 = vmatpush1.msra.mxu0 %v34
  %575 = vmatprep.subr.mxu0 0.0
  %576 = vmatpush1.msra.mxu0 %v33
  %577 = vmatprep.subr.mxu0 0.0
  %578 = vmatpush1.msra.mxu0 %v32
  %579 = vmatprep.subr.mxu0 0.0
  %580 = vmatpush1.msra.mxu0 %v31
  %581 = vmatprep.subr.mxu0 0.0
  %582 = vmatpush1.msra.mxu0 %v30
  %583 = vmatprep.subr.mxu0 0.0
  %584 = vmatpush1.msra.mxu0 %v29
  %585 = vmatprep.subr.mxu0 0.0
  %586 = vmatpush1.msra.mxu0 %v28
  %587 = vmatprep.subr.mxu0 0.0
  %588 = vmatpush1.msra.mxu0 %v27
  %589 = vmatprep.subr.mxu0 0.0
  %590 = vmatpush1.msra.mxu0 %v26
  %591 = vmatprep.subr.mxu0 0.0
  %592 = vmatpush2.msra.mxu0 %v57
  %593 = vmatprep.subr.mxu0 0.0
  %594 = vmatpush2.msra.mxu0 %v56
  %595 = vmatprep.subr.mxu0 0.0
  %596 = vmatpush2.msra.mxu0 %v55
  %597 = vmatprep.subr.mxu0 0.0
  %598 = vmatpush2.msra.mxu0 %v54
  %599 = vmatprep.subr.mxu0 0.0
  %600 = vmatpush2.msra.mxu0 %v53
  %601 = vmatprep.subr.mxu0 0.0
  %602 = vmatpush2.msra.mxu0 %v52
  %603 = vmatprep.subr.mxu0 0.0
  %604 = vmatpush2.msra.mxu0 %v51
  %605 = vmatprep.subr.mxu0 0.0
  %606 = vmatpush2.msra.mxu0 %v50
  %607 = vmatprep.subr.mxu0 0.0
  %608 = vmatpush2.msra.mxu0 %v49
  %609 = vmatprep.subr.mxu0 0.0
  %610 = vmatpush2.msra.mxu0 %v48
  %611 = vmatprep.subr.mxu0 0.0
  %612 = vmatpush2.msra.mxu0 %v47
  %613 = vmatprep.subr.mxu0 0.0
  %614 = vmatpush2.msra.mxu0 %v46
  %615 = vmatprep.subr.mxu0 0.0
  %616 = vmatpush2.msra.mxu0 %v45
  %617 = vmatprep.subr.mxu0 0.0
  %618 = vmatpush2.msra.mxu0 %v44
  %619 = vmatprep.subr.mxu0 0.0
  %620 = vmatpush2.msra.mxu0 %v43
  %621 = vmatprep.subr.mxu0 0.0
  %622 = vmatpush2.msra.mxu0 %v42
  %623 = vmatprep.mubr.f32.mxu0 %v552
  %624 = vmatmul.mubr.f32.gmra.mxu0 %v551
  %v625 = vpop.f32.mrf.mxu0
  %v626 = vadd.f32 %v108, %v625
  %v627 = vpop.f32.mrf.mxu0
  %628 = vdwg.mxu0
  %629 = vmatprep.subr.mxu0 0.0
  %630 = vmatpush1.msra.mxu0 %v73
  %631 = vmatprep.subr.mxu0 0.0
  %632 = vmatpush1.msra.mxu0 %v72
  %633 = vmatprep.subr.mxu0 0.0
  %634 = vmatpush1.msra.mxu0 %v71
  %635 = vmatprep.subr.mxu0 0.0
  %636 = vmatpush1.msra.mxu0 %v70
  %637 = vmatprep.subr.mxu0 0.0
  %638 = vmatpush1.msra.mxu0 %v69
  %639 = vmatprep.subr.mxu0 0.0
  %640 = vmatpush1.msra.mxu0 %v68
  %641 = vmatprep.subr.mxu0 0.0
  %642 = vmatpush1.msra.mxu0 %v67
  %643 = vmatprep.subr.mxu0 0.0
  %644 = vmatpush1.msra.mxu0 %v66
  %645 = vmatprep.subr.mxu0 0.0
  %646 = vmatpush1.msra.mxu0 %v65
  %647 = vmatprep.subr.mxu0 0.0
  %648 = vmatpush1.msra.mxu0 %v64
  %649 = vmatprep.subr.mxu0 0.0
  %650 = vmatpush1.msra.mxu0 %v63
  %651 = vmatprep.subr.mxu0 0.0
  %652 = vmatpush1.msra.mxu0 %v62
  %653 = vmatprep.subr.mxu0 0.0
  %654 = vmatpush1.msra.mxu0 %v61
  %655 = vmatprep.subr.mxu0 0.0
  %656 = vmatpush1.msra.mxu0 %v60
  %657 = vmatprep.subr.mxu0 0.0
  %658 = vmatpush1.msra.mxu0 %v59
  %659 = vmatprep.subr.mxu0 0.0
  %660 = vmatpush1.msra.mxu0 %v58
  %661 = vmatprep.subr.mxu0 0.0
  %662 = vmatpush2.msra.mxu0 %v89
  %663 = vmatprep.subr.mxu0 0.0
  %664 = vmatpush2.msra.mxu0 %v88
  %665 = vmatprep.subr.mxu0 0.0
  %666 = vmatpush2.msra.mxu0 %v87
  %667 = vmatprep.subr.mxu0 0.0
  %668 = vmatpush2.msra.mxu0 %v86
  %669 = vmatprep.subr.mxu0 0.0
  %670 = vmatpush2.msra.mxu0 %v85
  %671 = vmatprep.subr.mxu0 0.0
  %672 = vmatpush2.msra.mxu0 %v84
  %673 = vmatprep.subr.mxu0 0.0
  %674 = vmatpush2.msra.mxu0 %v83
  %675 = vmatprep.subr.mxu0 0.0
  %676 = vmatpush2.msra.mxu0 %v82
  %677 = vmatprep.subr.mxu0 0.0
  %678 = vmatpush2.msra.mxu0 %v81
  %679 = vmatprep.subr.mxu0 0.0
  %680 = vmatpush2.msra.mxu0 %v80
  %681 = vmatprep.subr.mxu0 0.0
  %682 = vmatpush2.msra.mxu0 %v79
  %683 = vmatprep.subr.mxu0 0.0
  %684 = vmatpush2.msra.mxu0 %v78
  %685 = vmatprep.subr.mxu0 0.0
  %686 = vmatpush2.msra.mxu0 %v77
  %687 = vmatprep.subr.mxu0 0.0
  %688 = vmatpush2.msra.mxu0 %v76
  %689 = vmatprep.subr.mxu0 0.0
  %690 = vmatpush2.msra.mxu0 %v75
  %691 = vmatprep.subr.mxu0 0.0
  %692 = vmatpush2.msra.mxu0 %v74
  %693 = vmatprep.mubr.f32.mxu0 %v554
  %694 = vmatmul.mubr.f32.gmra.mxu0 %v553
  %v695 = vpop.f32.mrf.mxu0
  %v696 = vadd.f32 %v626, %v695
  %v697 = vpop.f32.mrf.mxu0
  %698 = vdwg.mxu0
  %699 = vmatprep.subr.mxu0 0.0
  %700 = vmatpush1.msra.mxu0 0.0
  %701 = vmatprep.subr.mxu0 0.0
  %702 = vmatpush1.msra.mxu0 0.0
  %703 = vmatprep.subr.mxu0 0.0
  %704 = vmatpush1.msra.mxu0 0.0
  %705 = vmatprep.subr.mxu0 0.0
  %706 = vmatpush1.msra.mxu0 0.0
  %707 = vmatprep.subr.mxu0 0.0
  %708 = vmatpush1.msra.mxu0 0.0
  %709 = vmatprep.subr.mxu0 0.0
  %710 = vmatpush1.msra.mxu0 0.0
  %711 = vmatprep.subr.mxu0 0.0
  %712 = vmatpush1.msra.mxu0 0.0
  %713 = vmatprep.subr.mxu0 0.0
  %714 = vmatpush1.msra.mxu0 0.0
  %715 = vmatprep.subr.mxu0 0.0
  %716 = vmatpush1.msra.mxu0 %v97
  %717 = vmatprep.subr.mxu0 0.0
  %718 = vmatpush1.msra.mxu0 %v96
  %719 = vmatprep.subr.mxu0 0.0
  %720 = vmatpush1.msra.mxu0 %v95
  %721 = vmatprep.subr.mxu0 0.0
  %722 = vmatpush1.msra.mxu0 %v94
  %723 = vmatprep.subr.mxu0 0.0
  %724 = vmatpush1.msra.mxu0 %v93
  %725 = vmatprep.subr.mxu0 0.0
  %726 = vmatpush1.msra.mxu0 %v92
  %727 = vmatprep.subr.mxu0 0.0
  %728 = vmatpush1.msra.mxu0 %v91
  %729 = vmatprep.subr.mxu0 0.0
  %730 = vmatpush1.msra.mxu0 %v90
  %731 = vmatprep.subr.mxu0 0.0
  %732 = vmatpush2.msra.mxu0 0.0
  %733 = vmatprep.subr.mxu0 0.0
  %734 = vmatpush2.msra.mxu0 0.0
  %735 = vmatprep.subr.mxu0 0.0
  %736 = vmatpush2.msra.mxu0 0.0
  %737 = vmatprep.subr.mxu0 0.0
  %738 = vmatpush2.msra.mxu0 0.0
  %739 = vmatprep.subr.mxu0 0.0
  %740 = vmatpush2.msra.mxu0 0.0
  %741 = vmatprep.subr.mxu0 0.0
  %742 = vmatpush2.msra.mxu0 0.0
  %743 = vmatprep.subr.mxu0 0.0
  %744 = vmatpush2.msra.mxu0 0.0
  %745 = vmatprep.subr.mxu0 0.0
  %746 = vmatpush2.msra.mxu0 0.0
  %747 = vmatprep.subr.mxu0 0.0
  %748 = vmatpush2.msra.mxu0 0.0
  %749 = vmatprep.subr.mxu0 0.0
  %750 = vmatpush2.msra.mxu0 0.0
  %751 = vmatprep.subr.mxu0 0.0
  %752 = vmatpush2.msra.mxu0 0.0
  %753 = vmatprep.subr.mxu0 0.0
  %754 = vmatpush2.msra.mxu0 0.0
  %755 = vmatprep.subr.mxu0 0.0
  %756 = vmatpush2.msra.mxu0 0.0
  %757 = vmatprep.subr.mxu0 0.0
  %758 = vmatpush2.msra.mxu0 0.0
  %759 = vmatprep.subr.mxu0 0.0
  %760 = vmatpush2.msra.mxu0 0.0
  %761 = vmatprep.subr.mxu0 0.0
  %762 = vmatpush2.msra.mxu0 0.0
  %763 = vmatprep.mubr.f32.mxu0 0.0
  %764 = vmatmul.mubr.f32.gmra.mxu0 %v557
  %v765 = vpop.f32.mrf.mxu0
  %v766 = vadd.f32 %v696, %v765
  %v767 = vpop.f32.mrf.mxu0
  %768 = vdwg.mxu0
  %vm769 = vcmp.gt.f32.partialorder %v766, 0.0
  %v770 = vmul.f32 %v766, 0.1
  %v771 = vsel %vm769, %v766, %v770
  %v772 = vmax.f32 %v549, %v771
  %s773 = scalar_lea.vmem %s0, 120
  %v774 = vld [vmem:[%s773] sm:$0xff]
  %v775 = vld [vmem:[%s773 + $0x8] sm:$0xff]
  %v776 = vld [vmem:[%s773 + $0x10] sm:$0xff]
  %v777 = vld [vmem:[%s773 + $0x18] sm:$0xff]
  %v778 = vld [vmem:[%s773 + $0x20] sm:$0xff]
  %v780 = vsel %vm110, %v778, 0
  %782 = vmatprep.subr.mxu0 0.0
  %783 = vmatpush1.msra.mxu0 %v41
  %784 = vmatprep.subr.mxu0 0.0
  %785 = vmatpush1.msra.mxu0 %v40
  %786 = vmatprep.subr.mxu0 0.0
  %787 = vmatpush1.msra.mxu0 %v39
  %788 = vmatprep.subr.mxu0 0.0
  %789 = vmatpush1.msra.mxu0 %v38
  %790 = vmatprep.subr.mxu0 0.0
  %791 = vmatpush1.msra.mxu0 %v37
  %792 = vmatprep.subr.mxu0 0.0
  %793 = vmatpush1.msra.mxu0 %v36
  %794 = vmatprep.subr.mxu0 0.0
  %795 = vmatpush1.msra.mxu0 %v35
  %796 = vmatprep.subr.mxu0 0.0
  %797 = vmatpush1.msra.mxu0 %v34
  %798 = vmatprep.subr.mxu0 0.0
  %799 = vmatpush1.msra.mxu0 %v33
  %800 = vmatprep.subr.mxu0 0.0
  %801 = vmatpush1.msra.mxu0 %v32
  %802 = vmatprep.subr.mxu0 0.0
  %803 = vmatpush1.msra.mxu0 %v31
  %804 = vmatprep.subr.mxu0 0.0
  %805 = vmatpush1.msra.mxu0 %v30
  %806 = vmatprep.subr.mxu0 0.0
  %807 = vmatpush1.msra.mxu0 %v29
  %808 = vmatprep.subr.mxu0 0.0
  %809 = vmatpush1.msra.mxu0 %v28
  %810 = vmatprep.subr.mxu0 0.0
  %811 = vmatpush1.msra.mxu0 %v27
  %812 = vmatprep.subr.mxu0 0.0
  %813 = vmatpush1.msra.mxu0 %v26
  %814 = vmatprep.subr.mxu0 0.0
  %815 = vmatpush2.msra.mxu0 %v57
  %816 = vmatprep.subr.mxu0 0.0
  %817 = vmatpush2.msra.mxu0 %v56
  %818 = vmatprep.subr.mxu0 0.0
  %819 = vmatpush2.msra.mxu0 %v55
  %820 = vmatprep.subr.mxu0 0.0
  %821 = vmatpush2.msra.mxu0 %v54
  %822 = vmatprep.subr.mxu0 0.0
  %823 = vmatpush2.msra.mxu0 %v53
  %824 = vmatprep.subr.mxu0 0.0
  %825 = vmatpush2.msra.mxu0 %v52
  %826 = vmatprep.subr.mxu0 0.0
  %827 = vmatpush2.msra.mxu0 %v51
  %828 = vmatprep.subr.mxu0 0.0
  %829 = vmatpush2.msra.mxu0 %v50
  %830 = vmatprep.subr.mxu0 0.0
  %831 = vmatpush2.msra.mxu0 %v49
  %832 = vmatprep.subr.mxu0 0.0
  %833 = vmatpush2.msra.mxu0 %v48
  %834 = vmatprep.subr.mxu0 0.0
  %835 = vmatpush2.msra.mxu0 %v47
  %836 = vmatprep.subr.mxu0 0.0
  %837 = vmatpush2.msra.mxu0 %v46
  %838 = vmatprep.subr.mxu0 0.0
  %839 = vmatpush2.msra.mxu0 %v45
  %840 = vmatprep.subr.mxu0 0.0
  %841 = vmatpush2.msra.mxu0 %v44
  %842 = vmatprep.subr.mxu0 0.0
  %843 = vmatpush2.msra.mxu0 %v43
  %844 = vmatprep.subr.mxu0 0.0
  %845 = vmatpush2.msra.mxu0 %v42
  %846 = vmatprep.mubr.f32.mxu0 %v775
  %847 = vmatmul.mubr.f32.gmra.mxu0 %v774
  %v848 = vpop.f32.mrf.mxu0
  %v849 = vadd.f32 %v108, %v848
  %v850 = vpop.f32.mrf.mxu0
  %851 = vdwg.mxu0
  %852 = vmatprep.subr.mxu0 0.0
  %853 = vmatpush1.msra.mxu0 %v73
  %854 = vmatprep.subr.mxu0 0.0
  %855 = vmatpush1.msra.mxu0 %v72
  %856 = vmatprep.subr.mxu0 0.0
  %857 = vmatpush1.msra.mxu0 %v71
  %858 = vmatprep.subr.mxu0 0.0
  %859 = vmatpush1.msra.mxu0 %v70
  %860 = vmatprep.subr.mxu0 0.0
  %861 = vmatpush1.msra.mxu0 %v69
  %862 = vmatprep.subr.mxu0 0.0
  %863 = vmatpush1.msra.mxu0 %v68
  %864 = vmatprep.subr.mxu0 0.0
  %865 = vmatpush1.msra.mxu0 %v67
  %866 = vmatprep.subr.mxu0 0.0
  %867 = vmatpush1.msra.mxu0 %v66
  %868 = vmatprep.subr.mxu0 0.0
  %869 = vmatpush1.msra.mxu0 %v65
  %870 = vmatprep.subr.mxu0 0.0
  %871 = vmatpush1.msra.mxu0 %v64
  %872 = vmatprep.subr.mxu0 0.0
  %873 = vmatpush1.msra.mxu0 %v63
  %874 = vmatprep.subr.mxu0 0.0
  %875 = vmatpush1.msra.mxu0 %v62
  %876 = vmatprep.subr.mxu0 0.0
  %877 = vmatpush1.msra.mxu0 %v61
  %878 = vmatprep.subr.mxu0 0.0
  %879 = vmatpush1.msra.mxu0 %v60
  %880 = vmatprep.subr.mxu0 0.0
  %881 = vmatpush1.msra.mxu0 %v59
  %882 = vmatprep.subr.mxu0 0.0
  %883 = vmatpush1.msra.mxu0 %v58
  %884 = vmatprep.subr.mxu0 0.0
  %885 = vmatpush2.msra.mxu0 %v89
  %886 = vmatprep.subr.mxu0 0.0
  %887 = vmatpush2.msra.mxu0 %v88
  %888 = vmatprep.subr.mxu0 0.0
  %889 = vmatpush2.msra.mxu0 %v87
  %890 = vmatprep.subr.mxu0 0.0
  %891 = vmatpush2.msra.mxu0 %v86
  %892 = vmatprep.subr.mxu0 0.0
  %893 = vmatpush2.msra.mxu0 %v85
  %894 = vmatprep.subr.mxu0 0.0
  %895 = vmatpush2.msra.mxu0 %v84
  %896 = vmatprep.subr.mxu0 0.0
  %897 = vmatpush2.msra.mxu0 %v83
  %898 = vmatprep.subr.mxu0 0.0
  %899 = vmatpush2.msra.mxu0 %v82
  %900 = vmatprep.subr.mxu0 0.0
  %901 = vmatpush2.msra.mxu0 %v81
  %902 = vmatprep.subr.mxu0 0.0
  %903 = vmatpush2.msra.mxu0 %v80
  %904 = vmatprep.subr.mxu0 0.0
  %905 = vmatpush2.msra.mxu0 %v79
  %906 = vmatprep.subr.mxu0 0.0
  %907 = vmatpush2.msra.mxu0 %v78
  %908 = vmatprep.subr.mxu0 0.0
  %909 = vmatpush2.msra.mxu0 %v77
  %910 = vmatprep.subr.mxu0 0.0
  %911 = vmatpush2.msra.mxu0 %v76
  %912 = vmatprep.subr.mxu0 0.0
  %913 = vmatpush2.msra.mxu0 %v75
  %914 = vmatprep.subr.mxu0 0.0
  %915 = vmatpush2.msra.mxu0 %v74
  %916 = vmatprep.mubr.f32.mxu0 %v777
  %917 = vmatmul.mubr.f32.gmra.mxu0 %v776
  %v918 = vpop.f32.mrf.mxu0
  %v919 = vadd.f32 %v849, %v918
  %v920 = vpop.f32.mrf.mxu0
  %921 = vdwg.mxu0
  %922 = vmatprep.subr.mxu0 0.0
  %923 = vmatpush1.msra.mxu0 0.0
  %924 = vmatprep.subr.mxu0 0.0
  %925 = vmatpush1.msra.mxu0 0.0
  %926 = vmatprep.subr.mxu0 0.0
  %927 = vmatpush1.msra.mxu0 0.0
  %928 = vmatprep.subr.mxu0 0.0
  %929 = vmatpush1.msra.mxu0 0.0
  %930 = vmatprep.subr.mxu0 0.0
  %931 = vmatpush1.msra.mxu0 0.0
  %932 = vmatprep.subr.mxu0 0.0
  %933 = vmatpush1.msra.mxu0 0.0
  %934 = vmatprep.subr.mxu0 0.0
  %935 = vmatpush1.msra.mxu0 0.0
  %936 = vmatprep.subr.mxu0 0.0
  %937 = vmatpush1.msra.mxu0 0.0
  %938 = vmatprep.subr.mxu0 0.0
  %939 = vmatpush1.msra.mxu0 %v97
  %940 = vmatprep.subr.mxu0 0.0
  %941 = vmatpush1.msra.mxu0 %v96
  %942 = vmatprep.subr.mxu0 0.0
  %943 = vmatpush1.msra.mxu0 %v95
  %944 = vmatprep.subr.mxu0 0.0
  %945 = vmatpush1.msra.mxu0 %v94
  %946 = vmatprep.subr.mxu0 0.0
  %947 = vmatpush1.msra.mxu0 %v93
  %948 = vmatprep.subr.mxu0 0.0
  %949 = vmatpush1.msra.mxu0 %v92
  %950 = vmatprep.subr.mxu0 0.0
  %951 = vmatpush1.msra.mxu0 %v91
  %952 = vmatprep.subr.mxu0 0.0
  %953 = vmatpush1.msra.mxu0 %v90
  %954 = vmatprep.subr.mxu0 0.0
  %955 = vmatpush2.msra.mxu0 0.0
  %956 = vmatprep.subr.mxu0 0.0
  %957 = vmatpush2.msra.mxu0 0.0
  %958 = vmatprep.subr.mxu0 0.0
  %959 = vmatpush2.msra.mxu0 0.0
  %960 = vmatprep.subr.mxu0 0.0
  %961 = vmatpush2.msra.mxu0 0.0
  %962 = vmatprep.subr.mxu0 0.0
  %963 = vmatpush2.msra.mxu0 0.0
  %964 = vmatprep.subr.mxu0 0.0
  %965 = vmatpush2.msra.mxu0 0.0
  %966 = vmatprep.subr.mxu0 0.0
  %967 = vmatpush2.msra.mxu0 0.0
  %968 = vmatprep.subr.mxu0 0.0
  %969 = vmatpush2.msra.mxu0 0.0
  %970 = vmatprep.subr.mxu0 0.0
  %971 = vmatpush2.msra.mxu0 0.0
  %972 = vmatprep.subr.mxu0 0.0
  %973 = vmatpush2.msra.mxu0 0.0
  %974 = vmatprep.subr.mxu0 0.0
  %975 = vmatpush2.msra.mxu0 0.0
  %976 = vmatprep.subr.mxu0 0.0
  %977 = vmatpush2.msra.mxu0 0.0
  %978 = vmatprep.subr.mxu0 0.0
  %979 = vmatpush2.msra.mxu0 0.0
  %980 = vmatprep.subr.mxu0 0.0
  %981 = vmatpush2.msra.mxu0 0.0
  %982 = vmatprep.subr.mxu0 0.0
  %983 = vmatpush2.msra.mxu0 0.0
  %984 = vmatprep.subr.mxu0 0.0
  %985 = vmatpush2.msra.mxu0 0.0
  %986 = vmatprep.mubr.f32.mxu0 0.0
  %987 = vmatmul.mubr.f32.gmra.mxu0 %v780
  %v988 = vpop.f32.mrf.mxu0
  %v989 = vadd.f32 %v919, %v988
  %v990 = vpop.f32.mrf.mxu0
  %991 = vdwg.mxu0
  %vm992 = vcmp.gt.f32.partialorder %v989, 0.0
  %v993 = vmul.f32 %v989, 0.1
  %v994 = vsel %vm992, %v989, %v993
  %v995 = vmax.f32 %v772, %v994
  %v996 = vld [vmem:[%s3] sm:$0xff]
  %v997 = vld [vmem:[%s3 + $0x8] sm:$0xff]
  %v998 = vld [vmem:[%s3 + $0x10] sm:$0xff]
  %v999 = vld [vmem:[%s3 + $0x18] sm:$0xff]
  %v1000 = vld [vmem:[%s3 + $0x20] sm:$0xff]
  %v1001 = vld [vmem:[%s3 + $0x28] sm:$0xff]
  %v1002 = vld [vmem:[%s3 + $0x30] sm:$0xff]
  %v1003 = vld [vmem:[%s3 + $0x38] sm:$0xff]
  %v1004 = vld [vmem:[%s3 + $0x40] sm:$0xff]
  %v1005 = vld [vmem:[%s3 + $0x48] sm:$0xff]
  %v1006 = vld [vmem:[%s3 + $0x50] sm:$0xff]
  %v1007 = vld [vmem:[%s3 + $0x58] sm:$0xff]
  %v1008 = vld [vmem:[%s3 + $0x60] sm:$0xff]
  %v1009 = vld [vmem:[%s3 + $0x68] sm:$0xff]
  %v1010 = vld [vmem:[%s3 + $0x70] sm:$0xff]
  %v1011 = vld [vmem:[%s3 + $0x78] sm:$0xff]
  %v1012 = vld [vmem:[%s4] sm:$0x1]
  %v1014 = vlaneseq
  %v1015 = vshrl.u32 %v1014, 7
  %v1016 = vsub.s32 0, %v1015
  %v1017 = vrot.slane %v1012, %v1016
  %1019 = vmatprep.subr.mxu0 0.0
  %1020 = vmatpush1.msra.mxu0 %v1011
  %1021 = vmatprep.subr.mxu0 0.0
  %1022 = vmatpush1.msra.mxu0 %v1010
  %1023 = vmatprep.subr.mxu0 0.0
  %1024 = vmatpush1.msra.mxu0 %v1009
  %1025 = vmatprep.subr.mxu0 0.0
  %1026 = vmatpush1.msra.mxu0 %v1008
  %1027 = vmatprep.subr.mxu0 0.0
  %1028 = vmatpush1.msra.mxu0 %v1007
  %1029 = vmatprep.subr.mxu0 0.0
  %1030 = vmatpush1.msra.mxu0 %v1006
  %1031 = vmatprep.subr.mxu0 0.0
  %1032 = vmatpush1.msra.mxu0 %v1005
  %1033 = vmatprep.subr.mxu0 0.0
  %1034 = vmatpush1.msra.mxu0 %v1004
  %1035 = vmatprep.subr.mxu0 0.0
  %1036 = vmatpush1.msra.mxu0 %v1003
  %1037 = vmatprep.subr.mxu0 0.0
  %1038 = vmatpush1.msra.mxu0 %v1002
  %1039 = vmatprep.subr.mxu0 0.0
  %1040 = vmatpush1.msra.mxu0 %v1001
  %1041 = vmatprep.subr.mxu0 0.0
  %1042 = vmatpush1.msra.mxu0 %v1000
  %1043 = vmatprep.subr.mxu0 0.0
  %1044 = vmatpush1.msra.mxu0 %v999
  %1045 = vmatprep.subr.mxu0 0.0
  %1046 = vmatpush1.msra.mxu0 %v998
  %1047 = vmatprep.subr.mxu0 0.0
  %1048 = vmatpush1.msra.mxu0 %v997
  %1049 = vmatprep.subr.mxu0 0.0
  %1050 = vmatpush1.msra.mxu0 %v996
  %1051 = vmatprep.subr.mxu0 0.0
  %1052 = vmatpush2.msra.mxu0 0.0
  %1053 = vmatprep.subr.mxu0 0.0
  %1054 = vmatpush2.msra.mxu0 0.0
  %1055 = vmatprep.subr.mxu0 0.0
  %1056 = vmatpush2.msra.mxu0 0.0
  %1057 = vmatprep.subr.mxu0 0.0
  %1058 = vmatpush2.msra.mxu0 0.0
  %1059 = vmatprep.subr.mxu0 0.0
  %1060 = vmatpush2.msra.mxu0 0.0
  %1061 = vmatprep.subr.mxu0 0.0
  %1062 = vmatpush2.msra.mxu0 0.0
  %1063 = vmatprep.subr.mxu0 0.0
  %1064 = vmatpush2.msra.mxu0 0.0
  %1065 = vmatprep.subr.mxu0 0.0
  %1066 = vmatpush2.msra.mxu0 0.0
  %1067 = vmatprep.subr.mxu0 0.0
  %1068 = vmatpush2.msra.mxu0 0.0
  %1069 = vmatprep.subr.mxu0 0.0
  %1070 = vmatpush2.msra.mxu0 0.0
  %1071 = vmatprep.subr.mxu0 0.0
  %1072 = vmatpush2.msra.mxu0 0.0
  %1073 = vmatprep.subr.mxu0 0.0
  %1074 = vmatpush2.msra.mxu0 0.0
  %1075 = vmatprep.subr.mxu0 0.0
  %1076 = vmatpush2.msra.mxu0 0.0
  %1077 = vmatprep.subr.mxu0 0.0
  %1078 = vmatpush2.msra.mxu0 0.0
  %1079 = vmatprep.subr.mxu0 0.0
  %1080 = vmatpush2.msra.mxu0 0.0
  %1081 = vmatprep.subr.mxu0 0.0
  %1082 = vmatpush2.msra.mxu0 0.0
  %1083 = vmatprep.mubr.f32.mxu0 0.0
  %1084 = vmatmul.mubr.f32.gmra.mxu0 %v995
  %v1085 = vpop.f32.mrf.mxu0
  %v1086 = vadd.f32 %v1017, %v1085
  %v1087 = vpop.f32.mrf.mxu0
  %1088 = vdwg.mxu0
  %v1089 = vld [vmem:[%s5] sm:$0xff]
  %v1090 = vld [vmem:[%s5 + $0x8] sm:$0xff]
  %v1091 = vld [vmem:[%s5 + $0x10] sm:$0xff]
  %v1092 = vld [vmem:[%s5 + $0x18] sm:$0xff]
  %v1093 = vld [vmem:[%s5 + $0x20] sm:$0xff]
  %v1094 = vld [vmem:[%s5 + $0x28] sm:$0xff]
  %v1095 = vld [vmem:[%s5 + $0x30] sm:$0xff]
  %v1096 = vld [vmem:[%s5 + $0x38] sm:$0xff]
  %v1097 = vld [vmem:[%s6] sm:$0x1]
  %v1099 = vlaneseq
  %v1100 = vshrl.u32 %v1099, 7
  %v1101 = vsub.s32 0, %v1100
  %v1102 = vrot.slane %v1097, %v1101
  %v1105 = vsel %vm110, %v1086, 0
  %1107 = vmatprep.subr.mxu0 0.0
  %1108 = vmatpush1.msra.mxu0 0.0
  %1109 = vmatprep.subr.mxu0 0.0
  %1110 = vmatpush1.msra.mxu0 0.0
  %1111 = vmatprep.subr.mxu0 0.0
  %1112 = vmatpush1.msra.mxu0 0.0
  %1113 = vmatprep.subr.mxu0 0.0
  %1114 = vmatpush1.msra.mxu0 0.0
  %1115 = vmatprep.subr.mxu0 0.0
  %1116 = vmatpush1.msra.mxu0 0.0
  %1117 = vmatprep.subr.mxu0 0.0
  %1118 = vmatpush1.msra.mxu0 0.0
  %1119 = vmatprep.subr.mxu0 0.0
  %1120 = vmatpush1.msra.mxu0 0.0
  %1121 = vmatprep.subr.mxu0 0.0
  %1122 = vmatpush1.msra.mxu0 0.0
  %1123 = vmatprep.subr.mxu0 0.0
  %1124 = vmatpush1.msra.mxu0 %v1096
  %1125 = vmatprep.subr.mxu0 0.0
  %1126 = vmatpush1.msra.mxu0 %v1095
  %1127 = vmatprep.subr.mxu0 0.0
  %1128 = vmatpush1.msra.mxu0 %v1094
  %1129 = vmatprep.subr.mxu0 0.0
  %1130 = vmatpush1.msra.mxu0 %v1093
  %1131 = vmatprep.subr.mxu0 0.0
  %1132 = vmatpush1.msra.mxu0 %v1092
  %1133 = vmatprep.subr.mxu0 0.0
  %1134 = vmatpush1.msra.mxu0 %v1091
  %1135 = vmatprep.subr.mxu0 0.0
  %1136 = vmatpush1.msra.mxu0 %v1090
  %1137 = vmatprep.subr.mxu0 0.0
  %1138 = vmatpush1.msra.mxu0 %v1089
  %1139 = vmatprep.subr.mxu0 0.0
  %1140 = vmatpush2.msra.mxu0 0.0
  %1141 = vmatprep.subr.mxu0 0.0
  %1142 = vmatpush2.msra.mxu0 0.0
  %1143 = vmatprep.subr.mxu0 0.0
  %1144 = vmatpush2.msra.mxu0 0.0
  %1145 = vmatprep.subr.mxu0 0.0
  %1146 = vmatpush2.msra.mxu0 0.0
  %1147 = vmatprep.subr.mxu0 0.0
  %1148 = vmatpush2.msra.mxu0 0.0
  %1149 = vmatprep.subr.mxu0 0.0
  %1150 = vmatpush2.msra.mxu0 0.0
  %1151 = vmatprep.subr.mxu0 0.0
  %1152 = vmatpush2.msra.mxu0 0.0
  %1153 = vmatprep.subr.mxu0 0.0
  %1154 = vmatpush2.msra.mxu0 0.0
  %1155 = vmatprep.subr.mxu0 0.0
  %1156 = vmatpush2.msra.mxu0 0.0
  %1157 = vmatprep.subr.mxu0 0.0
  %1158 = vmatpush2.msra.mxu0 0.0
  %1159 = vmatprep.subr.mxu0 0.0
  %1160 = vmatpush2.msra.mxu0 0.0
  %1161 = vmatprep.subr.mxu0 0.0
  %1162 = vmatpush2.msra.mxu0 0.0
  %1163 = vmatprep.subr.mxu0 0.0
  %1164 = vmatpush2.msra.mxu0 0.0
  %1165 = vmatprep.subr.mxu0 0.0
  %1166 = vmatpush2.msra.mxu0 0.0
  %1167 = vmatprep.subr.mxu0 0.0
  %1168 = vmatpush2.msra.mxu0 0.0
  %1169 = vmatprep.subr.mxu0 0.0
  %1170 = vmatpush2.msra.mxu0 0.0
  %1171 = vmatprep.mubr.f32.mxu0 0.0
  %1172 = vmatmul.mubr.f32.gmra.mxu0 %v1105
  %v1173 = vpop.f32.mrf.mxu0
  %v1174 = vadd.f32 %v1102, %v1173
  %v1175 = vpop.f32.mrf.mxu0
  %1176 = vdwg.mxu0
  %vm1177 = vcmask 261120
  %1178 = vst.msk [vmem:[%s7] sm:$0xff] %vm1177, %v1174
  // Predicated region
  $region30: #{voxaenet_forward.5} parent=0 // pred_check
    _
  $region31: #{voxaenet_forward.5} parent=0 // pred_check_branch
    %1180 = sbr.rel (0) target = $region33
  $region32: #{voxaenet_forward.5} parent=0 // pred_region
    _
  $region33: #{voxaenet_forward.5} parent=0 // pred_fallthru
    _
  // Predicated region
  $region34: #{voxaenet_forward.5} parent=0 // pred_check
    _
  $region35: #{voxaenet_forward.5} parent=0 // pred_check_branch
    %1182 = sbr.rel (0) target = $region37
  $region36: #{voxaenet_forward.5} parent=0 // pred_region
    _
  $region37: #{voxaenet_forward.5} parent=0 // pred_fallthru
    _

// kernel: voxaenet_forward.4
$region0: #{voxaenet_forward.4}
  #allocation0 [shape = 'u32[]', space=smem, size = 0x4, offset = 0x4, fixed_abs, tag = 'smem constant byte address 0x4 - core index']
  #allocation1 [shape = 'u32[144,128]{1,0:T(1,128)}', space=vmem, size = 0x12000, scoped, tag = 'internal scratch']
  %s0 = inlined_call_operand.vmem [shape: f32[4,72,800], index: 0, kind: input, shape index: {}]
  %s1 = inlined_call_operand.vmem [shape: f32[800,128], index: 1, kind: input, shape index: {}]
  %s2 = inlined_call_operand.vmem [shape: f32[1,128], index: 2, kind: input, shape index: {}]
  %s3 = inlined_call_operand.vmem [shape: f32[72,128], index: 3, kind: output, shape index: {}]
  %s4 = sld [smem:[#allocation0]]
  $region22: #{voxaenet_forward.4} parent=0
    _
  %s6 = ssub.s32 1, %s4
  %s7 = scalar_select 0, %s6, %s4
  // Predicated region
  $region2: #{voxaenet_forward.4} parent=0 // pred_check
    _
  $region3: #{voxaenet_forward.4} parent=0 // pred_check_branch
    %9 = sbr.rel (0) target = $region5
  $region4: #{voxaenet_forward.4} parent=0 // pred_region
    _
  $region5: #{voxaenet_forward.4} parent=0 // pred_fallthru
    _
  // Predicated region
  $region6: #{voxaenet_forward.4} parent=0 // pred_check
    _
  $region7: #{voxaenet_forward.4} parent=0 // pred_check_branch
    %11 = sbr.rel (0) target = $region9
  $region8: #{voxaenet_forward.4} parent=0 // pred_region
    _
  $region9: #{voxaenet_forward.4} parent=0 // pred_fallthru
    _
  // Predicated region
  $region10: #{voxaenet_forward.4} parent=0 // pred_check
    _
  $region11: #{voxaenet_forward.4} parent=0 // pred_check_branch
    %13 = sbr.rel (0) target = $region13
  $region12: #{voxaenet_forward.4} parent=0 // pred_region
    _
  $region13: #{voxaenet_forward.4} parent=0 // pred_fallthru
    _
  %v14 = vld [vmem:[%s1] sm:$0xff]
  %v15 = vld [vmem:[%s1 + $0x8] sm:$0xff]
  %v16 = vld [vmem:[%s1 + $0x10] sm:$0xff]
  %v17 = vld [vmem:[%s1 + $0x18] sm:$0xff]
  %v18 = vld [vmem:[%s1 + $0x20] sm:$0xff]
  %v19 = vld [vmem:[%s1 + $0x28] sm:$0xff]
  %v20 = vld [vmem:[%s1 + $0x30] sm:$0xff]
  %v21 = vld [vmem:[%s1 + $0x38] sm:$0xff]
  %v22 = vld [vmem:[%s1 + $0x40] sm:$0xff]
  %v23 = vld [vmem:[%s1 + $0x48] sm:$0xff]
  %v24 = vld [vmem:[%s1 + $0x50] sm:$0xff]
  %v25 = vld [vmem:[%s1 + $0x58] sm:$0xff]
  %v26 = vld [vmem:[%s1 + $0x60] sm:$0xff]
  %v27 = vld [vmem:[%s1 + $0x68] sm:$0xff]
  %v28 = vld [vmem:[%s1 + $0x70] sm:$0xff]
  %v29 = vld [vmem:[%s1 + $0x78] sm:$0xff]
  %v30 = vld [vmem:[%s1 + $0x80] sm:$0xff]
  %v31 = vld [vmem:[%s1 + $0x88] sm:$0xff]
  %v32 = vld [vmem:[%s1 + $0x90] sm:$0xff]
  %v33 = vld [vmem:[%s1 + $0x98] sm:$0xff]
  %v34 = vld [vmem:[%s1 + $0xa0] sm:$0xff]
  %v35 = vld [vmem:[%s1 + $0xa8] sm:$0xff]
  %v36 = vld [vmem:[%s1 + $0xb0] sm:$0xff]
  %v37 = vld [vmem:[%s1 + $0xb8] sm:$0xff]
  %v38 = vld [vmem:[%s1 + $0xc0] sm:$0xff]
  %v39 = vld [vmem:[%s1 + $0xc8] sm:$0xff]
  %v40 = vld [vmem:[%s1 + $0xd0] sm:$0xff]
  %v41 = vld [vmem:[%s1 + $0xd8] sm:$0xff]
  %v42 = vld [vmem:[%s1 + $0xe0] sm:$0xff]
  %v43 = vld [vmem:[%s1 + $0xe8] sm:$0xff]
  %v44 = vld [vmem:[%s1 + $0xf0] sm:$0xff]
  %v45 = vld [vmem:[%s1 + $0xf8] sm:$0xff]
  %v46 = vld [vmem:[%s1 + $0x100] sm:$0xff]
  %v47 = vld [vmem:[%s1 + $0x108] sm:$0xff]
  %v48 = vld [vmem:[%s1 + $0x110] sm:$0xff]
  %v49 = vld [vmem:[%s1 + $0x118] sm:$0xff]
  %v50 = vld [vmem:[%s1 + $0x120] sm:$0xff]
  %v51 = vld [vmem:[%s1 + $0x128] sm:$0xff]
  %v52 = vld [vmem:[%s1 + $0x130] sm:$0xff]
  %v53 = vld [vmem:[%s1 + $0x138] sm:$0xff]
  %v54 = vld [vmem:[%s1 + $0x140] sm:$0xff]
  %v55 = vld [vmem:[%s1 + $0x148] sm:$0xff]
  %v56 = vld [vmem:[%s1 + $0x150] sm:$0xff]
  %v57 = vld [vmem:[%s1 + $0x158] sm:$0xff]
  %v58 = vld [vmem:[%s1 + $0x160] sm:$0xff]
  %v59 = vld [vmem:[%s1 + $0x168] sm:$0xff]
  %v60 = vld [vmem:[%s1 + $0x170] sm:$0xff]
  %v61 = vld [vmem:[%s1 + $0x178] sm:$0xff]
  %v62 = vld [vmem:[%s1 + $0x180] sm:$0xff]
  %v63 = vld [vmem:[%s1 + $0x188] sm:$0xff]
  %v64 = vld [vmem:[%s1 + $0x190] sm:$0xff]
  %v65 = vld [vmem:[%s1 + $0x198] sm:$0xff]
  %v66 = vld [vmem:[%s1 + $0x1a0] sm:$0xff]
  %v67 = vld [vmem:[%s1 + $0x1a8] sm:$0xff]
  %v68 = vld [vmem:[%s1 + $0x1b0] sm:$0xff]
  %v69 = vld [vmem:[%s1 + $0x1b8] sm:$0xff]
  %v70 = vld [vmem:[%s1 + $0x1c0] sm:$0xff]
  %v71 = vld [vmem:[%s1 + $0x1c8] sm:$0xff]
  %v72 = vld [vmem:[%s1 + $0x1d0] sm:$0xff]
  %v73 = vld [vmem:[%s1 + $0x1d8] sm:$0xff]
  %v74 = vld [vmem:[%s1 + $0x1e0] sm:$0xff]
  %v75 = vld [vmem:[%s1 + $0x1e8] sm:$0xff]
  %v76 = vld [vmem:[%s1 + $0x1f0] sm:$0xff]
  %v77 = vld [vmem:[%s1 + $0x1f8] sm:$0xff]
  %v78 = vld [vmem:[%s1 + $0x200] sm:$0xff]
  %v79 = vld [vmem:[%s1 + $0x208] sm:$0xff]
  %v80 = vld [vmem:[%s1 + $0x210] sm:$0xff]
  %v81 = vld [vmem:[%s1 + $0x218] sm:$0xff]
  %v82 = vld [vmem:[%s1 + $0x220] sm:$0xff]
  %v83 = vld [vmem:[%s1 + $0x228] sm:$0xff]
  %v84 = vld [vmem:[%s1 + $0x230] sm:$0xff]
  %v85 = vld [vmem:[%s1 + $0x238] sm:$0xff]
  %v86 = vld [vmem:[%s1 + $0x240] sm:$0xff]
  %v87 = vld [vmem:[%s1 + $0x248] sm:$0xff]
  %v88 = vld [vmem:[%s1 + $0x250] sm:$0xff]
  %v89 = vld [vmem:[%s1 + $0x258] sm:$0xff]
  %v90 = vld [vmem:[%s1 + $0x260] sm:$0xff]
  %v91 = vld [vmem:[%s1 + $0x268] sm:$0xff]
  %v92 = vld [vmem:[%s1 + $0x270] sm:$0xff]
  %v93 = vld [vmem:[%s1 + $0x278] sm:$0xff]
  %v94 = vld [vmem:[%s1 + $0x280] sm:$0xff]
  %v95 = vld [vmem:[%s1 + $0x288] sm:$0xff]
  %v96 = vld [vmem:[%s1 + $0x290] sm:$0xff]
  %v97 = vld [vmem:[%s1 + $0x298] sm:$0xff]
  %v98 = vld [vmem:[%s1 + $0x2a0] sm:$0xff]
  %v99 = vld [vmem:[%s1 + $0x2a8] sm:$0xff]
  %v100 = vld [vmem:[%s1 + $0x2b0] sm:$0xff]
  %v101 = vld [vmem:[%s1 + $0x2b8] sm:$0xff]
  %v102 = vld [vmem:[%s1 + $0x2c0] sm:$0xff]
  %v103 = vld [vmem:[%s1 + $0x2c8] sm:$0xff]
  %v104 = vld [vmem:[%s1 + $0x2d0] sm:$0xff]
  %v105 = vld [vmem:[%s1 + $0x2d8] sm:$0xff]
  %v106 = vld [vmem:[%s1 + $0x2e0] sm:$0xff]
  %v107 = vld [vmem:[%s1 + $0x2e8] sm:$0xff]
  %v108 = vld [vmem:[%s1 + $0x2f0] sm:$0xff]
  %v109 = vld [vmem:[%s1 + $0x2f8] sm:$0xff]
  %v110 = vld [vmem:[%s1 + $0x300] sm:$0xff]
  %v111 = vld [vmem:[%s1 + $0x308] sm:$0xff]
  %v112 = vld [vmem:[%s1 + $0x310] sm:$0xff]
  %v113 = vld [vmem:[%s1 + $0x318] sm:$0xff]
  %v114 = vld [vmem:[%s2] sm:$0x1]
  %v115 = vld [vmem:[%s0] sm:$0xff]
  %v116 = vld [vmem:[%s0 + $0x8] sm:$0xff]
  %v117 = vld [vmem:[%s0 + $0x10] sm:$0xff]
  %v118 = vld [vmem:[%s0 + $0x18] sm:$0xff]
  %v119 = vld [vmem:[%s0 + $0x20] sm:$0xff]
  %v120 = vld [vmem:[%s0 + $0x28] sm:$0xff]
  %v121 = vld [vmem:[%s0 + $0x30] sm:$0xff]
  %v122 = vld [vmem:[%s0 + $0x38] sm:$0xff]
  %v123 = vld [vmem:[%s0 + $0x40] sm:$0xff]
  %v124 = vld [vmem:[%s0 + $0x48] sm:$0xff]
  %v125 = vld [vmem:[%s0 + $0x50] sm:$0xff]
  %v126 = vld [vmem:[%s0 + $0x58] sm:$0xff]
  %v127 = vld [vmem:[%s0 + $0x60] sm:$0xff]
  %v128 = vld [vmem:[%s0 + $0x68] sm:$0xff]
  %v129 = vld [vmem:[%s0 + $0x70] sm:$0xff]
  %v130 = vld [vmem:[%s0 + $0x78] sm:$0xff]
  %v131 = vld [vmem:[%s0 + $0x80] sm:$0xff]
  %v132 = vld [vmem:[%s0 + $0x88] sm:$0xff]
  %v133 = vld [vmem:[%s0 + $0x90] sm:$0xff]
  %v134 = vld [vmem:[%s0 + $0x98] sm:$0xff]
  %v135 = vld [vmem:[%s0 + $0xa0] sm:$0xff]
  %v136 = vld [vmem:[%s0 + $0xa8] sm:$0xff]
  %v137 = vld [vmem:[%s0 + $0xb0] sm:$0xff]
  %v138 = vld [vmem:[%s0 + $0xb8] sm:$0xff]
  %v139 = vld [vmem:[%s0 + $0xc0] sm:$0xff]
  %v140 = vld [vmem:[%s0 + $0xc8] sm:$0xff]
  %v141 = vld [vmem:[%s0 + $0xd0] sm:$0xff]
  %v142 = vld [vmem:[%s0 + $0xd8] sm:$0xff]
  %v143 = vld [vmem:[%s0 + $0xe0] sm:$0xff]
  %v144 = vld [vmem:[%s0 + $0xe8] sm:$0xff]
  %v145 = vld [vmem:[%s0 + $0xf0] sm:$0xff]
  %v146 = vld [vmem:[%s0 + $0xf8] sm:$0xff]
  %v147 = vld [vmem:[%s0 + $0x100] sm:$0xff]
  %v148 = vld [vmem:[%s0 + $0x108] sm:$0xff]
  %v149 = vld [vmem:[%s0 + $0x110] sm:$0xff]
  %v150 = vld [vmem:[%s0 + $0x118] sm:$0xff]
  %v151 = vld [vmem:[%s0 + $0x120] sm:$0xff]
  %v152 = vld [vmem:[%s0 + $0x128] sm:$0xff]
  %v153 = vld [vmem:[%s0 + $0x130] sm:$0xff]
  %v154 = vld [vmem:[%s0 + $0x138] sm:$0xff]
  %v155 = vld [vmem:[%s0 + $0x140] sm:$0xff]
  %v156 = vld [vmem:[%s0 + $0x148] sm:$0xff]
  %v157 = vld [vmem:[%s0 + $0x150] sm:$0xff]
  %v158 = vld [vmem:[%s0 + $0x158] sm:$0xff]
  %v159 = vld [vmem:[%s0 + $0x160] sm:$0xff]
  %v160 = vld [vmem:[%s0 + $0x168] sm:$0xff]
  %v161 = vld [vmem:[%s0 + $0x170] sm:$0xff]
  %v162 = vld [vmem:[%s0 + $0x178] sm:$0xff]
  %v163 = vld [vmem:[%s0 + $0x180] sm:$0xff]
  %v164 = vld [vmem:[%s0 + $0x188] sm:$0xff]
  %v165 = vld [vmem:[%s0 + $0x190] sm:$0xff]
  %v166 = vld [vmem:[%s0 + $0x198] sm:$0xff]
  %v167 = vld [vmem:[%s0 + $0x1a0] sm:$0xff]
  %v168 = vld [vmem:[%s0 + $0x1a8] sm:$0xff]
  %v169 = vld [vmem:[%s0 + $0x1b0] sm:$0xff]
  %v170 = vld [vmem:[%s0 + $0x1b8] sm:$0xff]
  %v171 = vld [vmem:[%s0 + $0x1c0] sm:$0xff]
  %v172 = vld [vmem:[%s0 + $0x1c8] sm:$0xff]
  %v173 = vld [vmem:[%s0 + $0x1d0] sm:$0xff]
  %v174 = vld [vmem:[%s0 + $0x1d8] sm:$0xff]
  %v175 = vld [vmem:[%s0 + $0x1e0] sm:$0xff]
  %v176 = vld [vmem:[%s0 + $0x1e8] sm:$0xff]
  %v177 = vld [vmem:[%s0 + $0x1f0] sm:$0xff]
  %v179 = vlaneseq
  %v180 = vshrl.u32 %v179, 7
  %v181 = vsub.s32 0, %v180
  %v182 = vrot.slane %v114, %v181
  %vm184 = vcmask 261120
  %v186 = vsel %vm184, %v121, 0
  %v189 = vsel %vm184, %v128, 0
  %v192 = vsel %vm184, %v135, 0
  %v195 = vsel %vm184, %v142, 0
  %v198 = vsel %vm184, %v149, 0
  %v201 = vsel %vm184, %v156, 0
  %v204 = vsel %vm184, %v163, 0
  %v207 = vsel %vm184, %v170, 0
  %v210 = vsel %vm184, %v177, 0
  %212 = vmatprep.subr.mxu0 0.0
  %213 = vmatpush1.msra.mxu0 %v29
  %214 = vmatprep.subr.mxu0 0.0
  %215 = vmatpush1.msra.mxu0 %v28
  %216 = vmatprep.subr.mxu0 0.0
  %217 = vmatpush1.msra.mxu0 %v27
  %218 = vmatprep.subr.mxu0 0.0
  %219 = vmatpush1.msra.mxu0 %v26
  %220 = vmatprep.subr.mxu0 0.0
  %221 = vmatpush1.msra.mxu0 %v25
  %222 = vmatprep.subr.mxu0 0.0
  %223 = vmatpush1.msra.mxu0 %v24
  %224 = vmatprep.subr.mxu0 0.0
  %225 = vmatpush1.msra.mxu0 %v23
  %226 = vmatprep.subr.mxu0 0.0
  %227 = vmatpush1.msra.mxu0 %v22
  %228 = vmatprep.subr.mxu0 0.0
  %229 = vmatpush1.msra.mxu0 %v21
  %230 = vmatprep.subr.mxu0 0.0
  %231 = vmatpush1.msra.mxu0 %v20
  %232 = vmatprep.subr.mxu0 0.0
  %233 = vmatpush1.msra.mxu0 %v19
  %234 = vmatprep.subr.mxu0 0.0
  %235 = vmatpush1.msra.mxu0 %v18
  %236 = vmatprep.subr.mxu0 0.0
  %237 = vmatpush1.msra.mxu0 %v17
  %238 = vmatprep.subr.mxu0 0.0
  %239 = vmatpush1.msra.mxu0 %v16
  %240 = vmatprep.subr.mxu0 0.0
  %241 = vmatpush1.msra.mxu0 %v15
  %242 = vmatprep.subr.mxu0 0.0
  %243 = vmatpush1.msra.mxu0 %v14
  %244 = vmatprep.subr.mxu0 0.0
  %245 = vmatpush2.msra.mxu0 %v45
  %246 = vmatprep.subr.mxu0 0.0
  %247 = vmatpush2.msra.mxu0 %v44
  %248 = vmatprep.subr.mxu0 0.0
  %249 = vmatpush2.msra.mxu0 %v43
  %250 = vmatprep.subr.mxu0 0.0
  %251 = vmatpush2.msra.mxu0 %v42
  %252 = vmatprep.subr.mxu0 0.0
  %253 = vmatpush2.msra.mxu0 %v41
  %254 = vmatprep.subr.mxu0 0.0
  %255 = vmatpush2.msra.mxu0 %v40
  %256 = vmatprep.subr.mxu0 0.0
  %257 = vmatpush2.msra.mxu0 %v39
  %258 = vmatprep.subr.mxu0 0.0
  %259 = vmatpush2.msra.mxu0 %v38
  %260 = vmatprep.subr.mxu0 0.0
  %261 = vmatpush2.msra.mxu0 %v37
  %262 = vmatprep.subr.mxu0 0.0
  %263 = vmatpush2.msra.mxu0 %v36
  %264 = vmatprep.subr.mxu0 0.0
  %265 = vmatpush2.msra.mxu0 %v35
  %266 = vmatprep.subr.mxu0 0.0
  %267 = vmatpush2.msra.mxu0 %v34
  %268 = vmatprep.subr.mxu0 0.0
  %269 = vmatpush2.msra.mxu0 %v33
  %270 = vmatprep.subr.mxu0 0.0
  %271 = vmatpush2.msra.mxu0 %v32
  %272 = vmatprep.subr.mxu0 0.0
  %273 = vmatpush2.msra.mxu0 %v31
  %274 = vmatprep.subr.mxu0 0.0
  %275 = vmatpush2.msra.mxu0 %v30
  %276 = vmatprep.mubr.f32.mxu0 %v116
  %277 = vmatmul.mubr.f32.gmra.mxu0 %v115
  %v278 = vpop.f32.mrf.mxu0
  %v279 = vadd.f32 %v182, %v278
  %v280 = vpop.f32.mrf.mxu0
  %281 = vmatprep.mubr.f32.mxu0 %v123
  %282 = vmatmul.mubr.f32.gmra.mxu0 %v122
  %v283 = vpop.f32.mrf.mxu0
  %v284 = vadd.f32 %v182, %v283
  %v285 = vpop.f32.mrf.mxu0
  %286 = vmatprep.mubr.f32.mxu0 %v130
  %287 = vmatmul.mubr.f32.gmra.mxu0 %v129
  %v288 = vpop.f32.mrf.mxu0
  %v289 = vadd.f32 %v182, %v288
  %v290 = vpop.f32.mrf.mxu0
  %291 = vmatprep.mubr.f32.mxu0 %v137
  %292 = vmatmul.mubr.f32.gmra.mxu0 %v136
  %v293 = vpop.f32.mrf.mxu0
  %v294 = vadd.f32 %v182, %v293
  %v295 = vpop.f32.mrf.mxu0
  %296 = vmatprep.mubr.f32.mxu0 %v144
  %297 = vmatmul.mubr.f32.gmra.mxu0 %v143
  %v298 = vpop.f32.mrf.mxu0
  %v299 = vadd.f32 %v182, %v298
  %v300 = vpop.f32.mrf.mxu0
  %301 = vmatprep.mubr.f32.mxu0 %v151
  %302 = vmatmul.mubr.f32.gmra.mxu0 %v150
  %v303 = vpop.f32.mrf.mxu0
  %v304 = vadd.f32 %v182, %v303
  %v305 = vpop.f32.mrf.mxu0
  %306 = vmatprep.mubr.f32.mxu0 %v158
  %307 = vmatmul.mubr.f32.gmra.mxu0 %v157
  %v308 = vpop.f32.mrf.mxu0
  %v309 = vadd.f32 %v182, %v308
  %v310 = vpop.f32.mrf.mxu0
  %311 = vmatprep.mubr.f32.mxu0 %v165
  %312 = vmatmul.mubr.f32.gmra.mxu0 %v164
  %v313 = vpop.f32.mrf.mxu0
  %v314 = vadd.f32 %v182, %v313
  %v315 = vpop.f32.mrf.mxu0
  %316 = vmatprep.mubr.f32.mxu0 %v172
  %317 = vmatmul.mubr.f32.gmra.mxu0 %v171
  %v318 = vpop.f32.mrf.mxu0
  %v319 = vadd.f32 %v182, %v318
  %v320 = vpop.f32.mrf.mxu0
  %321 = vdwg.mxu0
  %322 = vmatprep.subr.mxu0 0.0
  %323 = vmatpush1.msra.mxu0 %v61
  %324 = vmatprep.subr.mxu0 0.0
  %325 = vmatpush1.msra.mxu0 %v60
  %326 = vmatprep.subr.mxu0 0.0
  %327 = vmatpush1.msra.mxu0 %v59
  %328 = vmatprep.subr.mxu0 0.0
  %329 = vmatpush1.msra.mxu0 %v58
  %330 = vmatprep.subr.mxu0 0.0
  %331 = vmatpush1.msra.mxu0 %v57
  %332 = vmatprep.subr.mxu0 0.0
  %333 = vmatpush1.msra.mxu0 %v56
  %334 = vmatprep.subr.mxu0 0.0
  %335 = vmatpush1.msra.mxu0 %v55
  %336 = vmatprep.subr.mxu0 0.0
  %337 = vmatpush1.msra.mxu0 %v54
  %338 = vmatprep.subr.mxu0 0.0
  %339 = vmatpush1.msra.mxu0 %v53
  %340 = vmatprep.subr.mxu0 0.0
  %341 = vmatpush1.msra.mxu0 %v52
  %342 = vmatprep.subr.mxu0 0.0
  %343 = vmatpush1.msra.mxu0 %v51
  %344 = vmatprep.subr.mxu0 0.0
  %345 = vmatpush1.msra.mxu0 %v50
  %346 = vmatprep.subr.mxu0 0.0
  %347 = vmatpush1.msra.mxu0 %v49
  %348 = vmatprep.subr.mxu0 0.0
  %349 = vmatpush1.msra.mxu0 %v48
  %350 = vmatprep.subr.mxu0 0.0
  %351 = vmatpush1.msra.mxu0 %v47
  %352 = vmatprep.subr.mxu0 0.0
  %353 = vmatpush1.msra.mxu0 %v46
  %354 = vmatprep.subr.mxu0 0.0
  %355 = vmatpush2.msra.mxu0 %v77
  %356 = vmatprep.subr.mxu0 0.0
  %357 = vmatpush2.msra.mxu0 %v76
  %358 = vmatprep.subr.mxu0 0.0
  %359 = vmatpush2.msra.mxu0 %v75
  %360 = vmatprep.subr.mxu0 0.0
  %361 = vmatpush2.msra.mxu0 %v74
  %362 = vmatprep.subr.mxu0 0.0
  %363 = vmatpush2.msra.mxu0 %v73
  %364 = vmatprep.subr.mxu0 0.0
  %365 = vmatpush2.msra.mxu0 %v72
  %366 = vmatprep.subr.mxu0 0.0
  %367 = vmatpush2.msra.mxu0 %v71
  %368 = vmatprep.subr.mxu0 0.0
  %369 = vmatpush2.msra.mxu0 %v70
  %370 = vmatprep.subr.mxu0 0.0
  %371 = vmatpush2.msra.mxu0 %v69
  %372 = vmatprep.subr.mxu0 0.0
  %373 = vmatpush2.msra.mxu0 %v68
  %374 = vmatprep.subr.mxu0 0.0
  %375 = vmatpush2.msra.mxu0 %v67
  %376 = vmatprep.subr.mxu0 0.0
  %377 = vmatpush2.msra.mxu0 %v66
  %378 = vmatprep.subr.mxu0 0.0
  %379 = vmatpush2.msra.mxu0 %v65
  %380 = vmatprep.subr.mxu0 0.0
  %381 = vmatpush2.msra.mxu0 %v64
  %382 = vmatprep.subr.mxu0 0.0
  %383 = vmatpush2.msra.mxu0 %v63
  %384 = vmatprep.subr.mxu0 0.0
  %385 = vmatpush2.msra.mxu0 %v62
  %386 = vmatprep.mubr.f32.mxu0 %v118
  %387 = vmatmul.mubr.f32.gmra.mxu0 %v117
  %v388 = vpop.f32.mrf.mxu0
  %v389 = vadd.f32 %v279, %v388
  %v390 = vpop.f32.mrf.mxu0
  %391 = vmatprep.mubr.f32.mxu0 %v125
  %392 = vmatmul.mubr.f32.gmra.mxu0 %v124
  %v393 = vpop.f32.mrf.mxu0
  %v394 = vadd.f32 %v284, %v393
  %v395 = vpop.f32.mrf.mxu0
  %396 = vmatprep.mubr.f32.mxu0 %v132
  %397 = vmatmul.mubr.f32.gmra.mxu0 %v131
  %v398 = vpop.f32.mrf.mxu0
  %v399 = vadd.f32 %v289, %v398
  %v400 = vpop.f32.mrf.mxu0
  %401 = vmatprep.mubr.f32.mxu0 %v139
  %402 = vmatmul.mubr.f32.gmra.mxu0 %v138
  %v403 = vpop.f32.mrf.mxu0
  %v404 = vadd.f32 %v294, %v403
  %v405 = vpop.f32.mrf.mxu0
  %406 = vmatprep.mubr.f32.mxu0 %v146
  %407 = vmatmul.mubr.f32.gmra.mxu0 %v145
  %v408 = vpop.f32.mrf.mxu0
  %v409 = vadd.f32 %v299, %v408
  %v410 = vpop.f32.mrf.mxu0
  %411 = vmatprep.mubr.f32.mxu0 %v153
  %412 = vmatmul.mubr.f32.gmra.mxu0 %v152
  %v413 = vpop.f32.mrf.mxu0
  %v414 = vadd.f32 %v304, %v413
  %v415 = vpop.f32.mrf.mxu0
  %416 = vmatprep.mubr.f32.mxu0 %v160
  %417 = vmatmul.mubr.f32.gmra.mxu0 %v159
  %v418 = vpop.f32.mrf.mxu0
  %v419 = vadd.f32 %v309, %v418
  %v420 = vpop.f32.mrf.mxu0
  %421 = vmatprep.mubr.f32.mxu0 %v167
  %422 = vmatmul.mubr.f32.gmra.mxu0 %v166
  %v423 = vpop.f32.mrf.mxu0
  %v424 = vadd.f32 %v314, %v423
  %v425 = vpop.f32.mrf.mxu0
  %426 = vmatprep.mubr.f32.mxu0 %v174
  %427 = vmatmul.mubr.f32.gmra.mxu0 %v173
  %v428 = vpop.f32.mrf.mxu0
  %v429 = vadd.f32 %v319, %v428
  %v430 = vpop.f32.mrf.mxu0
  %431 = vdwg.mxu0
  %432 = vmatprep.subr.mxu0 0.0
  %433 = vmatpush1.msra.mxu0 %v93
  %434 = vmatprep.subr.mxu0 0.0
  %435 = vmatpush1.msra.mxu0 %v92
  %436 = vmatprep.subr.mxu0 0.0
  %437 = vmatpush1.msra.mxu0 %v91
  %438 = vmatprep.subr.mxu0 0.0
  %439 = vmatpush1.msra.mxu0 %v90
  %440 = vmatprep.subr.mxu0 0.0
  %441 = vmatpush1.msra.mxu0 %v89
  %442 = vmatprep.subr.mxu0 0.0
  %443 = vmatpush1.msra.mxu0 %v88
  %444 = vmatprep.subr.mxu0 0.0
  %445 = vmatpush1.msra.mxu0 %v87
  %446 = vmatprep.subr.mxu0 0.0
  %447 = vmatpush1.msra.mxu0 %v86
  %448 = vmatprep.subr.mxu0 0.0
  %449 = vmatpush1.msra.mxu0 %v85
  %450 = vmatprep.subr.mxu0 0.0
  %451 = vmatpush1.msra.mxu0 %v84
  %452 = vmatprep.subr.mxu0 0.0
  %453 = vmatpush1.msra.mxu0 %v83
  %454 = vmatprep.subr.mxu0 0.0
  %455 = vmatpush1.msra.mxu0 %v82
  %456 = vmatprep.subr.mxu0 0.0
  %457 = vmatpush1.msra.mxu0 %v81
  %458 = vmatprep.subr.mxu0 0.0
  %459 = vmatpush1.msra.mxu0 %v80
  %460 = vmatprep.subr.mxu0 0.0
  %461 = vmatpush1.msra.mxu0 %v79
  %462 = vmatprep.subr.mxu0 0.0
  %463 = vmatpush1.msra.mxu0 %v78
  %464 = vmatprep.subr.mxu0 0.0
  %465 = vmatpush2.msra.mxu0 %v109
  %466 = vmatprep.subr.mxu0 0.0
  %467 = vmatpush2.msra.mxu0 %v108
  %468 = vmatprep.subr.mxu0 0.0
  %469 = vmatpush2.msra.mxu0 %v107
  %470 = vmatprep.subr.mxu0 0.0
  %471 = vmatpush2.msra.mxu0 %v106
  %472 = vmatprep.subr.mxu0 0.0
  %473 = vmatpush2.msra.mxu0 %v105
  %474 = vmatprep.subr.mxu0 0.0
  %475 = vmatpush2.msra.mxu0 %v104
  %476 = vmatprep.subr.mxu0 0.0
  %477 = vmatpush2.msra.mxu0 %v103
  %478 = vmatprep.subr.mxu0 0.0
  %479 = vmatpush2.msra.mxu0 %v102
  %480 = vmatprep.subr.mxu0 0.0
  %481 = vmatpush2.msra.mxu0 %v101
  %482 = vmatprep.subr.mxu0 0.0
  %483 = vmatpush2.msra.mxu0 %v100
  %484 = vmatprep.subr.mxu0 0.0
  %485 = vmatpush2.msra.mxu0 %v99
  %486 = vmatprep.subr.mxu0 0.0
  %487 = vmatpush2.msra.mxu0 %v98
  %488 = vmatprep.subr.mxu0 0.0
  %489 = vmatpush2.msra.mxu0 %v97
  %490 = vmatprep.subr.mxu0 0.0
  %491 = vmatpush2.msra.mxu0 %v96
  %492 = vmatprep.subr.mxu0 0.0
  %493 = vmatpush2.msra.mxu0 %v95
  %494 = vmatprep.subr.mxu0 0.0
  %495 = vmatpush2.msra.mxu0 %v94
  %496 = vmatprep.mubr.f32.mxu0 %v120
  %497 = vmatmul.mubr.f32.gmra.mxu0 %v119
  %v498 = vpop.f32.mrf.mxu0
  %v499 = vadd.f32 %v389, %v498
  %v500 = vpop.f32.mrf.mxu0
  %501 = vmatprep.mubr.f32.mxu0 %v127
  %502 = vmatmul.mubr.f32.gmra.mxu0 %v126
  %v503 = vpop.f32.mrf.mxu0
  %v504 = vadd.f32 %v394, %v503
  %v505 = vpop.f32.mrf.mxu0
  %506 = vmatprep.mubr.f32.mxu0 %v134
  %507 = vmatmul.mubr.f32.gmra.mxu0 %v133
  %v508 = vpop.f32.mrf.mxu0
  %v509 = vadd.f32 %v399, %v508
  %v510 = vpop.f32.mrf.mxu0
  %511 = vmatprep.mubr.f32.mxu0 %v141
  %512 = vmatmul.mubr.f32.gmra.mxu0 %v140
  %v513 = vpop.f32.mrf.mxu0
  %v514 = vadd.f32 %v404, %v513
  %v515 = vpop.f32.mrf.mxu0
  %516 = vmatprep.mubr.f32.mxu0 %v148
  %517 = vmatmul.mubr.f32.gmra.mxu0 %v147
  %v518 = vpop.f32.mrf.mxu0
  %v519 = vadd.f32 %v409, %v518
  %v520 = vpop.f32.mrf.mxu0
  %521 = vmatprep.mubr.f32.mxu0 %v155
  %522 = vmatmul.mubr.f32.gmra.mxu0 %v154
  %v523 = vpop.f32.mrf.mxu0
  %v524 = vadd.f32 %v414, %v523
  %v525 = vpop.f32.mrf.mxu0
  %526 = vmatprep.mubr.f32.mxu0 %v162
  %527 = vmatmul.mubr.f32.gmra.mxu0 %v161
  %v528 = vpop.f32.mrf.mxu0
  %v529 = vadd.f32 %v419, %v528
  %v530 = vpop.f32.mrf.mxu0
  %531 = vmatprep.mubr.f32.mxu0 %v169
  %532 = vmatmul.mubr.f32.gmra.mxu0 %v168
  %v533 = vpop.f32.mrf.mxu0
  %v534 = vadd.f32 %v424, %v533
  %v535 = vpop.f32.mrf.mxu0
  %536 = vmatprep.mubr.f32.mxu0 %v176
  %537 = vmatmul.mubr.f32.gmra.mxu0 %v175
  %v538 = vpop.f32.mrf.mxu0
  %v539 = vadd.f32 %v429, %v538
  %v540 = vpop.f32.mrf.mxu0
  %541 = vdwg.mxu0
  %542 = vmatprep.subr.mxu0 0.0
  %543 = vmatpush1.msra.mxu0 0.0
  %544 = vmatprep.subr.mxu0 0.0
  %545 = vmatpush1.msra.mxu0 0.0
  %546 = vmatprep.subr.mxu0 0.0
  %547 = vmatpush1.msra.mxu0 0.0
  %548 = vmatprep.subr.mxu0 0.0
  %549 = vmatpush1.msra.mxu0 0.0
  %550 = vmatprep.subr.mxu0 0.0
  %551 = vmatpush1.msra.mxu0 0.0
  %552 = vmatprep.subr.mxu0 0.0
  %553 = vmatpush1.msra.mxu0 0.0
  %554 = vmatprep.subr.mxu0 0.0
  %555 = vmatpush1.msra.mxu0 0.0
  %556 = vmatprep.subr.mxu0 0.0
  %557 = vmatpush1.msra.mxu0 0.0
  %558 = vmatprep.subr.mxu0 0.0
  %559 = vmatpush1.msra.mxu0 0.0
  %560 = vmatprep.subr.mxu0 0.0
  %561 = vmatpush1.msra.mxu0 0.0
  %562 = vmatprep.subr.mxu0 0.0
  %563 = vmatpush1.msra.mxu0 0.0
  %564 = vmatprep.subr.mxu0 0.0
  %565 = vmatpush1.msra.mxu0 0.0
  %566 = vmatprep.subr.mxu0 0.0
  %567 = vmatpush1.msra.mxu0 %v113
  %568 = vmatprep.subr.mxu0 0.0
  %569 = vmatpush1.msra.mxu0 %v112
  %570 = vmatprep.subr.mxu0 0.0
  %571 = vmatpush1.msra.mxu0 %v111
  %572 = vmatprep.subr.mxu0 0.0
  %573 = vmatpush1.msra.mxu0 %v110
  %574 = vmatprep.subr.mxu0 0.0
  %575 = vmatpush2.msra.mxu0 0.0
  %576 = vmatprep.subr.mxu0 0.0
  %577 = vmatpush2.msra.mxu0 0.0
  %578 = vmatprep.subr.mxu0 0.0
  %579 = vmatpush2.msra.mxu0 0.0
  %580 = vmatprep.subr.mxu0 0.0
  %581 = vmatpush2.msra.mxu0 0.0
  %582 = vmatprep.subr.mxu0 0.0
  %583 = vmatpush2.msra.mxu0 0.0
  %584 = vmatprep.subr.mxu0 0.0
  %585 = vmatpush2.msra.mxu0 0.0
  %586 = vmatprep.subr.mxu0 0.0
  %587 = vmatpush2.msra.mxu0 0.0
  %588 = vmatprep.subr.mxu0 0.0
  %589 = vmatpush2.msra.mxu0 0.0
  %590 = vmatprep.subr.mxu0 0.0
  %591 = vmatpush2.msra.mxu0 0.0
  %592 = vmatprep.subr.mxu0 0.0
  %593 = vmatpush2.msra.mxu0 0.0
  %594 = vmatprep.subr.mxu0 0.0
  %595 = vmatpush2.msra.mxu0 0.0
  %596 = vmatprep.subr.mxu0 0.0
  %597 = vmatpush2.msra.mxu0 0.0
  %598 = vmatprep.subr.mxu0 0.0
  %599 = vmatpush2.msra.mxu0 0.0
  %600 = vmatprep.subr.mxu0 0.0
  %601 = vmatpush2.msra.mxu0 0.0
  %602 = vmatprep.subr.mxu0 0.0
  %603 = vmatpush2.msra.mxu0 0.0
  %604 = vmatprep.subr.mxu0 0.0
  %605 = vmatpush2.msra.mxu0 0.0
  %606 = vmatprep.mubr.f32.mxu0 0.0
  %607 = vmatmul.mubr.f32.gmra.mxu0 %v186
  %v608 = vpop.f32.mrf.mxu0
  %v609 = vadd.f32 %v499, %v608
  %v610 = vpop.f32.mrf.mxu0
  %611 = vmatprep.mubr.f32.mxu0 0.0
  %612 = vmatmul.mubr.f32.gmra.mxu0 %v189
  %v613 = vpop.f32.mrf.mxu0
  %v614 = vadd.f32 %v504, %v613
  %v615 = vpop.f32.mrf.mxu0
  %616 = vmatprep.mubr.f32.mxu0 0.0
  %617 = vmatmul.mubr.f32.gmra.mxu0 %v192
  %v618 = vpop.f32.mrf.mxu0
  %v619 = vadd.f32 %v509, %v618
  %v620 = vpop.f32.mrf.mxu0
  %621 = vmatprep.mubr.f32.mxu0 0.0
  %622 = vmatmul.mubr.f32.gmra.mxu0 %v195
  %v623 = vpop.f32.mrf.mxu0
  %v624 = vadd.f32 %v514, %v623
  %v625 = vpop.f32.mrf.mxu0
  %626 = vmatprep.mubr.f32.mxu0 0.0
  %627 = vmatmul.mubr.f32.gmra.mxu0 %v198
  %v628 = vpop.f32.mrf.mxu0
  %v629 = vadd.f32 %v519, %v628
  %v630 = vpop.f32.mrf.mxu0
  %631 = vmatprep.mubr.f32.mxu0 0.0
  %632 = vmatmul.mubr.f32.gmra.mxu0 %v201
  %v633 = vpop.f32.mrf.mxu0
  %v634 = vadd.f32 %v524, %v633
  %v635 = vpop.f32.mrf.mxu0
  %636 = vmatprep.mubr.f32.mxu0 0.0
  %637 = vmatmul.mubr.f32.gmra.mxu0 %v204
  %v638 = vpop.f32.mrf.mxu0
  %v639 = vadd.f32 %v529, %v638
  %v640 = vpop.f32.mrf.mxu0
  %641 = vmatprep.mubr.f32.mxu0 0.0
  %642 = vmatmul.mubr.f32.gmra.mxu0 %v207
  %v643 = vpop.f32.mrf.mxu0
  %v644 = vadd.f32 %v534, %v643
  %v645 = vpop.f32.mrf.mxu0
  %646 = vmatprep.mubr.f32.mxu0 0.0
  %647 = vmatmul.mubr.f32.gmra.mxu0 %v210
  %v648 = vpop.f32.mrf.mxu0
  %v649 = vadd.f32 %v539, %v648
  %v650 = vpop.f32.mrf.mxu0
  %651 = vdwg.mxu0
  %vm652 = vcmp.gt.f32.partialorder %v609, 0.0
  %vm653 = vcmp.gt.f32.partialorder %v614, 0.0
  %vm654 = vcmp.gt.f32.partialorder %v619, 0.0
  %vm655 = vcmp.gt.f32.partialorder %v624, 0.0
  %vm656 = vcmp.gt.f32.partialorder %v629, 0.0
  %vm657 = vcmp.gt.f32.partialorder %v634, 0.0
  %vm658 = vcmp.gt.f32.partialorder %v639, 0.0
  %vm659 = vcmp.gt.f32.partialorder %v644, 0.0
  %vm660 = vcmp.gt.f32.partialorder %v649, 0.0
  %v661 = vmul.f32 %v609, 0.1
  %v662 = vmul.f32 %v614, 0.1
  %v663 = vmul.f32 %v619, 0.1
  %v664 = vmul.f32 %v624, 0.1
  %v665 = vmul.f32 %v629, 0.1
  %v666 = vmul.f32 %v634, 0.1
  %v667 = vmul.f32 %v639, 0.1
  %v668 = vmul.f32 %v644, 0.1
  %v669 = vmul.f32 %v649, 0.1
  %v670 = vsel %vm652, %v609, %v661
  %v671 = vsel %vm653, %v614, %v662
  %v672 = vsel %vm654, %v619, %v663
  %v673 = vsel %vm655, %v624, %v664
  %v674 = vsel %vm656, %v629, %v665
  %v675 = vsel %vm657, %v634, %v666
  %v676 = vsel %vm658, %v639, %v667
  %v677 = vsel %vm659, %v644, %v668
  %v678 = vsel %vm660, %v649, %v669
  %s679 = scalar_lea.vmem %s0, 504
  %v680 = vld [vmem:[%s679] sm:$0xff]
  %v681 = vld [vmem:[%s679 + $0x8] sm:$0xff]
  %v682 = vld [vmem:[%s679 + $0x10] sm:$0xff]
  %v683 = vld [vmem:[%s679 + $0x18] sm:$0xff]
  %v684 = vld [vmem:[%s679 + $0x20] sm:$0xff]
  %v685 = vld [vmem:[%s679 + $0x28] sm:$0xff]
  %v686 = vld [vmem:[%s679 + $0x30] sm:$0xff]
  %v687 = vld [vmem:[%s679 + $0x38] sm:$0xff]
  %v688 = vld [vmem:[%s679 + $0x40] sm:$0xff]
  %v689 = vld [vmem:[%s679 + $0x48] sm:$0xff]
  %v690 = vld [vmem:[%s679 + $0x50] sm:$0xff]
  %v691 = vld [vmem:[%s679 + $0x58] sm:$0xff]
  %v692 = vld [vmem:[%s679 + $0x60] sm:$0xff]
  %v693 = vld [vmem:[%s679 + $0x68] sm:$0xff]
  %v694 = vld [vmem:[%s679 + $0x70] sm:$0xff]
  %v695 = vld [vmem:[%s679 + $0x78] sm:$0xff]
  %v696 = vld [vmem:[%s679 + $0x80] sm:$0xff]
  %v697 = vld [vmem:[%s679 + $0x88] sm:$0xff]
  %v698 = vld [vmem:[%s679 + $0x90] sm:$0xff]
  %v699 = vld [vmem:[%s679 + $0x98] sm:$0xff]
  %v700 = vld [vmem:[%s679 + $0xa0] sm:$0xff]
  %v701 = vld [vmem:[%s679 + $0xa8] sm:$0xff]
  %v702 = vld [vmem:[%s679 + $0xb0] sm:$0xff]
  %v703 = vld [vmem:[%s679 + $0xb8] sm:$0xff]
  %v704 = vld [vmem:[%s679 + $0xc0] sm:$0xff]
  %v705 = vld [vmem:[%s679 + $0xc8] sm:$0xff]
  %v706 = vld [vmem:[%s679 + $0xd0] sm:$0xff]
  %v707 = vld [vmem:[%s679 + $0xd8] sm:$0xff]
  %v708 = vld [vmem:[%s679 + $0xe0] sm:$0xff]
  %v709 = vld [vmem:[%s679 + $0xe8] sm:$0xff]
  %v710 = vld [vmem:[%s679 + $0xf0] sm:$0xff]
  %v711 = vld [vmem:[%s679 + $0xf8] sm:$0xff]
  %v712 = vld [vmem:[%s679 + $0x100] sm:$0xff]
  %v713 = vld [vmem:[%s679 + $0x108] sm:$0xff]
  %v714 = vld [vmem:[%s679 + $0x110] sm:$0xff]
  %v715 = vld [vmem:[%s679 + $0x118] sm:$0xff]
  %v716 = vld [vmem:[%s679 + $0x120] sm:$0xff]
  %v717 = vld [vmem:[%s679 + $0x128] sm:$0xff]
  %v718 = vld [vmem:[%s679 + $0x130] sm:$0xff]
  %v719 = vld [vmem:[%s679 + $0x138] sm:$0xff]
  %v720 = vld [vmem:[%s679 + $0x140] sm:$0xff]
  %v721 = vld [vmem:[%s679 + $0x148] sm:$0xff]
  %v722 = vld [vmem:[%s679 + $0x150] sm:$0xff]
  %v723 = vld [vmem:[%s679 + $0x158] sm:$0xff]
  %v724 = vld [vmem:[%s679 + $0x160] sm:$0xff]
  %v725 = vld [vmem:[%s679 + $0x168] sm:$0xff]
  %v726 = vld [vmem:[%s679 + $0x170] sm:$0xff]
  %v727 = vld [vmem:[%s679 + $0x178] sm:$0xff]
  %v728 = vld [vmem:[%s679 + $0x180] sm:$0xff]
  %v729 = vld [vmem:[%s679 + $0x188] sm:$0xff]
  %v730 = vld [vmem:[%s679 + $0x190] sm:$0xff]
  %v731 = vld [vmem:[%s679 + $0x198] sm:$0xff]
  %v732 = vld [vmem:[%s679 + $0x1a0] sm:$0xff]
  %v733 = vld [vmem:[%s679 + $0x1a8] sm:$0xff]
  %v734 = vld [vmem:[%s679 + $0x1b0] sm:$0xff]
  %v735 = vld [vmem:[%s679 + $0x1b8] sm:$0xff]
  %v736 = vld [vmem:[%s679 + $0x1c0] sm:$0xff]
  %v737 = vld [vmem:[%s679 + $0x1c8] sm:$0xff]
  %v738 = vld [vmem:[%s679 + $0x1d0] sm:$0xff]
  %v739 = vld [vmem:[%s679 + $0x1d8] sm:$0xff]
  %v740 = vld [vmem:[%s679 + $0x1e0] sm:$0xff]
  %v741 = vld [vmem:[%s679 + $0x1e8] sm:$0xff]
  %v742 = vld [vmem:[%s679 + $0x1f0] sm:$0xff]
  %v744 = vsel %vm184, %v686, 0
  %v747 = vsel %vm184, %v693, 0
  %v750 = vsel %vm184, %v700, 0
  %v753 = vsel %vm184, %v707, 0
  %v756 = vsel %vm184, %v714, 0
  %v759 = vsel %vm184, %v721, 0
  %v762 = vsel %vm184, %v728, 0
  %v765 = vsel %vm184, %v735, 0
  %v768 = vsel %vm184, %v742, 0
  %770 = vmatprep.subr.mxu0 0.0
  %771 = vmatpush1.msra.mxu0 %v29
  %772 = vmatprep.subr.mxu0 0.0
  %773 = vmatpush1.msra.mxu0 %v28
  %774 = vmatprep.subr.mxu0 0.0
  %775 = vmatpush1.msra.mxu0 %v27
  %776 = vmatprep.subr.mxu0 0.0
  %777 = vmatpush1.msra.mxu0 %v26
  %778 = vmatprep.subr.mxu0 0.0
  %779 = vmatpush1.msra.mxu0 %v25
  %780 = vmatprep.subr.mxu0 0.0
  %781 = vmatpush1.msra.mxu0 %v24
  %782 = vmatprep.subr.mxu0 0.0
  %783 = vmatpush1.msra.mxu0 %v23
  %784 = vmatprep.subr.mxu0 0.0
  %785 = vmatpush1.msra.mxu0 %v22
  %786 = vmatprep.subr.mxu0 0.0
  %787 = vmatpush1.msra.mxu0 %v21
  %788 = vmatprep.subr.mxu0 0.0
  %789 = vmatpush1.msra.mxu0 %v20
  %790 = vmatprep.subr.mxu0 0.0
  %791 = vmatpush1.msra.mxu0 %v19
  %792 = vmatprep.subr.mxu0 0.0
  %793 = vmatpush1.msra.mxu0 %v18
  %794 = vmatprep.subr.mxu0 0.0
  %795 = vmatpush1.msra.mxu0 %v17
  %796 = vmatprep.subr.mxu0 0.0
  %797 = vmatpush1.msra.mxu0 %v16
  %798 = vmatprep.subr.mxu0 0.0
  %799 = vmatpush1.msra.mxu0 %v15
  %800 = vmatprep.subr.mxu0 0.0
  %801 = vmatpush1.msra.mxu0 %v14
  %802 = vmatprep.subr.mxu0 0.0
  %803 = vmatpush2.msra.mxu0 %v45
  %804 = vmatprep.subr.mxu0 0.0
  %805 = vmatpush2.msra.mxu0 %v44
  %806 = vmatprep.subr.mxu0 0.0
  %807 = vmatpush2.msra.mxu0 %v43
  %808 = vmatprep.subr.mxu0 0.0
  %809 = vmatpush2.msra.mxu0 %v42
  %810 = vmatprep.subr.mxu0 0.0
  %811 = vmatpush2.msra.mxu0 %v41
  %812 = vmatprep.subr.mxu0 0.0
  %813 = vmatpush2.msra.mxu0 %v40
  %814 = vmatprep.subr.mxu0 0.0
  %815 = vmatpush2.msra.mxu0 %v39
  %816 = vmatprep.subr.mxu0 0.0
  %817 = vmatpush2.msra.mxu0 %v38
  %818 = vmatprep.subr.mxu0 0.0
  %819 = vmatpush2.msra.mxu0 %v37
  %820 = vmatprep.subr.mxu0 0.0
  %821 = vmatpush2.msra.mxu0 %v36
  %822 = vmatprep.subr.mxu0 0.0
  %823 = vmatpush2.msra.mxu0 %v35
  %824 = vmatprep.subr.mxu0 0.0
  %825 = vmatpush2.msra.mxu0 %v34
  %826 = vmatprep.subr.mxu0 0.0
  %827 = vmatpush2.msra.mxu0 %v33
  %828 = vmatprep.subr.mxu0 0.0
  %829 = vmatpush2.msra.mxu0 %v32
  %830 = vmatprep.subr.mxu0 0.0
  %831 = vmatpush2.msra.mxu0 %v31
  %832 = vmatprep.subr.mxu0 0.0
  %833 = vmatpush2.msra.mxu0 %v30
  %834 = vmatprep.mubr.f32.mxu0 %v681
  %835 = vmatmul.mubr.f32.gmra.mxu0 %v680
  %v836 = vpop.f32.mrf.mxu0
  %v837 = vadd.f32 %v182, %v836
  %v838 = vpop.f32.mrf.mxu0
  %839 = vmatprep.mubr.f32.mxu0 %v688
  %840 = vmatmul.mubr.f32.gmra.mxu0 %v687
  %v841 = vpop.f32.mrf.mxu0
  %v842 = vadd.f32 %v182, %v841
  %v843 = vpop.f32.mrf.mxu0
  %844 = vmatprep.mubr.f32.mxu0 %v695
  %845 = vmatmul.mubr.f32.gmra.mxu0 %v694
  %v846 = vpop.f32.mrf.mxu0
  %v847 = vadd.f32 %v182, %v846
  %v848 = vpop.f32.mrf.mxu0
  %849 = vmatprep.mubr.f32.mxu0 %v702
  %850 = vmatmul.mubr.f32.gmra.mxu0 %v701
  %v851 = vpop.f32.mrf.mxu0
  %v852 = vadd.f32 %v182, %v851
  %v853 = vpop.f32.mrf.mxu0
  %854 = vmatprep.mubr.f32.mxu0 %v709
  %855 = vmatmul.mubr.f32.gmra.mxu0 %v708
  %v856 = vpop.f32.mrf.mxu0
  %v857 = vadd.f32 %v182, %v856
  %v858 = vpop.f32.mrf.mxu0
  %859 = vmatprep.mubr.f32.mxu0 %v716
  %860 = vmatmul.mubr.f32.gmra.mxu0 %v715
  %v861 = vpop.f32.mrf.mxu0
  %v862 = vadd.f32 %v182, %v861
  %v863 = vpop.f32.mrf.mxu0
  %864 = vmatprep.mubr.f32.mxu0 %v723
  %865 = vmatmul.mubr.f32.gmra.mxu0 %v722
  %v866 = vpop.f32.mrf.mxu0
  %v867 = vadd.f32 %v182, %v866
  %v868 = vpop.f32.mrf.mxu0
  %869 = vmatprep.mubr.f32.mxu0 %v730
  %870 = vmatmul.mubr.f32.gmra.mxu0 %v729
  %v871 = vpop.f32.mrf.mxu0
  %v872 = vadd.f32 %v182, %v871
  %v873 = vpop.f32.mrf.mxu0
  %874 = vmatprep.mubr.f32.mxu0 %v737
  %875 = vmatmul.mubr.f32.gmra.mxu0 %v736
  %v876 = vpop.f32.mrf.mxu0
  %v877 = vadd.f32 %v182, %v876
  %v878 = vpop.f32.mrf.mxu0
  %879 = vdwg.mxu0
  %880 = vmatprep.subr.mxu0 0.0
  %881 = vmatpush1.msra.mxu0 %v61
  %882 = vmatprep.subr.mxu0 0.0
  %883 = vmatpush1.msra.mxu0 %v60
  %884 = vmatprep.subr.mxu0 0.0
  %885 = vmatpush1.msra.mxu0 %v59
  %886 = vmatprep.subr.mxu0 0.0
  %887 = vmatpush1.msra.mxu0 %v58
  %888 = vmatprep.subr.mxu0 0.0
  %889 = vmatpush1.msra.mxu0 %v57
  %890 = vmatprep.subr.mxu0 0.0
  %891 = vmatpush1.msra.mxu0 %v56
  %892 = vmatprep.subr.mxu0 0.0
  %893 = vmatpush1.msra.mxu0 %v55
  %894 = vmatprep.subr.mxu0 0.0
  %895 = vmatpush1.msra.mxu0 %v54
  %896 = vmatprep.subr.mxu0 0.0
  %897 = vmatpush1.msra.mxu0 %v53
  %898 = vmatprep.subr.mxu0 0.0
  %899 = vmatpush1.msra.mxu0 %v52
  %900 = vmatprep.subr.mxu0 0.0
  %901 = vmatpush1.msra.mxu0 %v51
  %902 = vmatprep.subr.mxu0 0.0
  %903 = vmatpush1.msra.mxu0 %v50
  %904 = vmatprep.subr.mxu0 0.0
  %905 = vmatpush1.msra.mxu0 %v49
  %906 = vmatprep.subr.mxu0 0.0
  %907 = vmatpush1.msra.mxu0 %v48
  %908 = vmatprep.subr.mxu0 0.0
  %909 = vmatpush1.msra.mxu0 %v47
  %910 = vmatprep.subr.mxu0 0.0
  %911 = vmatpush1.msra.mxu0 %v46
  %912 = vmatprep.subr.mxu0 0.0
  %913 = vmatpush2.msra.mxu0 %v77
  %914 = vmatprep.subr.mxu0 0.0
  %915 = vmatpush2.msra.mxu0 %v76
  %916 = vmatprep.subr.mxu0 0.0
  %917 = vmatpush2.msra.mxu0 %v75
  %918 = vmatprep.subr.mxu0 0.0
  %919 = vmatpush2.msra.mxu0 %v74
  %920 = vmatprep.subr.mxu0 0.0
  %921 = vmatpush2.msra.mxu0 %v73
  %922 = vmatprep.subr.mxu0 0.0
  %923 = vmatpush2.msra.mxu0 %v72
  %924 = vmatprep.subr.mxu0 0.0
  %925 = vmatpush2.msra.mxu0 %v71
  %926 = vmatprep.subr.mxu0 0.0
  %927 = vmatpush2.msra.mxu0 %v70
  %928 = vmatprep.subr.mxu0 0.0
  %929 = vmatpush2.msra.mxu0 %v69
  %930 = vmatprep.subr.mxu0 0.0
  %931 = vmatpush2.msra.mxu0 %v68
  %932 = vmatprep.subr.mxu0 0.0
  %933 = vmatpush2.msra.mxu0 %v67
  %934 = vmatprep.subr.mxu0 0.0
  %935 = vmatpush2.msra.mxu0 %v66
  %936 = vmatprep.subr.mxu0 0.0
  %937 = vmatpush2.msra.mxu0 %v65
  %938 = vmatprep.subr.mxu0 0.0
  %939 = vmatpush2.msra.mxu0 %v64
  %940 = vmatprep.subr.mxu0 0.0
  %941 = vmatpush2.msra.mxu0 %v63
  %942 = vmatprep.subr.mxu0 0.0
  %943 = vmatpush2.msra.mxu0 %v62
  %944 = vmatprep.mubr.f32.mxu0 %v683
  %945 = vmatmul.mubr.f32.gmra.mxu0 %v682
  %v946 = vpop.f32.mrf.mxu0
  %v947 = vadd.f32 %v837, %v946
  %v948 = vpop.f32.mrf.mxu0
  %949 = vmatprep.mubr.f32.mxu0 %v690
  %950 = vmatmul.mubr.f32.gmra.mxu0 %v689
  %v951 = vpop.f32.mrf.mxu0
  %v952 = vadd.f32 %v842, %v951
  %v953 = vpop.f32.mrf.mxu0
  %954 = vmatprep.mubr.f32.mxu0 %v697
  %955 = vmatmul.mubr.f32.gmra.mxu0 %v696
  %v956 = vpop.f32.mrf.mxu0
  %v957 = vadd.f32 %v847, %v956
  %v958 = vpop.f32.mrf.mxu0
  %959 = vmatprep.mubr.f32.mxu0 %v704
  %960 = vmatmul.mubr.f32.gmra.mxu0 %v703
  %v961 = vpop.f32.mrf.mxu0
  %v962 = vadd.f32 %v852, %v961
  %v963 = vpop.f32.mrf.mxu0
  %964 = vmatprep.mubr.f32.mxu0 %v711
  %965 = vmatmul.mubr.f32.gmra.mxu0 %v710
  %v966 = vpop.f32.mrf.mxu0
  %v967 = vadd.f32 %v857, %v966
  %v968 = vpop.f32.mrf.mxu0
  %969 = vmatprep.mubr.f32.mxu0 %v718
  %970 = vmatmul.mubr.f32.gmra.mxu0 %v717
  %v971 = vpop.f32.mrf.mxu0
  %v972 = vadd.f32 %v862, %v971
  %v973 = vpop.f32.mrf.mxu0
  %974 = vmatprep.mubr.f32.mxu0 %v725
  %975 = vmatmul.mubr.f32.gmra.mxu0 %v724
  %v976 = vpop.f32.mrf.mxu0
  %v977 = vadd.f32 %v867, %v976
  %v978 = vpop.f32.mrf.mxu0
  %979 = vmatprep.mubr.f32.mxu0 %v732
  %980 = vmatmul.mubr.f32.gmra.mxu0 %v731
  %v981 = vpop.f32.mrf.mxu0
  %v982 = vadd.f32 %v872, %v981
  %v983 = vpop.f32.mrf.mxu0
  %984 = vmatprep.mubr.f32.mxu0 %v739
  %985 = vmatmul.mubr.f32.gmra.mxu0 %v738
  %v986 = vpop.f32.mrf.mxu0
  %v987 = vadd.f32 %v877, %v986
  %v988 = vpop.f32.mrf.mxu0
  %989 = vdwg.mxu0
  %990 = vmatprep.subr.mxu0 0.0
  %991 = vmatpush1.msra.mxu0 %v93
  %992 = vmatprep.subr.mxu0 0.0
  %993 = vmatpush1.msra.mxu0 %v92
  %994 = vmatprep.subr.mxu0 0.0
  %995 = vmatpush1.msra.mxu0 %v91
  %996 = vmatprep.subr.mxu0 0.0
  %997 = vmatpush1.msra.mxu0 %v90
  %998 = vmatprep.subr.mxu0 0.0
  %999 = vmatpush1.msra.mxu0 %v89
  %1000 = vmatprep.subr.mxu0 0.0
  %1001 = vmatpush1.msra.mxu0 %v88
  %1002 = vmatprep.subr.mxu0 0.0
  %1003 = vmatpush1.msra.mxu0 %v87
  %1004 = vmatprep.subr.mxu0 0.0
  %1005 = vmatpush1.msra.mxu0 %v86
  %1006 = vmatprep.subr.mxu0 0.0
  %1007 = vmatpush1.msra.mxu0 %v85
  %1008 = vmatprep.subr.mxu0 0.0
  %1009 = vmatpush1.msra.mxu0 %v84
  %1010 = vmatprep.subr.mxu0 0.0
  %1011 = vmatpush1.msra.mxu0 %v83
  %1012 = vmatprep.subr.mxu0 0.0
  %1013 = vmatpush1.msra.mxu0 %v82
  %1014 = vmatprep.subr.mxu0 0.0
  %1015 = vmatpush1.msra.mxu0 %v81
  %1016 = vmatprep.subr.mxu0 0.0
  %1017 = vmatpush1.msra.mxu0 %v80
  %1018 = vmatprep.subr.mxu0 0.0
  %1019 = vmatpush1.msra.mxu0 %v79
  %1020 = vmatprep.subr.mxu0 0.0
  %1021 = vmatpush1.msra.mxu0 %v78
  %1022 = vmatprep.subr.mxu0 0.0
  %1023 = vmatpush2.msra.mxu0 %v109
  %1024 = vmatprep.subr.mxu0 0.0
  %1025 = vmatpush2.msra.mxu0 %v108
  %1026 = vmatprep.subr.mxu0 0.0
  %1027 = vmatpush2.msra.mxu0 %v107
  %1028 = vmatprep.subr.mxu0 0.0
  %1029 = vmatpush2.msra.mxu0 %v106
  %1030 = vmatprep.subr.mxu0 0.0
  %1031 = vmatpush2.msra.mxu0 %v105
  %1032 = vmatprep.subr.mxu0 0.0
  %1033 = vmatpush2.msra.mxu0 %v104
  %1034 = vmatprep.subr.mxu0 0.0
  %1035 = vmatpush2.msra.mxu0 %v103
  %1036 = vmatprep.subr.mxu0 0.0
  %1037 = vmatpush2.msra.mxu0 %v102
  %1038 = vmatprep.subr.mxu0 0.0
  %1039 = vmatpush2.msra.mxu0 %v101
  %1040 = vmatprep.subr.mxu0 0.0
  %1041 = vmatpush2.msra.mxu0 %v100
  %1042 = vmatprep.subr.mxu0 0.0
  %1043 = vmatpush2.msra.mxu0 %v99
  %1044 = vmatprep.subr.mxu0 0.0
  %1045 = vmatpush2.msra.mxu0 %v98
  %1046 = vmatprep.subr.mxu0 0.0
  %1047 = vmatpush2.msra.mxu0 %v97
  %1048 = vmatprep.subr.mxu0 0.0
  %1049 = vmatpush2.msra.mxu0 %v96
  %1050 = vmatprep.subr.mxu0 0.0
  %1051 = vmatpush2.msra.mxu0 %v95
  %1052 = vmatprep.subr.mxu0 0.0
  %1053 = vmatpush2.msra.mxu0 %v94
  %1054 = vmatprep.mubr.f32.mxu0 %v685
  %1055 = vmatmul.mubr.f32.gmra.mxu0 %v684
  %v1056 = vpop.f32.mrf.mxu0
  %v1057 = vadd.f32 %v947, %v1056
  %v1058 = vpop.f32.mrf.mxu0
  %1059 = vmatprep.mubr.f32.mxu0 %v692
  %1060 = vmatmul.mubr.f32.gmra.mxu0 %v691
  %v1061 = vpop.f32.mrf.mxu0
  %v1062 = vadd.f32 %v952, %v1061
  %v1063 = vpop.f32.mrf.mxu0
  %1064 = vmatprep.mubr.f32.mxu0 %v699
  %1065 = vmatmul.mubr.f32.gmra.mxu0 %v698
  %v1066 = vpop.f32.mrf.mxu0
  %v1067 = vadd.f32 %v957, %v1066
  %v1068 = vpop.f32.mrf.mxu0
  %1069 = vmatprep.mubr.f32.mxu0 %v706
  %1070 = vmatmul.mubr.f32.gmra.mxu0 %v705
  %v1071 = vpop.f32.mrf.mxu0
  %v1072 = vadd.f32 %v962, %v1071
  %v1073 = vpop.f32.mrf.mxu0
  %1074 = vmatprep.mubr.f32.mxu0 %v713
  %1075 = vmatmul.mubr.f32.gmra.mxu0 %v712
  %v1076 = vpop.f32.mrf.mxu0
  %v1077 = vadd.f32 %v967, %v1076
  %v1078 = vpop.f32.mrf.mxu0
  %1079 = vmatprep.mubr.f32.mxu0 %v720
  %1080 = vmatmul.mubr.f32.gmra.mxu0 %v719
  %v1081 = vpop.f32.mrf.mxu0
  %v1082 = vadd.f32 %v972, %v1081
  %v1083 = vpop.f32.mrf.mxu0
  %1084 = vmatprep.mubr.f32.mxu0 %v727
  %1085 = vmatmul.mubr.f32.gmra.mxu0 %v726
  %v1086 = vpop.f32.mrf.mxu0
  %v1087 = vadd.f32 %v977, %v1086
  %v1088 = vpop.f32.mrf.mxu0
  %1089 = vmatprep.mubr.f32.mxu0 %v734
  %1090 = vmatmul.mubr.f32.gmra.mxu0 %v733
  %v1091 = vpop.f32.mrf.mxu0
  %v1092 = vadd.f32 %v982, %v1091
  %v1093 = vpop.f32.mrf.mxu0
  %1094 = vmatprep.mubr.f32.mxu0 %v741
  %1095 = vmatmul.mubr.f32.gmra.mxu0 %v740
  %v1096 = vpop.f32.mrf.mxu0
  %v1097 = vadd.f32 %v987, %v1096
  %v1098 = vpop.f32.mrf.mxu0
  %1099 = vdwg.mxu0
  %1100 = vmatprep.subr.mxu0 0.0
  %1101 = vmatpush1.msra.mxu0 0.0
  %1102 = vmatprep.subr.mxu0 0.0
  %1103 = vmatpush1.msra.mxu0 0.0
  %1104 = vmatprep.subr.mxu0 0.0
  %1105 = vmatpush1.msra.mxu0 0.0
  %1106 = vmatprep.subr.mxu0 0.0
  %1107 = vmatpush1.msra.mxu0 0.0
  %1108 = vmatprep.subr.mxu0 0.0
  %1109 = vmatpush1.msra.mxu0 0.0
  %1110 = vmatprep.subr.mxu0 0.0
  %1111 = vmatpush1.msra.mxu0 0.0
  %1112 = vmatprep.subr.mxu0 0.0
  %1113 = vmatpush1.msra.mxu0 0.0
  %1114 = vmatprep.subr.mxu0 0.0
  %1115 = vmatpush1.msra.mxu0 0.0
  %1116 = vmatprep.subr.mxu0 0.0
  %1117 = vmatpush1.msra.mxu0 0.0
  %1118 = vmatprep.subr.mxu0 0.0
  %1119 = vmatpush1.msra.mxu0 0.0
  %1120 = vmatprep.subr.mxu0 0.0
  %1121 = vmatpush1.msra.mxu0 0.0
  %1122 = vmatprep.subr.mxu0 0.0
  %1123 = vmatpush1.msra.mxu0 0.0
  %1124 = vmatprep.subr.mxu0 0.0
  %1125 = vmatpush1.msra.mxu0 %v113
  %1126 = vmatprep.subr.mxu0 0.0
  %1127 = vmatpush1.msra.mxu0 %v112
  %1128 = vmatprep.subr.mxu0 0.0
  %1129 = vmatpush1.msra.mxu0 %v111
  %1130 = vmatprep.subr.mxu0 0.0
  %1131 = vmatpush1.msra.mxu0 %v110
  %1132 = vmatprep.subr.mxu0 0.0
  %1133 = vmatpush2.msra.mxu0 0.0
  %1134 = vmatprep.subr.mxu0 0.0
  %1135 = vmatpush2.msra.mxu0 0.0
  %1136 = vmatprep.subr.mxu0 0.0
  %1137 = vmatpush2.msra.mxu0 0.0
  %1138 = vmatprep.subr.mxu0 0.0
  %1139 = vmatpush2.msra.mxu0 0.0
  %1140 = vmatprep.subr.mxu0 0.0
  %1141 = vmatpush2.msra.mxu0 0.0
  %1142 = vmatprep.subr.mxu0 0.0
  %1143 = vmatpush2.msra.mxu0 0.0
  %1144 = vmatprep.subr.mxu0 0.0
  %1145 = vmatpush2.msra.mxu0 0.0
  %1146 = vmatprep.subr.mxu0 0.0
  %1147 = vmatpush2.msra.mxu0 0.0
  %1148 = vmatprep.subr.mxu0 0.0
  %1149 = vmatpush2.msra.mxu0 0.0
  %1150 = vmatprep.subr.mxu0 0.0
  %1151 = vmatpush2.msra.mxu0 0.0
  %1152 = vmatprep.subr.mxu0 0.0
  %1153 = vmatpush2.msra.mxu0 0.0
  %1154 = vmatprep.subr.mxu0 0.0
  %1155 = vmatpush2.msra.mxu0 0.0
  %1156 = vmatprep.subr.mxu0 0.0
  %1157 = vmatpush2.msra.mxu0 0.0
  %1158 = vmatprep.subr.mxu0 0.0
  %1159 = vmatpush2.msra.mxu0 0.0
  %1160 = vmatprep.subr.mxu0 0.0
  %1161 = vmatpush2.msra.mxu0 0.0
  %1162 = vmatprep.subr.mxu0 0.0
  %1163 = vmatpush2.msra.mxu0 0.0
  %1164 = vmatprep.mubr.f32.mxu0 0.0
  %1165 = vmatmul.mubr.f32.gmra.mxu0 %v744
  %v1166 = vpop.f32.mrf.mxu0
  %v1167 = vadd.f32 %v1057, %v1166
  %v1168 = vpop.f32.mrf.mxu0
  %1169 = vmatprep.mubr.f32.mxu0 0.0
  %1170 = vmatmul.mubr.f32.gmra.mxu0 %v747
  %v1171 = vpop.f32.mrf.mxu0
  %v1172 = vadd.f32 %v1062, %v1171
  %v1173 = vpop.f32.mrf.mxu0
  %1174 = vmatprep.mubr.f32.mxu0 0.0
  %1175 = vmatmul.mubr.f32.gmra.mxu0 %v750
  %v1176 = vpop.f32.mrf.mxu0
  %v1177 = vadd.f32 %v1067, %v1176
  %v1178 = vpop.f32.mrf.mxu0
  %1179 = vmatprep.mubr.f32.mxu0 0.0
  %1180 = vmatmul.mubr.f32.gmra.mxu0 %v753
  %v1181 = vpop.f32.mrf.mxu0
  %v1182 = vadd.f32 %v1072, %v1181
  %v1183 = vpop.f32.mrf.mxu0
  %1184 = vmatprep.mubr.f32.mxu0 0.0
  %1185 = vmatmul.mubr.f32.gmra.mxu0 %v756
  %v1186 = vpop.f32.mrf.mxu0
  %v1187 = vadd.f32 %v1077, %v1186
  %v1188 = vpop.f32.mrf.mxu0
  %1189 = vmatprep.mubr.f32.mxu0 0.0
  %1190 = vmatmul.mubr.f32.gmra.mxu0 %v759
  %v1191 = vpop.f32.mrf.mxu0
  %v1192 = vadd.f32 %v1082, %v1191
  %v1193 = vpop.f32.mrf.mxu0
  %1194 = vmatprep.mubr.f32.mxu0 0.0
  %1195 = vmatmul.mubr.f32.gmra.mxu0 %v762
  %v1196 = vpop.f32.mrf.mxu0
  %v1197 = vadd.f32 %v1087, %v1196
  %v1198 = vpop.f32.mrf.mxu0
  %1199 = vmatprep.mubr.f32.mxu0 0.0
  %1200 = vmatmul.mubr.f32.gmra.mxu0 %v765
  %v1201 = vpop.f32.mrf.mxu0
  %v1202 = vadd.f32 %v1092, %v1201
  %v1203 = vpop.f32.mrf.mxu0
  %1204 = vmatprep.mubr.f32.mxu0 0.0
  %1205 = vmatmul.mubr.f32.gmra.mxu0 %v768
  %v1206 = vpop.f32.mrf.mxu0
  %v1207 = vadd.f32 %v1097, %v1206
  %v1208 = vpop.f32.mrf.mxu0
  %1209 = vdwg.mxu0
  %vm1210 = vcmp.gt.f32.partialorder %v1167, 0.0
  %vm1211 = vcmp.gt.f32.partialorder %v1172, 0.0
  %vm1212 = vcmp.gt.f32.partialorder %v1177, 0.0
  %vm1213 = vcmp.gt.f32.partialorder %v1182, 0.0
  %vm1214 = vcmp.gt.f32.partialorder %v1187, 0.0
  %vm1215 = vcmp.gt.f32.partialorder %v1192, 0.0
  %vm1216 = vcmp.gt.f32.partialorder %v1197, 0.0
  %vm1217 = vcmp.gt.f32.partialorder %v1202, 0.0
  %vm1218 = vcmp.gt.f32.partialorder %v1207, 0.0
  %v1219 = vmul.f32 %v1167, 0.1
  %v1220 = vmul.f32 %v1172, 0.1
  %v1221 = vmul.f32 %v1177, 0.1
  %v1222 = vmul.f32 %v1182, 0.1
  %v1223 = vmul.f32 %v1187, 0.1
  %v1224 = vmul.f32 %v1192, 0.1
  %v1225 = vmul.f32 %v1197, 0.1
  %v1226 = vmul.f32 %v1202, 0.1
  %v1227 = vmul.f32 %v1207, 0.1
  %v1228 = vsel %vm1210, %v1167, %v1219
  %v1229 = vsel %vm1211, %v1172, %v1220
  %v1230 = vsel %vm1212, %v1177, %v1221
  %v1231 = vsel %vm1213, %v1182, %v1222
  %v1232 = vsel %vm1214, %v1187, %v1223
  %v1233 = vsel %vm1215, %v1192, %v1224
  %v1234 = vsel %vm1216, %v1197, %v1225
  %v1235 = vsel %vm1217, %v1202, %v1226
  %v1236 = vsel %vm1218, %v1207, %v1227
  %v1237 = vmax.f32 %v670, %v1228
  %v1238 = vmax.f32 %v671, %v1229
  %v1239 = vmax.f32 %v672, %v1230
  %v1240 = vmax.f32 %v673, %v1231
  %v1241 = vmax.f32 %v674, %v1232
  %v1242 = vmax.f32 %v675, %v1233
  %v1243 = vmax.f32 %v676, %v1234
  %v1244 = vmax.f32 %v677, %v1235
  %v1245 = vmax.f32 %v678, %v1236
  %s1246 = scalar_lea.vmem %s0, 1008
  %v1247 = vld [vmem:[%s1246] sm:$0xff]
  %v1248 = vld [vmem:[%s1246 + $0x8] sm:$0xff]
  %v1249 = vld [vmem:[%s1246 + $0x10] sm:$0xff]
  %v1250 = vld [vmem:[%s1246 + $0x18] sm:$0xff]
  %v1251 = vld [vmem:[%s1246 + $0x20] sm:$0xff]
  %v1252 = vld [vmem:[%s1246 + $0x28] sm:$0xff]
  %v1253 = vld [vmem:[%s1246 + $0x30] sm:$0xff]
  %v1254 = vld [vmem:[%s1246 + $0x38] sm:$0xff]
  %v1255 = vld [vmem:[%s1246 + $0x40] sm:$0xff]
  %v1256 = vld [vmem:[%s1246 + $0x48] sm:$0xff]
  %v1257 = vld [vmem:[%s1246 + $0x50] sm:$0xff]
  %v1258 = vld [vmem:[%s1246 + $0x58] sm:$0xff]
  %v1259 = vld [vmem:[%s1246 + $0x60] sm:$0xff]
  %v1260 = vld [vmem:[%s1246 + $0x68] sm:$0xff]
  %v1261 = vld [vmem:[%s1246 + $0x70] sm:$0xff]
  %v1262 = vld [vmem:[%s1246 + $0x78] sm:$0xff]
  %v1263 = vld [vmem:[%s1246 + $0x80] sm:$0xff]
  %v1264 = vld [vmem:[%s1246 + $0x88] sm:$0xff]
  %v1265 = vld [vmem:[%s1246 + $0x90] sm:$0xff]
  %v1266 = vld [vmem:[%s1246 + $0x98] sm:$0xff]
  %v1267 = vld [vmem:[%s1246 + $0xa0] sm:$0xff]
  %v1268 = vld [vmem:[%s1246 + $0xa8] sm:$0xff]
  %v1269 = vld [vmem:[%s1246 + $0xb0] sm:$0xff]
  %v1270 = vld [vmem:[%s1246 + $0xb8] sm:$0xff]
  %v1271 = vld [vmem:[%s1246 + $0xc0] sm:$0xff]
  %v1272 = vld [vmem:[%s1246 + $0xc8] sm:$0xff]
  %v1273 = vld [vmem:[%s1246 + $0xd0] sm:$0xff]
  %v1274 = vld [vmem:[%s1246 + $0xd8] sm:$0xff]
  %v1275 = vld [vmem:[%s1246 + $0xe0] sm:$0xff]
  %v1276 = vld [vmem:[%s1246 + $0xe8] sm:$0xff]
  %v1277 = vld [vmem:[%s1246 + $0xf0] sm:$0xff]
  %v1278 = vld [vmem:[%s1246 + $0xf8] sm:$0xff]
  %v1279 = vld [vmem:[%s1246 + $0x100] sm:$0xff]
  %v1280 = vld [vmem:[%s1246 + $0x108] sm:$0xff]
  %v1281 = vld [vmem:[%s1246 + $0x110] sm:$0xff]
  %v1282 = vld [vmem:[%s1246 + $0x118] sm:$0xff]
  %v1283 = vld [vmem:[%s1246 + $0x120] sm:$0xff]
  %v1284 = vld [vmem:[%s1246 + $0x128] sm:$0xff]
  %v1285 = vld [vmem:[%s1246 + $0x130] sm:$0xff]
  %v1286 = vld [vmem:[%s1246 + $0x138] sm:$0xff]
  %v1287 = vld [vmem:[%s1246 + $0x140] sm:$0xff]
  %v1288 = vld [vmem:[%s1246 + $0x148] sm:$0xff]
  %v1289 = vld [vmem:[%s1246 + $0x150] sm:$0xff]
  %v1290 = vld [vmem:[%s1246 + $0x158] sm:$0xff]
  %v1291 = vld [vmem:[%s1246 + $0x160] sm:$0xff]
  %v1292 = vld [vmem:[%s1246 + $0x168] sm:$0xff]
  %v1293 = vld [vmem:[%s1246 + $0x170] sm:$0xff]
  %v1294 = vld [vmem:[%s1246 + $0x178] sm:$0xff]
  %v1295 = vld [vmem:[%s1246 + $0x180] sm:$0xff]
  %v1296 = vld [vmem:[%s1246 + $0x188] sm:$0xff]
  %v1297 = vld [vmem:[%s1246 + $0x190] sm:$0xff]
  %v1298 = vld [vmem:[%s1246 + $0x198] sm:$0xff]
  %v1299 = vld [vmem:[%s1246 + $0x1a0] sm:$0xff]
  %v1300 = vld [vmem:[%s1246 + $0x1a8] sm:$0xff]
  %v1301 = vld [vmem:[%s1246 + $0x1b0] sm:$0xff]
  %v1302 = vld [vmem:[%s1246 + $0x1b8] sm:$0xff]
  %v1303 = vld [vmem:[%s1246 + $0x1c0] sm:$0xff]
  %v1304 = vld [vmem:[%s1246 + $0x1c8] sm:$0xff]
  %v1305 = vld [vmem:[%s1246 + $0x1d0] sm:$0xff]
  %v1306 = vld [vmem:[%s1246 + $0x1d8] sm:$0xff]
  %v1307 = vld [vmem:[%s1246 + $0x1e0] sm:$0xff]
  %v1308 = vld [vmem:[%s1246 + $0x1e8] sm:$0xff]
  %v1309 = vld [vmem:[%s1246 + $0x1f0] sm:$0xff]
  %v1311 = vsel %vm184, %v1253, 0
  %v1314 = vsel %vm184, %v1260, 0
  %v1317 = vsel %vm184, %v1267, 0
  %v1320 = vsel %vm184, %v1274, 0
  %v1323 = vsel %vm184, %v1281, 0
  %v1326 = vsel %vm184, %v1288, 0
  %v1329 = vsel %vm184, %v1295, 0
  %v1332 = vsel %vm184, %v1302, 0
  %v1335 = vsel %vm184, %v1309, 0
  %1337 = vmatprep.subr.mxu0 0.0
  %1338 = vmatpush1.msra.mxu0 %v29
  %1339 = vmatprep.subr.mxu0 0.0
  %1340 = vmatpush1.msra.mxu0 %v28
  %1341 = vmatprep.subr.mxu0 0.0
  %1342 = vmatpush1.msra.mxu0 %v27
  %1343 = vmatprep.subr.mxu0 0.0
  %1344 = vmatpush1.msra.mxu0 %v26
  %1345 = vmatprep.subr.mxu0 0.0
  %1346 = vmatpush1.msra.mxu0 %v25
  %1347 = vmatprep.subr.mxu0 0.0
  %1348 = vmatpush1.msra.mxu0 %v24
  %1349 = vmatprep.subr.mxu0 0.0
  %1350 = vmatpush1.msra.mxu0 %v23
  %1351 = vmatprep.subr.mxu0 0.0
  %1352 = vmatpush1.msra.mxu0 %v22
  %1353 = vmatprep.subr.mxu0 0.0
  %1354 = vmatpush1.msra.mxu0 %v21
  %1355 = vmatprep.subr.mxu0 0.0
  %1356 = vmatpush1.msra.mxu0 %v20
  %1357 = vmatprep.subr.mxu0 0.0
  %1358 = vmatpush1.msra.mxu0 %v19
  %1359 = vmatprep.subr.mxu0 0.0
  %1360 = vmatpush1.msra.mxu0 %v18
  %1361 = vmatprep.subr.mxu0 0.0
  %1362 = vmatpush1.msra.mxu0 %v17
  %1363 = vmatprep.subr.mxu0 0.0
  %1364 = vmatpush1.msra.mxu0 %v16
  %1365 = vmatprep.subr.mxu0 0.0
  %1366 = vmatpush1.msra.mxu0 %v15
  %1367 = vmatprep.subr.mxu0 0.0
  %1368 = vmatpush1.msra.mxu0 %v14
  %1369 = vmatprep.subr.mxu0 0.0
  %1370 = vmatpush2.msra.mxu0 %v45
  %1371 = vmatprep.subr.mxu0 0.0
  %1372 = vmatpush2.msra.mxu0 %v44
  %1373 = vmatprep.subr.mxu0 0.0
  %1374 = vmatpush2.msra.mxu0 %v43
  %1375 = vmatprep.subr.mxu0 0.0
  %1376 = vmatpush2.msra.mxu0 %v42
  %1377 = vmatprep.subr.mxu0 0.0
  %1378 = vmatpush2.msra.mxu0 %v41
  %1379 = vmatprep.subr.mxu0 0.0
  %1380 = vmatpush2.msra.mxu0 %v40
  %1381 = vmatprep.subr.mxu0 0.0
  %1382 = vmatpush2.msra.mxu0 %v39
  %1383 = vmatprep.subr.mxu0 0.0
  %1384 = vmatpush2.msra.mxu0 %v38
  %1385 = vmatprep.subr.mxu0 0.0
  %1386 = vmatpush2.msra.mxu0 %v37
  %1387 = vmatprep.subr.mxu0 0.0
  %1388 = vmatpush2.msra.mxu0 %v36
  %1389 = vmatprep.subr.mxu0 0.0
  %1390 = vmatpush2.msra.mxu0 %v35
  %1391 = vmatprep.subr.mxu0 0.0
  %1392 = vmatpush2.msra.mxu0 %v34
  %1393 = vmatprep.subr.mxu0 0.0
  %1394 = vmatpush2.msra.mxu0 %v33
  %1395 = vmatprep.subr.mxu0 0.0
  %1396 = vmatpush2.msra.mxu0 %v32
  %1397 = vmatprep.subr.mxu0 0.0
  %1398 = vmatpush2.msra.mxu0 %v31
  %1399 = vmatprep.subr.mxu0 0.0
  %1400 = vmatpush2.msra.mxu0 %v30
  %1401 = vmatprep.mubr.f32.mxu0 %v1248
  %1402 = vmatmul.mubr.f32.gmra.mxu0 %v1247
  %v1403 = vpop.f32.mrf.mxu0
  %v1404 = vadd.f32 %v182, %v1403
  %v1405 = vpop.f32.mrf.mxu0
  %1406 = vmatprep.mubr.f32.mxu0 %v1255
  %1407 = vmatmul.mubr.f32.gmra.mxu0 %v1254
  %v1408 = vpop.f32.mrf.mxu0
  %v1409 = vadd.f32 %v182, %v1408
  %v1410 = vpop.f32.mrf.mxu0
  %1411 = vmatprep.mubr.f32.mxu0 %v1262
  %1412 = vmatmul.mubr.f32.gmra.mxu0 %v1261
  %v1413 = vpop.f32.mrf.mxu0
  %v1414 = vadd.f32 %v182, %v1413
  %v1415 = vpop.f32.mrf.mxu0
  %1416 = vmatprep.mubr.f32.mxu0 %v1269
  %1417 = vmatmul.mubr.f32.gmra.mxu0 %v1268
  %v1418 = vpop.f32.mrf.mxu0
  %v1419 = vadd.f32 %v182, %v1418
  %v1420 = vpop.f32.mrf.mxu0
  %1421 = vmatprep.mubr.f32.mxu0 %v1276
  %1422 = vmatmul.mubr.f32.gmra.mxu0 %v1275
  %v1423 = vpop.f32.mrf.mxu0
  %v1424 = vadd.f32 %v182, %v1423
  %v1425 = vpop.f32.mrf.mxu0
  %1426 = vmatprep.mubr.f32.mxu0 %v1283
  %1427 = vmatmul.mubr.f32.gmra.mxu0 %v1282
  %v1428 = vpop.f32.mrf.mxu0
  %v1429 = vadd.f32 %v182, %v1428
  %v1430 = vpop.f32.mrf.mxu0
  %1431 = vmatprep.mubr.f32.mxu0 %v1290
  %1432 = vmatmul.mubr.f32.gmra.mxu0 %v1289
  %v1433 = vpop.f32.mrf.mxu0
  %v1434 = vadd.f32 %v182, %v1433
  %v1435 = vpop.f32.mrf.mxu0
  %1436 = vmatprep.mubr.f32.mxu0 %v1297
  %1437 = vmatmul.mubr.f32.gmra.mxu0 %v1296
  %v1438 = vpop.f32.mrf.mxu0
  %v1439 = vadd.f32 %v182, %v1438
  %v1440 = vpop.f32.mrf.mxu0
  %1441 = vmatprep.mubr.f32.mxu0 %v1304
  %1442 = vmatmul.mubr.f32.gmra.mxu0 %v1303
  %v1443 = vpop.f32.mrf.mxu0
  %v1444 = vadd.f32 %v182, %v1443
  %v1445 = vpop.f32.mrf.mxu0
  %1446 = vdwg.mxu0
  %1447 = vmatprep.subr.mxu0 0.0
  %1448 = vmatpush1.msra.mxu0 %v61
  %1449 = vmatprep.subr.mxu0 0.0
  %1450 = vmatpush1.msra.mxu0 %v60
  %1451 = vmatprep.subr.mxu0 0.0
  %1452 = vmatpush1.msra.mxu0 %v59
  %1453 = vmatprep.subr.mxu0 0.0
  %1454 = vmatpush1.msra.mxu0 %v58
  %1455 = vmatprep.subr.mxu0 0.0
  %1456 = vmatpush1.msra.mxu0 %v57
  %1457 = vmatprep.subr.mxu0 0.0
  %1458 = vmatpush1.msra.mxu0 %v56
  %1459 = vmatprep.subr.mxu0 0.0
  %1460 = vmatpush1.msra.mxu0 %v55
  %1461 = vmatprep.subr.mxu0 0.0
  %1462 = vmatpush1.msra.mxu0 %v54
  %1463 = vmatprep.subr.mxu0 0.0
  %1464 = vmatpush1.msra.mxu0 %v53
  %1465 = vmatprep.subr.mxu0 0.0
  %1466 = vmatpush1.msra.mxu0 %v52
  %1467 = vmatprep.subr.mxu0 0.0
  %1468 = vmatpush1.msra.mxu0 %v51
  %1469 = vmatprep.subr.mxu0 0.0
  %1470 = vmatpush1.msra.mxu0 %v50
  %1471 = vmatprep.subr.mxu0 0.0
  %1472 = vmatpush1.msra.mxu0 %v49
  %1473 = vmatprep.subr.mxu0 0.0
  %1474 = vmatpush1.msra.mxu0 %v48
  %1475 = vmatprep.subr.mxu0 0.0
  %1476 = vmatpush1.msra.mxu0 %v47
  %1477 = vmatprep.subr.mxu0 0.0
  %1478 = vmatpush1.msra.mxu0 %v46
  %1479 = vmatprep.subr.mxu0 0.0
  %1480 = vmatpush2.msra.mxu0 %v77
  %1481 = vmatprep.subr.mxu0 0.0
  %1482 = vmatpush2.msra.mxu0 %v76
  %1483 = vmatprep.subr.mxu0 0.0
  %1484 = vmatpush2.msra.mxu0 %v75
  %1485 = vmatprep.subr.mxu0 0.0
  %1486 = vmatpush2.msra.mxu0 %v74
  %1487 = vmatprep.subr.mxu0 0.0
  %1488 = vmatpush2.msra.mxu0 %v73
  %1489 = vmatprep.subr.mxu0 0.0
  %1490 = vmatpush2.msra.mxu0 %v72
  %1491 = vmatprep.subr.mxu0 0.0
  %1492 = vmatpush2.msra.mxu0 %v71
  %1493 = vmatprep.subr.mxu0 0.0
  %1494 = vmatpush2.msra.mxu0 %v70
  %1495 = vmatprep.subr.mxu0 0.0
  %1496 = vmatpush2.msra.mxu0 %v69
  %1497 = vmatprep.subr.mxu0 0.0
  %1498 = vmatpush2.msra.mxu0 %v68
  %1499 = vmatprep.subr.mxu0 0.0
  %1500 = vmatpush2.msra.mxu0 %v67
  %1501 = vmatprep.subr.mxu0 0.0
  %1502 = vmatpush2.msra.mxu0 %v66
  %1503 = vmatprep.subr.mxu0 0.0
  %1504 = vmatpush2.msra.mxu0 %v65
  %1505 = vmatprep.subr.mxu0 0.0
  %1506 = vmatpush2.msra.mxu0 %v64
  %1507 = vmatprep.subr.mxu0 0.0
  %1508 = vmatpush2.msra.mxu0 %v63
  %1509 = vmatprep.subr.mxu0 0.0
  %1510 = vmatpush2.msra.mxu0 %v62
  %1511 = vmatprep.mubr.f32.mxu0 %v1250
  %1512 = vmatmul.mubr.f32.gmra.mxu0 %v1249
  %v1513 = vpop.f32.mrf.mxu0
  %v1514 = vadd.f32 %v1404, %v1513
  %v1515 = vpop.f32.mrf.mxu0
  %1516 = vmatprep.mubr.f32.mxu0 %v1257
  %1517 = vmatmul.mubr.f32.gmra.mxu0 %v1256
  %v1518 = vpop.f32.mrf.mxu0
  %v1519 = vadd.f32 %v1409, %v1518
  %v1520 = vpop.f32.mrf.mxu0
  %1521 = vmatprep.mubr.f32.mxu0 %v1264
  %1522 = vmatmul.mubr.f32.gmra.mxu0 %v1263
  %v1523 = vpop.f32.mrf.mxu0
  %v1524 = vadd.f32 %v1414, %v1523
  %v1525 = vpop.f32.mrf.mxu0
  %1526 = vmatprep.mubr.f32.mxu0 %v1271
  %1527 = vmatmul.mubr.f32.gmra.mxu0 %v1270
  %v1528 = vpop.f32.mrf.mxu0
  %v1529 = vadd.f32 %v1419, %v1528
  %v1530 = vpop.f32.mrf.mxu0
  %1531 = vmatprep.mubr.f32.mxu0 %v1278
  %1532 = vmatmul.mubr.f32.gmra.mxu0 %v1277
  %v1533 = vpop.f32.mrf.mxu0
  %v1534 = vadd.f32 %v1424, %v1533
  %v1535 = vpop.f32.mrf.mxu0
  %1536 = vmatprep.mubr.f32.mxu0 %v1285
  %1537 = vmatmul.mubr.f32.gmra.mxu0 %v1284
  %v1538 = vpop.f32.mrf.mxu0
  %v1539 = vadd.f32 %v1429, %v1538
  %v1540 = vpop.f32.mrf.mxu0
  %1541 = vmatprep.mubr.f32.mxu0 %v1292
  %1542 = vmatmul.mubr.f32.gmra.mxu0 %v1291
  %v1543 = vpop.f32.mrf.mxu0
  %v1544 = vadd.f32 %v1434, %v1543
  %v1545 = vpop.f32.mrf.mxu0
  %1546 = vmatprep.mubr.f32.mxu0 %v1299
  %1547 = vmatmul.mubr.f32.gmra.mxu0 %v1298
  %v1548 = vpop.f32.mrf.mxu0
  %v1549 = vadd.f32 %v1439, %v1548
  %v1550 = vpop.f32.mrf.mxu0
  %1551 = vmatprep.mubr.f32.mxu0 %v1306
  %1552 = vmatmul.mubr.f32.gmra.mxu0 %v1305
  %v1553 = vpop.f32.mrf.mxu0
  %v1554 = vadd.f32 %v1444, %v1553
  %v1555 = vpop.f32.mrf.mxu0
  %1556 = vdwg.mxu0
  %1557 = vmatprep.subr.mxu0 0.0
  %1558 = vmatpush1.msra.mxu0 %v93
  %1559 = vmatprep.subr.mxu0 0.0
  %1560 = vmatpush1.msra.mxu0 %v92
  %1561 = vmatprep.subr.mxu0 0.0
  %1562 = vmatpush1.msra.mxu0 %v91
  %1563 = vmatprep.subr.mxu0 0.0
  %1564 = vmatpush1.msra.mxu0 %v90
  %1565 = vmatprep.subr.mxu0 0.0
  %1566 = vmatpush1.msra.mxu0 %v89
  %1567 = vmatprep.subr.mxu0 0.0
  %1568 = vmatpush1.msra.mxu0 %v88
  %1569 = vmatprep.subr.mxu0 0.0
  %1570 = vmatpush1.msra.mxu0 %v87
  %1571 = vmatprep.subr.mxu0 0.0
  %1572 = vmatpush1.msra.mxu0 %v86
  %1573 = vmatprep.subr.mxu0 0.0
  %1574 = vmatpush1.msra.mxu0 %v85
  %1575 = vmatprep.subr.mxu0 0.0
  %1576 = vmatpush1.msra.mxu0 %v84
  %1577 = vmatprep.subr.mxu0 0.0
  %1578 = vmatpush1.msra.mxu0 %v83
  %1579 = vmatprep.subr.mxu0 0.0
  %1580 = vmatpush1.msra.mxu0 %v82
  %1581 = vmatprep.subr.mxu0 0.0
  %1582 = vmatpush1.msra.mxu0 %v81
  %1583 = vmatprep.subr.mxu0 0.0
  %1584 = vmatpush1.msra.mxu0 %v80
  %1585 = vmatprep.subr.mxu0 0.0
  %1586 = vmatpush1.msra.mxu0 %v79
  %1587 = vmatprep.subr.mxu0 0.0
  %1588 = vmatpush1.msra.mxu0 %v78
  %1589 = vmatprep.subr.mxu0 0.0
  %1590 = vmatpush2.msra.mxu0 %v109
  %1591 = vmatprep.subr.mxu0 0.0
  %1592 = vmatpush2.msra.mxu0 %v108
  %1593 = vmatprep.subr.mxu0 0.0
  %1594 = vmatpush2.msra.mxu0 %v107
  %1595 = vmatprep.subr.mxu0 0.0
  %1596 = vmatpush2.msra.mxu0 %v106
  %1597 = vmatprep.subr.mxu0 0.0
  %1598 = vmatpush2.msra.mxu0 %v105
  %1599 = vmatprep.subr.mxu0 0.0
  %1600 = vmatpush2.msra.mxu0 %v104
  %1601 = vmatprep.subr.mxu0 0.0
  %1602 = vmatpush2.msra.mxu0 %v103
  %1603 = vmatprep.subr.mxu0 0.0
  %1604 = vmatpush2.msra.mxu0 %v102
  %1605 = vmatprep.subr.mxu0 0.0
  %1606 = vmatpush2.msra.mxu0 %v101
  %1607 = vmatprep.subr.mxu0 0.0
  %1608 = vmatpush2.msra.mxu0 %v100
  %1609 = vmatprep.subr.mxu0 0.0
  %1610 = vmatpush2.msra.mxu0 %v99
  %1611 = vmatprep.subr.mxu0 0.0
  %1612 = vmatpush2.msra.mxu0 %v98
  %1613 = vmatprep.subr.mxu0 0.0
  %1614 = vmatpush2.msra.mxu0 %v97
  %1615 = vmatprep.subr.mxu0 0.0
  %1616 = vmatpush2.msra.mxu0 %v96
  %1617 = vmatprep.subr.mxu0 0.0
  %1618 = vmatpush2.msra.mxu0 %v95
  %1619 = vmatprep.subr.mxu0 0.0
  %1620 = vmatpush2.msra.mxu0 %v94
  %1621 = vmatprep.mubr.f32.mxu0 %v1252
  %1622 = vmatmul.mubr.f32.gmra.mxu0 %v1251
  %v1623 = vpop.f32.mrf.mxu0
  %v1624 = vadd.f32 %v1514, %v1623
  %v1625 = vpop.f32.mrf.mxu0
  %1626 = vmatprep.mubr.f32.mxu0 %v1259
  %1627 = vmatmul.mubr.f32.gmra.mxu0 %v1258
  %v1628 = vpop.f32.mrf.mxu0
  %v1629 = vadd.f32 %v1519, %v1628
  %v1630 = vpop.f32.mrf.mxu0
  %1631 = vmatprep.mubr.f32.mxu0 %v1266
  %1632 = vmatmul.mubr.f32.gmra.mxu0 %v1265
  %v1633 = vpop.f32.mrf.mxu0
  %v1634 = vadd.f32 %v1524, %v1633
  %v1635 = vpop.f32.mrf.mxu0
  %1636 = vmatprep.mubr.f32.mxu0 %v1273
  %1637 = vmatmul.mubr.f32.gmra.mxu0 %v1272
  %v1638 = vpop.f32.mrf.mxu0
  %v1639 = vadd.f32 %v1529, %v1638
  %v1640 = vpop.f32.mrf.mxu0
  %1641 = vmatprep.mubr.f32.mxu0 %v1280
  %1642 = vmatmul.mubr.f32.gmra.mxu0 %v1279
  %v1643 = vpop.f32.mrf.mxu0
  %v1644 = vadd.f32 %v1534, %v1643
  %v1645 = vpop.f32.mrf.mxu0
  %1646 = vmatprep.mubr.f32.mxu0 %v1287
  %1647 = vmatmul.mubr.f32.gmra.mxu0 %v1286
  %v1648 = vpop.f32.mrf.mxu0
  %v1649 = vadd.f32 %v1539, %v1648
  %v1650 = vpop.f32.mrf.mxu0
  %1651 = vmatprep.mubr.f32.mxu0 %v1294
  %1652 = vmatmul.mubr.f32.gmra.mxu0 %v1293
  %v1653 = vpop.f32.mrf.mxu0
  %v1654 = vadd.f32 %v1544, %v1653
  %v1655 = vpop.f32.mrf.mxu0
  %1656 = vmatprep.mubr.f32.mxu0 %v1301
  %1657 = vmatmul.mubr.f32.gmra.mxu0 %v1300
  %v1658 = vpop.f32.mrf.mxu0
  %v1659 = vadd.f32 %v1549, %v1658
  %v1660 = vpop.f32.mrf.mxu0
  %1661 = vmatprep.mubr.f32.mxu0 %v1308
  %1662 = vmatmul.mubr.f32.gmra.mxu0 %v1307
  %v1663 = vpop.f32.mrf.mxu0
  %v1664 = vadd.f32 %v1554, %v1663
  %v1665 = vpop.f32.mrf.mxu0
  %1666 = vdwg.mxu0
  %1667 = vmatprep.subr.mxu0 0.0
  %1668 = vmatpush1.msra.mxu0 0.0
  %1669 = vmatprep.subr.mxu0 0.0
  %1670 = vmatpush1.msra.mxu0 0.0
  %1671 = vmatprep.subr.mxu0 0.0
  %1672 = vmatpush1.msra.mxu0 0.0
  %1673 = vmatprep.subr.mxu0 0.0
  %1674 = vmatpush1.msra.mxu0 0.0
  %1675 = vmatprep.subr.mxu0 0.0
  %1676 = vmatpush1.msra.mxu0 0.0
  %1677 = vmatprep.subr.mxu0 0.0
  %1678 = vmatpush1.msra.mxu0 0.0
  %1679 = vmatprep.subr.mxu0 0.0
  %1680 = vmatpush1.msra.mxu0 0.0
  %1681 = vmatprep.subr.mxu0 0.0
  %1682 = vmatpush1.msra.mxu0 0.0
  %1683 = vmatprep.subr.mxu0 0.0
  %1684 = vmatpush1.msra.mxu0 0.0
  %1685 = vmatprep.subr.mxu0 0.0
  %1686 = vmatpush1.msra.mxu0 0.0
  %1687 = vmatprep.subr.mxu0 0.0
  %1688 = vmatpush1.msra.mxu0 0.0
  %1689 = vmatprep.subr.mxu0 0.0
  %1690 = vmatpush1.msra.mxu0 0.0
  %1691 = vmatprep.subr.mxu0 0.0
  %1692 = vmatpush1.msra.mxu0 %v113
  %1693 = vmatprep.subr.mxu0 0.0
  %1694 = vmatpush1.msra.mxu0 %v112
  %1695 = vmatprep.subr.mxu0 0.0
  %1696 = vmatpush1.msra.mxu0 %v111
  %1697 = vmatprep.subr.mxu0 0.0
  %1698 = vmatpush1.msra.mxu0 %v110
  %1699 = vmatprep.subr.mxu0 0.0
  %1700 = vmatpush2.msra.mxu0 0.0
  %1701 = vmatprep.subr.mxu0 0.0
  %1702 = vmatpush2.msra.mxu0 0.0
  %1703 = vmatprep.subr.mxu0 0.0
  %1704 = vmatpush2.msra.mxu0 0.0
  %1705 = vmatprep.subr.mxu0 0.0
  %1706 = vmatpush2.msra.mxu0 0.0
  %1707 = vmatprep.subr.mxu0 0.0
  %1708 = vmatpush2.msra.mxu0 0.0
  %1709 = vmatprep.subr.mxu0 0.0
  %1710 = vmatpush2.msra.mxu0 0.0
  %1711 = vmatprep.subr.mxu0 0.0
  %1712 = vmatpush2.msra.mxu0 0.0
  %1713 = vmatprep.subr.mxu0 0.0
  %1714 = vmatpush2.msra.mxu0 0.0
  %1715 = vmatprep.subr.mxu0 0.0
  %1716 = vmatpush2.msra.mxu0 0.0
  %1717 = vmatprep.subr.mxu0 0.0
  %1718 = vmatpush2.msra.mxu0 0.0
  %1719 = vmatprep.subr.mxu0 0.0
  %1720 = vmatpush2.msra.mxu0 0.0
  %1721 = vmatprep.subr.mxu0 0.0
  %1722 = vmatpush2.msra.mxu0 0.0
  %1723 = vmatprep.subr.mxu0 0.0
  %1724 = vmatpush2.msra.mxu0 0.0
  %1725 = vmatprep.subr.mxu0 0.0
  %1726 = vmatpush2.msra.mxu0 0.0
  %1727 = vmatprep.subr.mxu0 0.0
  %1728 = vmatpush2.msra.mxu0 0.0
  %1729 = vmatprep.subr.mxu0 0.0
  %1730 = vmatpush2.msra.mxu0 0.0
  %1731 = vmatprep.mubr.f32.mxu0 0.0
  %1732 = vmatmul.mubr.f32.gmra.mxu0 %v1311
  %v1733 = vpop.f32.mrf.mxu0
  %v1734 = vadd.f32 %v1624, %v1733
  %v1735 = vpop.f32.mrf.mxu0
  %1736 = vmatprep.mubr.f32.mxu0 0.0
  %1737 = vmatmul.mubr.f32.gmra.mxu0 %v1314
  %v1738 = vpop.f32.mrf.mxu0
  %v1739 = vadd.f32 %v1629, %v1738
  %v1740 = vpop.f32.mrf.mxu0
  %1741 = vmatprep.mubr.f32.mxu0 0.0
  %1742 = vmatmul.mubr.f32.gmra.mxu0 %v1317
  %v1743 = vpop.f32.mrf.mxu0
  %v1744 = vadd.f32 %v1634, %v1743
  %v1745 = vpop.f32.mrf.mxu0
  %1746 = vmatprep.mubr.f32.mxu0 0.0
  %1747 = vmatmul.mubr.f32.gmra.mxu0 %v1320
  %v1748 = vpop.f32.mrf.mxu0
  %v1749 = vadd.f32 %v1639, %v1748
  %v1750 = vpop.f32.mrf.mxu0
  %1751 = vmatprep.mubr.f32.mxu0 0.0
  %1752 = vmatmul.mubr.f32.gmra.mxu0 %v1323
  %v1753 = vpop.f32.mrf.mxu0
  %v1754 = vadd.f32 %v1644, %v1753
  %v1755 = vpop.f32.mrf.mxu0
  %1756 = vmatprep.mubr.f32.mxu0 0.0
  %1757 = vmatmul.mubr.f32.gmra.mxu0 %v1326
  %v1758 = vpop.f32.mrf.mxu0
  %v1759 = vadd.f32 %v1649, %v1758
  %v1760 = vpop.f32.mrf.mxu0
  %1761 = vmatprep.mubr.f32.mxu0 0.0
  %1762 = vmatmul.mubr.f32.gmra.mxu0 %v1329
  %v1763 = vpop.f32.mrf.mxu0
  %v1764 = vadd.f32 %v1654, %v1763
  %v1765 = vpop.f32.mrf.mxu0
  %1766 = vmatprep.mubr.f32.mxu0 0.0
  %1767 = vmatmul.mubr.f32.gmra.mxu0 %v1332
  %v1768 = vpop.f32.mrf.mxu0
  %v1769 = vadd.f32 %v1659, %v1768
  %v1770 = vpop.f32.mrf.mxu0
  %1771 = vmatprep.mubr.f32.mxu0 0.0
  %1772 = vmatmul.mubr.f32.gmra.mxu0 %v1335
  %v1773 = vpop.f32.mrf.mxu0
  %v1774 = vadd.f32 %v1664, %v1773
  %v1775 = vpop.f32.mrf.mxu0
  %1776 = vdwg.mxu0
  %vm1777 = vcmp.gt.f32.partialorder %v1734, 0.0
  %vm1778 = vcmp.gt.f32.partialorder %v1739, 0.0
  %vm1779 = vcmp.gt.f32.partialorder %v1744, 0.0
  %vm1780 = vcmp.gt.f32.partialorder %v1749, 0.0
  %vm1781 = vcmp.gt.f32.partialorder %v1754, 0.0
  %vm1782 = vcmp.gt.f32.partialorder %v1759, 0.0
  %vm1783 = vcmp.gt.f32.partialorder %v1764, 0.0
  %vm1784 = vcmp.gt.f32.partialorder %v1769, 0.0
  %vm1785 = vcmp.gt.f32.partialorder %v1774, 0.0
  %v1786 = vmul.f32 %v1734, 0.1
  %v1787 = vmul.f32 %v1739, 0.1
  %v1788 = vmul.f32 %v1744, 0.1
  %v1789 = vmul.f32 %v1749, 0.1
  %v1790 = vmul.f32 %v1754, 0.1
  %v1791 = vmul.f32 %v1759, 0.1
  %v1792 = vmul.f32 %v1764, 0.1
  %v1793 = vmul.f32 %v1769, 0.1
  %v1794 = vmul.f32 %v1774, 0.1
  %v1795 = vsel %vm1777, %v1734, %v1786
  %v1796 = vsel %vm1778, %v1739, %v1787
  %v1797 = vsel %vm1779, %v1744, %v1788
  %v1798 = vsel %vm1780, %v1749, %v1789
  %v1799 = vsel %vm1781, %v1754, %v1790
  %v1800 = vsel %vm1782, %v1759, %v1791
  %v1801 = vsel %vm1783, %v1764, %v1792
  %v1802 = vsel %vm1784, %v1769, %v1793
  %v1803 = vsel %vm1785, %v1774, %v1794
  %v1804 = vmax.f32 %v1237, %v1795
  %v1805 = vmax.f32 %v1238, %v1796
  %v1806 = vmax.f32 %v1239, %v1797
  %v1807 = vmax.f32 %v1240, %v1798
  %v1808 = vmax.f32 %v1241, %v1799
  %v1809 = vmax.f32 %v1242, %v1800
  %v1810 = vmax.f32 %v1243, %v1801
  %v1811 = vmax.f32 %v1244, %v1802
  %v1812 = vmax.f32 %v1245, %v1803
  %s1813 = scalar_lea.vmem %s0, 1512
  %v1814 = vld [vmem:[%s1813] sm:$0xff]
  %v1815 = vld [vmem:[%s1813 + $0x8] sm:$0xff]
  %v1816 = vld [vmem:[%s1813 + $0x10] sm:$0xff]
  %v1817 = vld [vmem:[%s1813 + $0x18] sm:$0xff]
  %v1818 = vld [vmem:[%s1813 + $0x20] sm:$0xff]
  %v1819 = vld [vmem:[%s1813 + $0x28] sm:$0xff]
  %v1820 = vld [vmem:[%s1813 + $0x30] sm:$0xff]
  %v1821 = vld [vmem:[%s1813 + $0x38] sm:$0xff]
  %v1822 = vld [vmem:[%s1813 + $0x40] sm:$0xff]
  %v1823 = vld [vmem:[%s1813 + $0x48] sm:$0xff]
  %v1824 = vld [vmem:[%s1813 + $0x50] sm:$0xff]
  %v1825 = vld [vmem:[%s1813 + $0x58] sm:$0xff]
  %v1826 = vld [vmem:[%s1813 + $0x60] sm:$0xff]
  %v1827 = vld [vmem:[%s1813 + $0x68] sm:$0xff]
  %v1828 = vld [vmem:[%s1813 + $0x70] sm:$0xff]
  %v1829 = vld [vmem:[%s1813 + $0x78] sm:$0xff]
  %v1830 = vld [vmem:[%s1813 + $0x80] sm:$0xff]
  %v1831 = vld [vmem:[%s1813 + $0x88] sm:$0xff]
  %v1832 = vld [vmem:[%s1813 + $0x90] sm:$0xff]
  %v1833 = vld [vmem:[%s1813 + $0x98] sm:$0xff]
  %v1834 = vld [vmem:[%s1813 + $0xa0] sm:$0xff]
  %v1835 = vld [vmem:[%s1813 + $0xa8] sm:$0xff]
  %v1836 = vld [vmem:[%s1813 + $0xb0] sm:$0xff]
  %v1837 = vld [vmem:[%s1813 + $0xb8] sm:$0xff]
  %v1838 = vld [vmem:[%s1813 + $0xc0] sm:$0xff]
  %v1839 = vld [vmem:[%s1813 + $0xc8] sm:$0xff]
  %v1840 = vld [vmem:[%s1813 + $0xd0] sm:$0xff]
  %v1841 = vld [vmem:[%s1813 + $0xd8] sm:$0xff]
  %v1842 = vld [vmem:[%s1813 + $0xe0] sm:$0xff]
  %v1843 = vld [vmem:[%s1813 + $0xe8] sm:$0xff]
  %v1844 = vld [vmem:[%s1813 + $0xf0] sm:$0xff]
  %v1845 = vld [vmem:[%s1813 + $0xf8] sm:$0xff]
  %v1846 = vld [vmem:[%s1813 + $0x100] sm:$0xff]
  %v1847 = vld [vmem:[%s1813 + $0x108] sm:$0xff]
  %v1848 = vld [vmem:[%s1813 + $0x110] sm:$0xff]
  %v1849 = vld [vmem:[%s1813 + $0x118] sm:$0xff]
  %v1850 = vld [vmem:[%s1813 + $0x120] sm:$0xff]
  %v1851 = vld [vmem:[%s1813 + $0x128] sm:$0xff]
  %v1852 = vld [vmem:[%s1813 + $0x130] sm:$0xff]
  %v1853 = vld [vmem:[%s1813 + $0x138] sm:$0xff]
  %v1854 = vld [vmem:[%s1813 + $0x140] sm:$0xff]
  %v1855 = vld [vmem:[%s1813 + $0x148] sm:$0xff]
  %v1856 = vld [vmem:[%s1813 + $0x150] sm:$0xff]
  %v1857 = vld [vmem:[%s1813 + $0x158] sm:$0xff]
  %v1858 = vld [vmem:[%s1813 + $0x160] sm:$0xff]
  %v1859 = vld [vmem:[%s1813 + $0x168] sm:$0xff]
  %v1860 = vld [vmem:[%s1813 + $0x170] sm:$0xff]
  %v1861 = vld [vmem:[%s1813 + $0x178] sm:$0xff]
  %v1862 = vld [vmem:[%s1813 + $0x180] sm:$0xff]
  %v1863 = vld [vmem:[%s1813 + $0x188] sm:$0xff]
  %v1864 = vld [vmem:[%s1813 + $0x190] sm:$0xff]
  %v1865 = vld [vmem:[%s1813 + $0x198] sm:$0xff]
  %v1866 = vld [vmem:[%s1813 + $0x1a0] sm:$0xff]
  %v1867 = vld [vmem:[%s1813 + $0x1a8] sm:$0xff]
  %v1868 = vld [vmem:[%s1813 + $0x1b0] sm:$0xff]
  %v1869 = vld [vmem:[%s1813 + $0x1b8] sm:$0xff]
  %v1870 = vld [vmem:[%s1813 + $0x1c0] sm:$0xff]
  %v1871 = vld [vmem:[%s1813 + $0x1c8] sm:$0xff]
  %v1872 = vld [vmem:[%s1813 + $0x1d0] sm:$0xff]
  %v1873 = vld [vmem:[%s1813 + $0x1d8] sm:$0xff]
  %v1874 = vld [vmem:[%s1813 + $0x1e0] sm:$0xff]
  %v1875 = vld [vmem:[%s1813 + $0x1e8] sm:$0xff]
  %v1876 = vld [vmem:[%s1813 + $0x1f0] sm:$0xff]
  %v1878 = vsel %vm184, %v1820, 0
  %v1881 = vsel %vm184, %v1827, 0
  %v1884 = vsel %vm184, %v1834, 0
  %v1887 = vsel %vm184, %v1841, 0
  %v1890 = vsel %vm184, %v1848, 0
  %v1893 = vsel %vm184, %v1855, 0
  %v1896 = vsel %vm184, %v1862, 0
  %v1899 = vsel %vm184, %v1869, 0
  %v1902 = vsel %vm184, %v1876, 0
  %1904 = vmatprep.subr.mxu0 0.0
  %1905 = vmatpush1.msra.mxu0 %v29
  %1906 = vmatprep.subr.mxu0 0.0
  %1907 = vmatpush1.msra.mxu0 %v28
  %1908 = vmatprep.subr.mxu0 0.0
  %1909 = vmatpush1.msra.mxu0 %v27
  %1910 = vmatprep.subr.mxu0 0.0
  %1911 = vmatpush1.msra.mxu0 %v26
  %1912 = vmatprep.subr.mxu0 0.0
  %1913 = vmatpush1.msra.mxu0 %v25
  %1914 = vmatprep.subr.mxu0 0.0
  %1915 = vmatpush1.msra.mxu0 %v24
  %1916 = vmatprep.subr.mxu0 0.0
  %1917 = vmatpush1.msra.mxu0 %v23
  %1918 = vmatprep.subr.mxu0 0.0
  %1919 = vmatpush1.msra.mxu0 %v22
  %1920 = vmatprep.subr.mxu0 0.0
  %1921 = vmatpush1.msra.mxu0 %v21
  %1922 = vmatprep.subr.mxu0 0.0
  %1923 = vmatpush1.msra.mxu0 %v20
  %1924 = vmatprep.subr.mxu0 0.0
  %1925 = vmatpush1.msra.mxu0 %v19
  %1926 = vmatprep.subr.mxu0 0.0
  %1927 = vmatpush1.msra.mxu0 %v18
  %1928 = vmatprep.subr.mxu0 0.0
  %1929 = vmatpush1.msra.mxu0 %v17
  %1930 = vmatprep.subr.mxu0 0.0
  %1931 = vmatpush1.msra.mxu0 %v16
  %1932 = vmatprep.subr.mxu0 0.0
  %1933 = vmatpush1.msra.mxu0 %v15
  %1934 = vmatprep.subr.mxu0 0.0
  %1935 = vmatpush1.msra.mxu0 %v14
  %1936 = vmatprep.subr.mxu0 0.0
  %1937 = vmatpush2.msra.mxu0 %v45
  %1938 = vmatprep.subr.mxu0 0.0
  %1939 = vmatpush2.msra.mxu0 %v44
  %1940 = vmatprep.subr.mxu0 0.0
  %1941 = vmatpush2.msra.mxu0 %v43
  %1942 = vmatprep.subr.mxu0 0.0
  %1943 = vmatpush2.msra.mxu0 %v42
  %1944 = vmatprep.subr.mxu0 0.0
  %1945 = vmatpush2.msra.mxu0 %v41
  %1946 = vmatprep.subr.mxu0 0.0
  %1947 = vmatpush2.msra.mxu0 %v40
  %1948 = vmatprep.subr.mxu0 0.0
  %1949 = vmatpush2.msra.mxu0 %v39
  %1950 = vmatprep.subr.mxu0 0.0
  %1951 = vmatpush2.msra.mxu0 %v38
  %1952 = vmatprep.subr.mxu0 0.0
  %1953 = vmatpush2.msra.mxu0 %v37
  %1954 = vmatprep.subr.mxu0 0.0
  %1955 = vmatpush2.msra.mxu0 %v36
  %1956 = vmatprep.subr.mxu0 0.0
  %1957 = vmatpush2.msra.mxu0 %v35
  %1958 = vmatprep.subr.mxu0 0.0
  %1959 = vmatpush2.msra.mxu0 %v34
  %1960 = vmatprep.subr.mxu0 0.0
  %1961 = vmatpush2.msra.mxu0 %v33
  %1962 = vmatprep.subr.mxu0 0.0
  %1963 = vmatpush2.msra.mxu0 %v32
  %1964 = vmatprep.subr.mxu0 0.0
  %1965 = vmatpush2.msra.mxu0 %v31
  %1966 = vmatprep.subr.mxu0 0.0
  %1967 = vmatpush2.msra.mxu0 %v30
  %1968 = vmatprep.mubr.f32.mxu0 %v1815
  %1969 = vmatmul.mubr.f32.gmra.mxu0 %v1814
  %v1970 = vpop.f32.mrf.mxu0
  %v1971 = vadd.f32 %v182, %v1970
  %v1972 = vpop.f32.mrf.mxu0
  %1973 = vmatprep.mubr.f32.mxu0 %v1822
  %1974 = vmatmul.mubr.f32.gmra.mxu0 %v1821
  %v1975 = vpop.f32.mrf.mxu0
  %v1976 = vadd.f32 %v182, %v1975
  %v1977 = vpop.f32.mrf.mxu0
  %1978 = vmatprep.mubr.f32.mxu0 %v1829
  %1979 = vmatmul.mubr.f32.gmra.mxu0 %v1828
  %v1980 = vpop.f32.mrf.mxu0
  %v1981 = vadd.f32 %v182, %v1980
  %v1982 = vpop.f32.mrf.mxu0
  %1983 = vmatprep.mubr.f32.mxu0 %v1836
  %1984 = vmatmul.mubr.f32.gmra.mxu0 %v1835
  %v1985 = vpop.f32.mrf.mxu0
  %v1986 = vadd.f32 %v182, %v1985
  %v1987 = vpop.f32.mrf.mxu0
  %1988 = vmatprep.mubr.f32.mxu0 %v1843
  %1989 = vmatmul.mubr.f32.gmra.mxu0 %v1842
  %v1990 = vpop.f32.mrf.mxu0
  %v1991 = vadd.f32 %v182, %v1990
  %v1992 = vpop.f32.mrf.mxu0
  %1993 = vmatprep.mubr.f32.mxu0 %v1850
  %1994 = vmatmul.mubr.f32.gmra.mxu0 %v1849
  %v1995 = vpop.f32.mrf.mxu0
  %v1996 = vadd.f32 %v182, %v1995
  %v1997 = vpop.f32.mrf.mxu0
  %1998 = vmatprep.mubr.f32.mxu0 %v1857
  %1999 = vmatmul.mubr.f32.gmra.mxu0 %v1856
  %v2000 = vpop.f32.mrf.mxu0
  %v2001 = vadd.f32 %v182, %v2000
  %v2002 = vpop.f32.mrf.mxu0
  %2003 = vmatprep.mubr.f32.mxu0 %v1864
  %2004 = vmatmul.mubr.f32.gmra.mxu0 %v1863
  %v2005 = vpop.f32.mrf.mxu0
  %v2006 = vadd.f32 %v182, %v2005
  %v2007 = vpop.f32.mrf.mxu0
  %2008 = vmatprep.mubr.f32.mxu0 %v1871
  %2009 = vmatmul.mubr.f32.gmra.mxu0 %v1870
  %v2010 = vpop.f32.mrf.mxu0
  %v2011 = vadd.f32 %v182, %v2010
  %v2012 = vpop.f32.mrf.mxu0
  %2013 = vdwg.mxu0
  %2014 = vmatprep.subr.mxu0 0.0
  %2015 = vmatpush1.msra.mxu0 %v61
  %2016 = vmatprep.subr.mxu0 0.0
  %2017 = vmatpush1.msra.mxu0 %v60
  %2018 = vmatprep.subr.mxu0 0.0
  %2019 = vmatpush1.msra.mxu0 %v59
  %2020 = vmatprep.subr.mxu0 0.0
  %2021 = vmatpush1.msra.mxu0 %v58
  %2022 = vmatprep.subr.mxu0 0.0
  %2023 = vmatpush1.msra.mxu0 %v57
  %2024 = vmatprep.subr.mxu0 0.0
  %2025 = vmatpush1.msra.mxu0 %v56
  %2026 = vmatprep.subr.mxu0 0.0
  %2027 = vmatpush1.msra.mxu0 %v55
  %2028 = vmatprep.subr.mxu0 0.0
  %2029 = vmatpush1.msra.mxu0 %v54
  %2030 = vmatprep.subr.mxu0 0.0
  %2031 = vmatpush1.msra.mxu0 %v53
  %2032 = vmatprep.subr.mxu0 0.0
  %2033 = vmatpush1.msra.mxu0 %v52
  %2034 = vmatprep.subr.mxu0 0.0
  %2035 = vmatpush1.msra.mxu0 %v51
  %2036 = vmatprep.subr.mxu0 0.0
  %2037 = vmatpush1.msra.mxu0 %v50
  %2038 = vmatprep.subr.mxu0 0.0
  %2039 = vmatpush1.msra.mxu0 %v49
  %2040 = vmatprep.subr.mxu0 0.0
  %2041 = vmatpush1.msra.mxu0 %v48
  %2042 = vmatprep.subr.mxu0 0.0
  %2043 = vmatpush1.msra.mxu0 %v47
  %2044 = vmatprep.subr.mxu0 0.0
  %2045 = vmatpush1.msra.mxu0 %v46
  %2046 = vmatprep.subr.mxu0 0.0
  %2047 = vmatpush2.msra.mxu0 %v77
  %2048 = vmatprep.subr.mxu0 0.0
  %2049 = vmatpush2.msra.mxu0 %v76
  %2050 = vmatprep.subr.mxu0 0.0
  %2051 = vmatpush2.msra.mxu0 %v75
  %2052 = vmatprep.subr.mxu0 0.0
  %2053 = vmatpush2.msra.mxu0 %v74
  %2054 = vmatprep.subr.mxu0 0.0
  %2055 = vmatpush2.msra.mxu0 %v73
  %2056 = vmatprep.subr.mxu0 0.0
  %2057 = vmatpush2.msra.mxu0 %v72
  %2058 = vmatprep.subr.mxu0 0.0
  %2059 = vmatpush2.msra.mxu0 %v71
  %2060 = vmatprep.subr.mxu0 0.0
  %2061 = vmatpush2.msra.mxu0 %v70
  %2062 = vmatprep.subr.mxu0 0.0
  %2063 = vmatpush2.msra.mxu0 %v69
  %2064 = vmatprep.subr.mxu0 0.0
  %2065 = vmatpush2.msra.mxu0 %v68
  %2066 = vmatprep.subr.mxu0 0.0
  %2067 = vmatpush2.msra.mxu0 %v67
  %2068 = vmatprep.subr.mxu0 0.0
  %2069 = vmatpush2.msra.mxu0 %v66
  %2070 = vmatprep.subr.mxu0 0.0
  %2071 = vmatpush2.msra.mxu0 %v65
  %2072 = vmatprep.subr.mxu0 0.0
  %2073 = vmatpush2.msra.mxu0 %v64
  %2074 = vmatprep.subr.mxu0 0.0
  %2075 = vmatpush2.msra.mxu0 %v63
  %2076 = vmatprep.subr.mxu0 0.0
  %2077 = vmatpush2.msra.mxu0 %v62
  %2078 = vmatprep.mubr.f32.mxu0 %v1817
  %2079 = vmatmul.mubr.f32.gmra.mxu0 %v1816
  %v2080 = vpop.f32.mrf.mxu0
  %v2081 = vadd.f32 %v1971, %v2080
  %v2082 = vpop.f32.mrf.mxu0
  %2083 = vmatprep.mubr.f32.mxu0 %v1824
  %2084 = vmatmul.mubr.f32.gmra.mxu0 %v1823
  %v2085 = vpop.f32.mrf.mxu0
  %v2086 = vadd.f32 %v1976, %v2085
  %v2087 = vpop.f32.mrf.mxu0
  %2088 = vmatprep.mubr.f32.mxu0 %v1831
  %2089 = vmatmul.mubr.f32.gmra.mxu0 %v1830
  %v2090 = vpop.f32.mrf.mxu0
  %v2091 = vadd.f32 %v1981, %v2090
  %v2092 = vpop.f32.mrf.mxu0
  %2093 = vmatprep.mubr.f32.mxu0 %v1838
  %2094 = vmatmul.mubr.f32.gmra.mxu0 %v1837
  %v2095 = vpop.f32.mrf.mxu0
  %v2096 = vadd.f32 %v1986, %v2095
  %v2097 = vpop.f32.mrf.mxu0
  %2098 = vmatprep.mubr.f32.mxu0 %v1845
  %2099 = vmatmul.mubr.f32.gmra.mxu0 %v1844
  %v2100 = vpop.f32.mrf.mxu0
  %v2101 = vadd.f32 %v1991, %v2100
  %v2102 = vpop.f32.mrf.mxu0
  %2103 = vmatprep.mubr.f32.mxu0 %v1852
  %2104 = vmatmul.mubr.f32.gmra.mxu0 %v1851
  %v2105 = vpop.f32.mrf.mxu0
  %v2106 = vadd.f32 %v1996, %v2105
  %v2107 = vpop.f32.mrf.mxu0
  %2108 = vmatprep.mubr.f32.mxu0 %v1859
  %2109 = vmatmul.mubr.f32.gmra.mxu0 %v1858
  %v2110 = vpop.f32.mrf.mxu0
  %v2111 = vadd.f32 %v2001, %v2110
  %v2112 = vpop.f32.mrf.mxu0
  %2113 = vmatprep.mubr.f32.mxu0 %v1866
  %2114 = vmatmul.mubr.f32.gmra.mxu0 %v1865
  %v2115 = vpop.f32.mrf.mxu0
  %v2116 = vadd.f32 %v2006, %v2115
  %v2117 = vpop.f32.mrf.mxu0
  %2118 = vmatprep.mubr.f32.mxu0 %v1873
  %2119 = vmatmul.mubr.f32.gmra.mxu0 %v1872
  %v2120 = vpop.f32.mrf.mxu0
  %v2121 = vadd.f32 %v2011, %v2120
  %v2122 = vpop.f32.mrf.mxu0
  %2123 = vdwg.mxu0
  %2124 = vmatprep.subr.mxu0 0.0
  %2125 = vmatpush1.msra.mxu0 %v93
  %2126 = vmatprep.subr.mxu0 0.0
  %2127 = vmatpush1.msra.mxu0 %v92
  %2128 = vmatprep.subr.mxu0 0.0
  %2129 = vmatpush1.msra.mxu0 %v91
  %2130 = vmatprep.subr.mxu0 0.0
  %2131 = vmatpush1.msra.mxu0 %v90
  %2132 = vmatprep.subr.mxu0 0.0
  %2133 = vmatpush1.msra.mxu0 %v89
  %2134 = vmatprep.subr.mxu0 0.0
  %2135 = vmatpush1.msra.mxu0 %v88
  %2136 = vmatprep.subr.mxu0 0.0
  %2137 = vmatpush1.msra.mxu0 %v87
  %2138 = vmatprep.subr.mxu0 0.0
  %2139 = vmatpush1.msra.mxu0 %v86
  %2140 = vmatprep.subr.mxu0 0.0
  %2141 = vmatpush1.msra.mxu0 %v85
  %2142 = vmatprep.subr.mxu0 0.0
  %2143 = vmatpush1.msra.mxu0 %v84
  %2144 = vmatprep.subr.mxu0 0.0
  %2145 = vmatpush1.msra.mxu0 %v83
  %2146 = vmatprep.subr.mxu0 0.0
  %2147 = vmatpush1.msra.mxu0 %v82
  %2148 = vmatprep.subr.mxu0 0.0
  %2149 = vmatpush1.msra.mxu0 %v81
  %2150 = vmatprep.subr.mxu0 0.0
  %2151 = vmatpush1.msra.mxu0 %v80
  %2152 = vmatprep.subr.mxu0 0.0
  %2153 = vmatpush1.msra.mxu0 %v79
  %2154 = vmatprep.subr.mxu0 0.0
  %2155 = vmatpush1.msra.mxu0 %v78
  %2156 = vmatprep.subr.mxu0 0.0
  %2157 = vmatpush2.msra.mxu0 %v109
  %2158 = vmatprep.subr.mxu0 0.0
  %2159 = vmatpush2.msra.mxu0 %v108
  %2160 = vmatprep.subr.mxu0 0.0
  %2161 = vmatpush2.msra.mxu0 %v107
  %2162 = vmatprep.subr.mxu0 0.0
  %2163 = vmatpush2.msra.mxu0 %v106
  %2164 = vmatprep.subr.mxu0 0.0
  %2165 = vmatpush2.msra.mxu0 %v105
  %2166 = vmatprep.subr.mxu0 0.0
  %2167 = vmatpush2.msra.mxu0 %v104
  %2168 = vmatprep.subr.mxu0 0.0
  %2169 = vmatpush2.msra.mxu0 %v103
  %2170 = vmatprep.subr.mxu0 0.0
  %2171 = vmatpush2.msra.mxu0 %v102
  %2172 = vmatprep.subr.mxu0 0.0
  %2173 = vmatpush2.msra.mxu0 %v101
  %2174 = vmatprep.subr.mxu0 0.0
  %2175 = vmatpush2.msra.mxu0 %v100
  %2176 = vmatprep.subr.mxu0 0.0
  %2177 = vmatpush2.msra.mxu0 %v99
  %2178 = vmatprep.subr.mxu0 0.0
  %2179 = vmatpush2.msra.mxu0 %v98
  %2180 = vmatprep.subr.mxu0 0.0
  %2181 = vmatpush2.msra.mxu0 %v97
  %2182 = vmatprep.subr.mxu0 0.0
  %2183 = vmatpush2.msra.mxu0 %v96
  %2184 = vmatprep.subr.mxu0 0.0
  %2185 = vmatpush2.msra.mxu0 %v95
  %2186 = vmatprep.subr.mxu0 0.0
  %2187 = vmatpush2.msra.mxu0 %v94
  %2188 = vmatprep.mubr.f32.mxu0 %v1819
  %2189 = vmatmul.mubr.f32.gmra.mxu0 %v1818
  %v2190 = vpop.f32.mrf.mxu0
  %v2191 = vadd.f32 %v2081, %v2190
  %v2192 = vpop.f32.mrf.mxu0
  %2193 = vmatprep.mubr.f32.mxu0 %v1826
  %2194 = vmatmul.mubr.f32.gmra.mxu0 %v1825
  %v2195 = vpop.f32.mrf.mxu0
  %v2196 = vadd.f32 %v2086, %v2195
  %v2197 = vpop.f32.mrf.mxu0
  %2198 = vmatprep.mubr.f32.mxu0 %v1833
  %2199 = vmatmul.mubr.f32.gmra.mxu0 %v1832
  %v2200 = vpop.f32.mrf.mxu0
  %v2201 = vadd.f32 %v2091, %v2200
  %v2202 = vpop.f32.mrf.mxu0
  %2203 = vmatprep.mubr.f32.mxu0 %v1840
  %2204 = vmatmul.mubr.f32.gmra.mxu0 %v1839
  %v2205 = vpop.f32.mrf.mxu0
  %v2206 = vadd.f32 %v2096, %v2205
  %v2207 = vpop.f32.mrf.mxu0
  %2208 = vmatprep.mubr.f32.mxu0 %v1847
  %2209 = vmatmul.mubr.f32.gmra.mxu0 %v1846
  %v2210 = vpop.f32.mrf.mxu0
  %v2211 = vadd.f32 %v2101, %v2210
  %v2212 = vpop.f32.mrf.mxu0
  %2213 = vmatprep.mubr.f32.mxu0 %v1854
  %2214 = vmatmul.mubr.f32.gmra.mxu0 %v1853
  %v2215 = vpop.f32.mrf.mxu0
  %v2216 = vadd.f32 %v2106, %v2215
  %v2217 = vpop.f32.mrf.mxu0
  %2218 = vmatprep.mubr.f32.mxu0 %v1861
  %2219 = vmatmul.mubr.f32.gmra.mxu0 %v1860
  %v2220 = vpop.f32.mrf.mxu0
  %v2221 = vadd.f32 %v2111, %v2220
  %v2222 = vpop.f32.mrf.mxu0
  %2223 = vmatprep.mubr.f32.mxu0 %v1868
  %2224 = vmatmul.mubr.f32.gmra.mxu0 %v1867
  %v2225 = vpop.f32.mrf.mxu0
  %v2226 = vadd.f32 %v2116, %v2225
  %v2227 = vpop.f32.mrf.mxu0
  %2228 = vmatprep.mubr.f32.mxu0 %v1875
  %2229 = vmatmul.mubr.f32.gmra.mxu0 %v1874
  %v2230 = vpop.f32.mrf.mxu0
  %v2231 = vadd.f32 %v2121, %v2230
  %v2232 = vpop.f32.mrf.mxu0
  %2233 = vdwg.mxu0
  %2234 = vmatprep.subr.mxu0 0.0
  %2235 = vmatpush1.msra.mxu0 0.0
  %2236 = vmatprep.subr.mxu0 0.0
  %2237 = vmatpush1.msra.mxu0 0.0
  %2238 = vmatprep.subr.mxu0 0.0
  %2239 = vmatpush1.msra.mxu0 0.0
  %2240 = vmatprep.subr.mxu0 0.0
  %2241 = vmatpush1.msra.mxu0 0.0
  %2242 = vmatprep.subr.mxu0 0.0
  %2243 = vmatpush1.msra.mxu0 0.0
  %2244 = vmatprep.subr.mxu0 0.0
  %2245 = vmatpush1.msra.mxu0 0.0
  %2246 = vmatprep.subr.mxu0 0.0
  %2247 = vmatpush1.msra.mxu0 0.0
  %2248 = vmatprep.subr.mxu0 0.0
  %2249 = vmatpush1.msra.mxu0 0.0
  %2250 = vmatprep.subr.mxu0 0.0
  %2251 = vmatpush1.msra.mxu0 0.0
  %2252 = vmatprep.subr.mxu0 0.0
  %2253 = vmatpush1.msra.mxu0 0.0
  %2254 = vmatprep.subr.mxu0 0.0
  %2255 = vmatpush1.msra.mxu0 0.0
  %2256 = vmatprep.subr.mxu0 0.0
  %2257 = vmatpush1.msra.mxu0 0.0
  %2258 = vmatprep.subr.mxu0 0.0
  %2259 = vmatpush1.msra.mxu0 %v113
  %2260 = vmatprep.subr.mxu0 0.0
  %2261 = vmatpush1.msra.mxu0 %v112
  %2262 = vmatprep.subr.mxu0 0.0
  %2263 = vmatpush1.msra.mxu0 %v111
  %2264 = vmatprep.subr.mxu0 0.0
  %2265 = vmatpush1.msra.mxu0 %v110
  %2266 = vmatprep.subr.mxu0 0.0
  %2267 = vmatpush2.msra.mxu0 0.0
  %2268 = vmatprep.subr.mxu0 0.0
  %2269 = vmatpush2.msra.mxu0 0.0
  %2270 = vmatprep.subr.mxu0 0.0
  %2271 = vmatpush2.msra.mxu0 0.0
  %2272 = vmatprep.subr.mxu0 0.0
  %2273 = vmatpush2.msra.mxu0 0.0
  %2274 = vmatprep.subr.mxu0 0.0
  %2275 = vmatpush2.msra.mxu0 0.0
  %2276 = vmatprep.subr.mxu0 0.0
  %2277 = vmatpush2.msra.mxu0 0.0
  %2278 = vmatprep.subr.mxu0 0.0
  %2279 = vmatpush2.msra.mxu0 0.0
  %2280 = vmatprep.subr.mxu0 0.0
  %2281 = vmatpush2.msra.mxu0 0.0
  %2282 = vmatprep.subr.mxu0 0.0
  %2283 = vmatpush2.msra.mxu0 0.0
  %2284 = vmatprep.subr.mxu0 0.0
  %2285 = vmatpush2.msra.mxu0 0.0
  %2286 = vmatprep.subr.mxu0 0.0
  %2287 = vmatpush2.msra.mxu0 0.0
  %2288 = vmatprep.subr.mxu0 0.0
  %2289 = vmatpush2.msra.mxu0 0.0
  %2290 = vmatprep.subr.mxu0 0.0
  %2291 = vmatpush2.msra.mxu0 0.0
  %2292 = vmatprep.subr.mxu0 0.0
  %2293 = vmatpush2.msra.mxu0 0.0
  %2294 = vmatprep.subr.mxu0 0.0
  %2295 = vmatpush2.msra.mxu0 0.0
  %2296 = vmatprep.subr.mxu0 0.0
  %2297 = vmatpush2.msra.mxu0 0.0
  %2298 = vmatprep.mubr.f32.mxu0 0.0
  %2299 = vmatmul.mubr.f32.gmra.mxu0 %v1878
  %v2300 = vpop.f32.mrf.mxu0
  %v2301 = vadd.f32 %v2191, %v2300
  %v2302 = vpop.f32.mrf.mxu0
  %2303 = vmatprep.mubr.f32.mxu0 0.0
  %2304 = vmatmul.mubr.f32.gmra.mxu0 %v1881
  %v2305 = vpop.f32.mrf.mxu0
  %v2306 = vadd.f32 %v2196, %v2305
  %v2307 = vpop.f32.mrf.mxu0
  %2308 = vmatprep.mubr.f32.mxu0 0.0
  %2309 = vmatmul.mubr.f32.gmra.mxu0 %v1884
  %v2310 = vpop.f32.mrf.mxu0
  %v2311 = vadd.f32 %v2201, %v2310
  %v2312 = vpop.f32.mrf.mxu0
  %2313 = vmatprep.mubr.f32.mxu0 0.0
  %2314 = vmatmul.mubr.f32.gmra.mxu0 %v1887
  %v2315 = vpop.f32.mrf.mxu0
  %v2316 = vadd.f32 %v2206, %v2315
  %v2317 = vpop.f32.mrf.mxu0
  %2318 = vmatprep.mubr.f32.mxu0 0.0
  %2319 = vmatmul.mubr.f32.gmra.mxu0 %v1890
  %v2320 = vpop.f32.mrf.mxu0
  %v2321 = vadd.f32 %v2211, %v2320
  %v2322 = vpop.f32.mrf.mxu0
  %2323 = vmatprep.mubr.f32.mxu0 0.0
  %2324 = vmatmul.mubr.f32.gmra.mxu0 %v1893
  %v2325 = vpop.f32.mrf.mxu0
  %v2326 = vadd.f32 %v2216, %v2325
  %v2327 = vpop.f32.mrf.mxu0
  %2328 = vmatprep.mubr.f32.mxu0 0.0
  %2329 = vmatmul.mubr.f32.gmra.mxu0 %v1896
  %v2330 = vpop.f32.mrf.mxu0
  %v2331 = vadd.f32 %v2221, %v2330
  %v2332 = vpop.f32.mrf.mxu0
  %2333 = vmatprep.mubr.f32.mxu0 0.0
  %2334 = vmatmul.mubr.f32.gmra.mxu0 %v1899
  %v2335 = vpop.f32.mrf.mxu0
  %v2336 = vadd.f32 %v2226, %v2335
  %v2337 = vpop.f32.mrf.mxu0
  %2338 = vmatprep.mubr.f32.mxu0 0.0
  %2339 = vmatmul.mubr.f32.gmra.mxu0 %v1902
  %v2340 = vpop.f32.mrf.mxu0
  %v2341 = vadd.f32 %v2231, %v2340
  %v2342 = vpop.f32.mrf.mxu0
  %2343 = vdwg.mxu0
  %vm2344 = vcmp.gt.f32.partialorder %v2301, 0.0
  %vm2345 = vcmp.gt.f32.partialorder %v2306, 0.0
  %vm2346 = vcmp.gt.f32.partialorder %v2311, 0.0
  %vm2347 = vcmp.gt.f32.partialorder %v2316, 0.0
  %vm2348 = vcmp.gt.f32.partialorder %v2321, 0.0
  %vm2349 = vcmp.gt.f32.partialorder %v2326, 0.0
  %vm2350 = vcmp.gt.f32.partialorder %v2331, 0.0
  %vm2351 = vcmp.gt.f32.partialorder %v2336, 0.0
  %vm2352 = vcmp.gt.f32.partialorder %v2341, 0.0
  %v2353 = vmul.f32 %v2301, 0.1
  %v2354 = vmul.f32 %v2306, 0.1
  %v2355 = vmul.f32 %v2311, 0.1
  %v2356 = vmul.f32 %v2316, 0.1
  %v2357 = vmul.f32 %v2321, 0.1
  %v2358 = vmul.f32 %v2326, 0.1
  %v2359 = vmul.f32 %v2331, 0.1
  %v2360 = vmul.f32 %v2336, 0.1
  %v2361 = vmul.f32 %v2341, 0.1
  %v2362 = vsel %vm2344, %v2301, %v2353
  %v2363 = vsel %vm2345, %v2306, %v2354
  %v2364 = vsel %vm2346, %v2311, %v2355
  %v2365 = vsel %vm2347, %v2316, %v2356
  %v2366 = vsel %vm2348, %v2321, %v2357
  %v2367 = vsel %vm2349, %v2326, %v2358
  %v2368 = vsel %vm2350, %v2331, %v2359
  %v2369 = vsel %vm2351, %v2336, %v2360
  %v2370 = vsel %vm2352, %v2341, %v2361
  %v2371 = vmax.f32 %v1804, %v2362
  %v2372 = vmax.f32 %v1805, %v2363
  %v2373 = vmax.f32 %v1806, %v2364
  %v2374 = vmax.f32 %v1807, %v2365
  %v2375 = vmax.f32 %v1808, %v2366
  %v2376 = vmax.f32 %v1809, %v2367
  %v2377 = vmax.f32 %v1810, %v2368
  %v2378 = vmax.f32 %v1811, %v2369
  %v2379 = vmax.f32 %v1812, %v2370
  %2380 = vst [vmem:[%s3] sm:$0xff] %v2371
  %2381 = vst [vmem:[%s3 + $0x8] sm:$0xff] %v2372
  %2382 = vst [vmem:[%s3 + $0x10] sm:$0xff] %v2373
  %2383 = vst [vmem:[%s3 + $0x18] sm:$0xff] %v2374
  %2384 = vst [vmem:[%s3 + $0x20] sm:$0xff] %v2375
  %2385 = vst [vmem:[%s3 + $0x28] sm:$0xff] %v2376
  %2386 = vst [vmem:[%s3 + $0x30] sm:$0xff] %v2377
  %2387 = vst [vmem:[%s3 + $0x38] sm:$0xff] %v2378
  %2388 = vst [vmem:[%s3 + $0x40] sm:$0xff] %v2379
  // Predicated region
  $region14: #{voxaenet_forward.4} parent=0 // pred_check
    _
  $region15: #{voxaenet_forward.4} parent=0 // pred_check_branch
    %2390 = sbr.rel (0) target = $region17
  $region16: #{voxaenet_forward.4} parent=0 // pred_region
    _
  $region17: #{voxaenet_forward.4} parent=0 // pred_fallthru
    _
  // Predicated region
  $region18: #{voxaenet_forward.4} parent=0 // pred_check
    _
  $region19: #{voxaenet_forward.4} parent=0 // pred_check_branch
    %2392 = sbr.rel (0) target = $region21
  $region20: #{voxaenet_forward.4} parent=0 // pred_region
    _
  $region21: #{voxaenet_forward.4} parent=0 // pred_fallthru
    _

</llo_original>
